<compile_context>
chip_gen: v7x
topology: tpu7x:2x2x1
jax: 0.10.0
libtpu: 0.0.40
codegen_flags: <defaults>
</compile_context>

<pallas_src>
import functools

import numpy as np
import jax
import jax.numpy as jnp
from jax.experimental import pallas as pl
from jax.experimental.pallas import tpu as pltpu

MATMUL_DTYPE = jnp.bfloat16   # MXU operand dtype (accumulation stays f32)


# ----------------------------------------------------------------------------
# Fused MLP kernel:  out = [LN]( [res +] [x +] act-stack(x) )
# ----------------------------------------------------------------------------
def _make_mlp_kernel(n_layers, has_residual, has_ln, add_input, last_act):
    """Build a kernel applying `n_layers` Linear layers (ReLU between) with an
    optional residual-add / add-input / affine LayerNorm epilogue."""

    def kernel(*refs):
        idx = 0
        x_ref = refs[idx]; idx += 1
        wb_refs = refs[idx:idx + 2 * n_layers]; idx += 2 * n_layers
        res_ref = None
        if has_residual:
            res_ref = refs[idx]; idx += 1
        g_ref = beta_ref = None
        if has_ln:
            g_ref = refs[idx]; idx += 1
            beta_ref = refs[idx]; idx += 1
        o_ref = refs[idx]

        x = x_ref[...].astype(jnp.float32)
        h = x
        for li in range(n_layers):
            w = wb_refs[2 * li][...]                       # bf16, VMEM-resident
            b = wb_refs[2 * li + 1][...].astype(jnp.float32)
            h = jnp.dot(h.astype(w.dtype), w,
                        preferred_element_type=jnp.float32) + b
            if li < n_layers - 1 or last_act:
                h = jnp.maximum(h, 0.0)
        if add_input:                                      # FFN-style residual
            h = h + x
        if has_residual:                                   # external residual
            h = h + res_ref[...].astype(jnp.float32)
        if has_ln:                                         # affine LayerNorm
            mu = jnp.mean(h, axis=-1, keepdims=True)
            var = jnp.mean(jnp.square(h - mu), axis=-1, keepdims=True)
            h = (h - mu) * jax.lax.rsqrt(var + 1e-5)
            h = h * g_ref[...].astype(jnp.float32) \
                  + beta_ref[...].astype(jnp.float32)
        o_ref[...] = h.astype(o_ref.dtype)

    return kernel


def _row_tile(m, max_rows=2048):
    """Largest row tile that divides m (no padding): whole batch if small,
    otherwise the biggest multiple-of-8 divisor <= max_rows."""
    if m <= max_rows:
        return m
    for tm in range(max_rows, 0, -8):
        if m % tm == 0:
            return tm
    return m   # fall back to a single full-extent tile


def fused_mlp(x2d, layers, *, residual=None, ln=None, add_input=False,
              last_act=False, out_dtype=jnp.float32):
    """Apply a whole Linear/ReLU stack (plus optional residual / LayerNorm
    epilogue) in ONE pallas_call.  x2d: [M, K] f32; layers: list of (w, b)."""
    M, K = x2d.shape
    n_layers = len(layers)
    n_out = layers[-1][0].shape[1]
    if add_input:
        assert K == n_out, "add_input requires matching in/out feature dims"
    if residual is not None:
        assert residual.shape == (M, n_out)

    tm = _row_tile(M)
    grid = (M // tm,)

    in_specs = [pl.BlockSpec((tm, K), lambda i: (i, 0))]
    args = [x2d]
    for (w, b) in layers:
        kdim, ndim = w.shape
        in_specs.append(pl.BlockSpec((kdim, ndim), lambda i: (0, 0)))
        in_specs.append(pl.BlockSpec((1, ndim), lambda i: (0, 0)))
        args.append(w)
        args.append(b.reshape(1, ndim))
    if residual is not None:
        in_specs.append(pl.BlockSpec((tm, n_out), lambda i: (i, 0)))
        args.append(residual)
    if ln is not None:
        g, beta = ln
        in_specs.append(pl.BlockSpec((1, n_out), lambda i: (0, 0)))
        in_specs.append(pl.BlockSpec((1, n_out), lambda i: (0, 0)))
        args.append(g.reshape(1, n_out))
        args.append(beta.reshape(1, n_out))

    kernel = _make_mlp_kernel(n_layers, residual is not None, ln is not None,
                              add_input, last_act)
    return pl.pallas_call(
        kernel,
        out_shape=jax.ShapeDtypeStruct((M, n_out), out_dtype),
        grid=grid,
        in_specs=in_specs,
        out_specs=pl.BlockSpec((tm, n_out), lambda i: (i, 0)),
        compiler_params=pltpu.CompilerParams(
            dimension_semantics=("parallel",)),
    )(*args)


# ----------------------------------------------------------------------------
# Attention kernel: softmax(q k^T * scale + mask) v, one (batch, head) / step
# ----------------------------------------------------------------------------
def _attn_kernel(q_ref, k_ref, v_ref, m_ref, o_ref, *, scale):
    q = q_ref[0].astype(jnp.float32)                        # [N, dh]
    k = k_ref[0].astype(jnp.float32)                        # [N, dh]
    v = v_ref[0].astype(jnp.float32)                        # [N, dh]
    s = jax.lax.dot_general(q, k, (((1,), (1,)), ((), ())),
                            preferred_element_type=jnp.float32)
    s = s * scale + m_ref[...]                              # additive mask
    s = s - jnp.max(s, axis=-1, keepdims=True)
    p = jnp.exp(s)
    p = p * pl.reciprocal(jnp.sum(p, axis=-1, keepdims=True), approx=True)
    o = jnp.dot(p, v, preferred_element_type=jnp.float32)
    o_ref[0] = o.astype(o_ref.dtype)


def mha_attention(qh, kh, vh, add_mask):
    """qh/kh/vh: [B*H, N, dh] f32; add_mask: [N, N] f32 additive logits mask."""
    BH, N, dh = qh.shape
    kernel = functools.partial(_attn_kernel, scale=1.0 / float(np.sqrt(dh)))
    return pl.pallas_call(
        kernel,
        out_shape=jax.ShapeDtypeStruct((BH, N, dh), jnp.float32),
        grid=(BH,),
        in_specs=[
            pl.BlockSpec((1, N, dh), lambda i: (i, 0, 0)),
            pl.BlockSpec((1, N, dh), lambda i: (i, 0, 0)),
            pl.BlockSpec((1, N, dh), lambda i: (i, 0, 0)),
            pl.BlockSpec((N, N), lambda i: (0, 0)),
        ],
        out_specs=pl.BlockSpec((1, N, dh), lambda i: (i, 0, 0)),
        compiler_params=pltpu.CompilerParams(
            dimension_semantics=("parallel",)),
    )(qh, kh, vh, add_mask)


# ----------------------------------------------------------------------------
# TransformerBlock (guessed structure for nn_.TransformerBlock)
# ----------------------------------------------------------------------------
def transformer_block(p, q2d, k2d, v2d, res2d, add_mask, B, N, num_heads,
                      normalize_output=True):
    D = q2d.shape[-1]
    dh = D // num_heads

    qh = fused_mlp(q2d, [p["wq"]])
    kh = fused_mlp(k2d, [p["wk"]])
    vh = fused_mlp(v2d, [p["wv"]])

    def split_heads(x2d):
        return (x2d.reshape(B, N, num_heads, dh)
                   .transpose(0, 2, 1, 3)
                   .reshape(B * num_heads, N, dh))

    ctx = mha_attention(split_heads(qh), split_heads(kh), split_heads(vh),
                        add_mask)
    ctx = (ctx.reshape(B, num_heads, N, dh)
              .transpose(0, 2, 1, 3)
              .reshape(B * N, D))

    # out-projection + residual add + LayerNorm1, fused in one kernel
    x = fused_mlp(ctx, [p["wo"]], residual=res2d, ln=p["ln1"])
    # FFN (Linear-ReLU-Linear) + residual + optional LayerNorm2, fused
    y = fused_mlp(x, p["ffn"], add_input=True,
                  ln=p["ln2"] if normalize_output else None)
    return y


# ----------------------------------------------------------------------------
# Parameter construction (PyTorch nn.Linear-style init; weights in bf16)
# ----------------------------------------------------------------------------
def _init_linear(key, fan_in, fan_out):
    kw, kb = jax.random.split(key)
    bound = 1.0 / float(np.sqrt(fan_in))
    w = jax.random.uniform(kw, (fan_in, fan_out), jnp.float32, -bound, bound)
    b = jax.random.uniform(kb, (fan_out,), jnp.float32, -bound, bound)
    return (w.astype(MATMUL_DTYPE), b)


def _init_mlp(key, d_in, d_out, hidden):
    dims = [d_in] + list(hidden) + [d_out]
    keys = jax.random.split(key, len(dims) - 1)
    return [_init_linear(keys[i], dims[i], dims[i + 1])
            for i in range(len(dims) - 1)]


def _init_block(key, d_model, num_heads):
    ks = jax.random.split(key, 5)
    ones = jnp.ones((d_model,), jnp.float32)
    zeros = jnp.zeros((d_model,), jnp.float32)
    return {
        "wq": _init_linear(ks[0], d_model, d_model),
        "wk": _init_linear(ks[1], d_model, d_model),
        "wv": _init_linear(ks[2], d_model, d_model),
        "wo": _init_linear(ks[3], d_model, d_model),
        "ffn": _init_mlp(ks[4], d_model, d_model, [2 * d_model]),
        "ln1": (ones, zeros),
        "ln2": (ones, zeros),
    }


def _positional_encoding(d_model, max_len):
    # Matches the reference PositionalEncoding (note: positive exponent).
    position = np.arange(max_len, dtype=np.float64)[:, None]
    div_term = np.exp(np.arange(0, d_model, 2, dtype=np.float64)
                      * (np.log(10000.0) / d_model))
    pe = np.zeros((max_len, d_model), dtype=np.float64)
    pe[:, 0::2] = np.sin(position * div_term)
    pe[:, 1::2] = np.cos(position * div_term)
    return jnp.asarray(pe, dtype=jnp.float32)


def init_transformer2d(key, cfg):
    d, nc, nz = cfg["d_model"], cfg["nc"], cfg["nz"]
    n_blocks, out_dim = cfg["n_blocks"], cfg["out_dim"]
    num_heads, n_max = cfg["num_heads"], cfg["n_max"]
    hid4 = 4 * [2 * d]
    hid2 = 2 * [2 * d]
    keys = iter(jax.random.split(key, 64))
    params = {
        "pe": _positional_encoding(d, n_max),
        "mlp_inV": _init_mlp(next(keys), d, d, hid4),
        "mlp_inK": _init_mlp(next(keys), d, d, hid4),
        "mlp_inQ": [_init_mlp(next(keys), d, d, hid4) for _ in range(nc)],
        "mlp_in": [_init_linear(next(keys), nz + nz * c // nc, d)
                   for c in range(nc)],
        "blockIn": [_init_block(next(keys), d, num_heads) for _ in range(nc)],
        "layers": [[_init_block(next(keys), d, num_heads) for _ in range(nc)]
                   for _ in range(n_blocks - 1)],
        "mlp_q": [[_init_mlp(next(keys), d, d, hid4) for _ in range(nc)]
                  for _ in range(n_blocks - 1)],
        "mlp_k": [_init_mlp(next(keys), d, d, hid4)
                  for _ in range(n_blocks - 1)],
        "mlp_v": [_init_mlp(next(keys), d, d, hid4)
                  for _ in range(n_blocks - 1)],
        "mlp_out": [_init_mlp(next(keys), d, out_dim, hid2)
                    for _ in range(nc)],
    }
    # NOTE: the reference also builds `mlp_inZ`, which forward() never uses;
    # it is intentionally omitted here.
    return params


# ----------------------------------------------------------------------------
# Transformer2d.forward
# ----------------------------------------------------------------------------
def transformer2d_forward(params, embeddings, mask=None, *, cfg):
    B, n_max, nc, nzc = embeddings.shape
    d = cfg["d_model"]
    num_heads = cfg["num_heads"]
    n_blocks = cfg["n_blocks"]
    M = B * n_max

    # causal shift along the node axis, then concat along the channel axis
    shifted = jnp.concatenate(
        [jnp.zeros((B, 1, nc, nzc), embeddings.dtype), embeddings[:, :-1]],
        axis=1)
    emb_cat = jnp.concatenate([shifted, embeddings], axis=2)   # [B,N,2nc,nzc]

    if mask is None:
        add_mask = jnp.zeros((n_max, n_max), jnp.float32)
    else:
        # TODO(synk): nn_.TransformerBlock mask semantics unknown; treated as
        # an additive [n_max, n_max] attention-logit mask.
        add_mask = mask.astype(jnp.float32)

    z, q, emb = [None] * nc, [None] * nc, [None] * nc
    for c in range(nc):
        x_c = emb_cat[:, :, :nc + c].reshape(M, (nc + c) * nzc)
        z[c] = fused_mlp(x_c, [params["mlp_in"][c]])
        q[c] = fused_mlp(z[c], params["mlp_inQ"][c])
    v = fused_mlp(z[0], params["mlp_inV"])
    k = fused_mlp(z[0], params["mlp_inK"])

    # positional encoding on V (dropout p=0 in the reference -> identity)
    pe = params["pe"][:n_max]
    v = (v.reshape(B, n_max, d) + pe[None]).reshape(M, d)

    for c in range(nc):
        # TODO(synk): normalize_output default of nn_.TransformerBlock unknown;
        # assumed True for the input blocks.
        emb[c] = transformer_block(params["blockIn"][c], q[c], k, v, q[c],
                                   add_mask, B, n_max, num_heads,
                                   normalize_output=True)

    for i in range(n_blocks - 1):
        k = fused_mlp(emb[0], params["mlp_k"][i])
        v = fused_mlp(emb[0], params["mlp_v"][i])
        for c in range(nc):
            q[c] = fused_mlp(emb[c], params["mlp_q"][i][c])
            emb[c] = transformer_block(params["layers"][i][c], q[c], k, v,
                                       emb[c], add_mask, B, n_max, num_heads,
                                       normalize_output=True)

    outs = [fused_mlp(emb[c], params["mlp_out"][c]).reshape(B, n_max, -1)
            for c in range(nc)]
    return jnp.stack(outs, axis=2)          # [B, n_max, nc, out_dim]


# ----------------------------------------------------------------------------
if __name__ == "__main__":
    cfg = dict(
        d_model=128,       # transformer.d_model (lane-dense feature dims)
        num_heads=4,       # transformer.num_heads
        n_blocks=2,        # transformer.n_blocks
        nc=2,              # model.quantizer.nc
        nz=8,              # model.quantizer.nz (total latent; per-channel = 4)
        n_max=8,           # data.max_node_num
        out_dim=128,       # model.quantizer.codebook_size + 1  (127 + 1)
    )
    B = 2
    nzc = cfg["nz"] // cfg["nc"]

    key = jax.random.PRNGKey(0)
    kp, kx = jax.random.split(key)
    params = init_transformer2d(kp, cfg)
    embeddings = jax.random.normal(
        kx, (B, cfg["n_max"], cfg["nc"], nzc), jnp.float32)

    fwd = jax.jit(functools.partial(transformer2d_forward, cfg=cfg))
    out = fwd(params, embeddings)
    jax.block_until_ready(out)

    assert out.shape == (B, cfg["n_max"], cfg["nc"], cfg["out_dim"]), out.shape
    assert bool(jnp.all(jnp.isfinite(out))), "non-finite output"
    print("KERNEL_OK")
</pallas_src>

<mosaic_0001>
module attributes {stable_mosaic.version = 11 : i64} {
  func.func @kernel(%arg0: i32, %arg1: memref<16x12xf32, #tpu.memory_space<vmem>>, %arg2: memref<12x128xbf16, #tpu.memory_space<vmem>>, %arg3: memref<1x128xf32, #tpu.memory_space<vmem>>, %arg4: memref<16x128xf32, #tpu.memory_space<vmem>>) attributes {dimension_semantics = [#tpu.dimension_semantics<parallel>], iteration_bounds = array<i64: 1>, scalar_prefetch = 0 : i64, scratch_operands = 0 : i64, tpu.core_type = #tpu.core_type<tc>, window_params = [{transform_indices = @transform_0, window_bounds = array<i64: 16, 12>}, {pipeline_mode = #tpu.pipeline_mode<synchronous>, transform_indices = @transform_1, window_bounds = array<i64: 12, 128>}, {pipeline_mode = #tpu.pipeline_mode<synchronous>, transform_indices = @transform_2, window_bounds = array<i64: 1, 128>}, {transform_indices = @transform_3, window_bounds = array<i64: 16, 128>}]} {
    %c0 = arith.constant 0 : index
    %c0_0 = arith.constant 0 : index
    %0 = vector.load %arg1[%c0, %c0_0] : memref<16x12xf32, #tpu.memory_space<vmem>>, vector<16x12xf32>
    %c0_1 = arith.constant 0 : index
    %c0_2 = arith.constant 0 : index
    %1 = vector.load %arg2[%c0_1, %c0_2] : memref<12x128xbf16, #tpu.memory_space<vmem>>, vector<12x128xbf16>
    %c0_3 = arith.constant 0 : index
    %c0_4 = arith.constant 0 : index
    %2 = vector.load %arg3[%c0_3, %c0_4] : memref<1x128xf32, #tpu.memory_space<vmem>>, vector<1x128xf32>
    %3 = arith.truncf %0 : vector<16x12xf32> to vector<16x12xbf16>
    %cst = arith.constant dense<0.000000e+00> : vector<16x128xf32>
    %4 = tpu.matmul %3, %1, %cst {dimension_numbers = #tpu.dot_dimension_numbers<[1], [0], [0], [1], [0, 0, 1, 1], [], []>} : vector<16x12xbf16>, vector<12x128xbf16>, vector<16x128xf32> -> vector<16x128xf32>
    %5 = vector.broadcast %2 : vector<1x128xf32> to vector<16x128xf32>
    %6 = arith.addf %4, %5 : vector<16x128xf32>
    %c0_5 = arith.constant 0 : index
    %c0_6 = arith.constant 0 : index
    %7 = vector.load %arg4[%c0_5, %c0_6] : memref<16x128xf32, #tpu.memory_space<vmem>>, vector<16x128xf32>
    tpu.vector_store %arg4[%c0_5, %c0_6], %6 {strides = array<i32>} : memref<16x128xf32, #tpu.memory_space<vmem>>, vector<16x128xf32>,
    return
  }
  func.func @transform_0(%arg0: i32) -> (i32, i32) {
    %c0_i32 = arith.constant 0 : i32
    %c0_i32_0 = arith.constant 0 : i32
    return %arg0, %c0_i32 : i32, i32
  }
  func.func @transform_1(%arg0: i32) -> (i32, i32) {
    %c0_i32 = arith.constant 0 : i32
    %c0_i32_0 = arith.constant 0 : i32
    %c0_i32_1 = arith.constant 0 : i32
    return %c0_i32, %c0_i32_0 : i32, i32
  }
  func.func @transform_2(%arg0: i32) -> (i32, i32) {
    %c0_i32 = arith.constant 0 : i32
    %c0_i32_0 = arith.constant 0 : i32
    %c0_i32_1 = arith.constant 0 : i32
    return %c0_i32, %c0_i32_0 : i32, i32
  }
  func.func @transform_3(%arg0: i32) -> (i32, i32) {
    %c0_i32 = arith.constant 0 : i32
    %c0_i32_0 = arith.constant 0 : i32
    return %arg0, %c0_i32 : i32, i32
  }
}

module attributes {stable_mosaic.version = 11 : i64} {
  func.func @kernel(%arg0: i32, %arg1: memref<16x128xf32, #tpu.memory_space<vmem>>, %arg2: memref<128x128xbf16, #tpu.memory_space<vmem>>, %arg3: memref<1x128xf32, #tpu.memory_space<vmem>>, %arg4: memref<16x128xf32, #tpu.memory_space<vmem>>) attributes {dimension_semantics = [#tpu.dimension_semantics<parallel>], iteration_bounds = array<i64: 1>, scalar_prefetch = 0 : i64, scratch_operands = 0 : i64, tpu.core_type = #tpu.core_type<tc>, window_params = [{transform_indices = @transform_0, window_bounds = array<i64: 16, 128>}, {pipeline_mode = #tpu.pipeline_mode<synchronous>, transform_indices = @transform_1, window_bounds = array<i64: 128, 128>}, {pipeline_mode = #tpu.pipeline_mode<synchronous>, transform_indices = @transform_2, window_bounds = array<i64: 1, 128>}, {transform_indices = @transform_3, window_bounds = array<i64: 16, 128>}]} {
    %c0 = arith.constant 0 : index
    %c0_0 = arith.constant 0 : index
    %0 = vector.load %arg1[%c0, %c0_0] : memref<16x128xf32, #tpu.memory_space<vmem>>, vector<16x128xf32>
    %c0_1 = arith.constant 0 : index
    %c0_2 = arith.constant 0 : index
    %1 = vector.load %arg2[%c0_1, %c0_2] : memref<128x128xbf16, #tpu.memory_space<vmem>>, vector<128x128xbf16>
    %c0_3 = arith.constant 0 : index
    %c0_4 = arith.constant 0 : index
    %2 = vector.load %arg3[%c0_3, %c0_4] : memref<1x128xf32, #tpu.memory_space<vmem>>, vector<1x128xf32>
    %3 = arith.truncf %0 : vector<16x128xf32> to vector<16x128xbf16>
    %cst = arith.constant dense<0.000000e+00> : vector<16x128xf32>
    %4 = tpu.matmul %3, %1, %cst {dimension_numbers = #tpu.dot_dimension_numbers<[1], [0], [0], [1], [0, 0, 1, 1], [], []>} : vector<16x128xbf16>, vector<128x128xbf16>, vector<16x128xf32> -> vector<16x128xf32>
    %5 = vector.broadcast %2 : vector<1x128xf32> to vector<16x128xf32>
    %6 = arith.addf %4, %5 : vector<16x128xf32>
    %c0_5 = arith.constant 0 : index
    %c0_6 = arith.constant 0 : index
    %7 = vector.load %arg4[%c0_5, %c0_6] : memref<16x128xf32, #tpu.memory_space<vmem>>, vector<16x128xf32>
    tpu.vector_store %arg4[%c0_5, %c0_6], %6 {strides = array<i32>} : memref<16x128xf32, #tpu.memory_space<vmem>>, vector<16x128xf32>,
    return
  }
  func.func @transform_0(%arg0: i32) -> (i32, i32) {
    %c0_i32 = arith.constant 0 : i32
    %c0_i32_0 = arith.constant 0 : i32
    return %arg0, %c0_i32 : i32, i32
  }
  func.func @transform_1(%arg0: i32) -> (i32, i32) {
    %c0_i32 = arith.constant 0 : i32
    %c0_i32_0 = arith.constant 0 : i32
    %c0_i32_1 = arith.constant 0 : i32
    return %c0_i32, %c0_i32_0 : i32, i32
  }
  func.func @transform_2(%arg0: i32) -> (i32, i32) {
    %c0_i32 = arith.constant 0 : i32
    %c0_i32_0 = arith.constant 0 : i32
    %c0_i32_1 = arith.constant 0 : i32
    return %c0_i32, %c0_i32_0 : i32, i32
  }
  func.func @transform_3(%arg0: i32) -> (i32, i32) {
    %c0_i32 = arith.constant 0 : i32
    %c0_i32_0 = arith.constant 0 : i32
    return %arg0, %c0_i32 : i32, i32
  }
}

module attributes {stable_mosaic.version = 11 : i64} {
  func.func @kernel(%arg0: i32, %arg1: memref<16x128xf32, #tpu.memory_space<vmem>>, %arg2: memref<128x256xbf16, #tpu.memory_space<vmem>>, %arg3: memref<1x256xf32, #tpu.memory_space<vmem>>, %arg4: memref<256x256xbf16, #tpu.memory_space<vmem>>, %arg5: memref<1x256xf32, #tpu.memory_space<vmem>>, %arg6: memref<256x256xbf16, #tpu.memory_space<vmem>>, %arg7: memref<1x256xf32, #tpu.memory_space<vmem>>, %arg8: memref<256x256xbf16, #tpu.memory_space<vmem>>, %arg9: memref<1x256xf32, #tpu.memory_space<vmem>>, %arg10: memref<256x128xbf16, #tpu.memory_space<vmem>>, %arg11: memref<1x128xf32, #tpu.memory_space<vmem>>, %arg12: memref<16x128xf32, #tpu.memory_space<vmem>>) attributes {dimension_semantics = [#tpu.dimension_semantics<parallel>], iteration_bounds = array<i64: 1>, scalar_prefetch = 0 : i64, scratch_operands = 0 : i64, tpu.core_type = #tpu.core_type<tc>, window_params = [{transform_indices = @transform_0, window_bounds = array<i64: 16, 128>}, {pipeline_mode = #tpu.pipeline_mode<synchronous>, transform_indices = @transform_1, window_bounds = array<i64: 128, 256>}, {pipeline_mode = #tpu.pipeline_mode<synchronous>, transform_indices = @transform_2, window_bounds = array<i64: 1, 256>}, {pipeline_mode = #tpu.pipeline_mode<synchronous>, transform_indices = @transform_3, window_bounds = array<i64: 256, 256>}, {pipeline_mode = #tpu.pipeline_mode<synchronous>, transform_indices = @transform_4, window_bounds = array<i64: 1, 256>}, {pipeline_mode = #tpu.pipeline_mode<synchronous>, transform_indices = @transform_5, window_bounds = array<i64: 256, 256>}, {pipeline_mode = #tpu.pipeline_mode<synchronous>, transform_indices = @transform_6, window_bounds = array<i64: 1, 256>}, {pipeline_mode = #tpu.pipeline_mode<synchronous>, transform_indices = @transform_7, window_bounds = array<i64: 256, 256>}, {pipeline_mode = #tpu.pipeline_mode<synchronous>, transform_indices = @transform_8, window_bounds = array<i64: 1, 256>}, {pipeline_mode = #tpu.pipeline_mode<synchronous>, transform_indices = @transform_9, window_bounds = array<i64: 256, 128>}, {pipeline_mode = #tpu.pipeline_mode<synchronous>, transform_indices = @transform_10, window_bounds = array<i64: 1, 128>}, {transform_indices = @transform_11, window_bounds = array<i64: 16, 128>}]} {
    %c0 = arith.constant 0 : index
    %c0_0 = arith.constant 0 : index
    %0 = vector.load %arg1[%c0, %c0_0] : memref<16x128xf32, #tpu.memory_space<vmem>>, vector<16x128xf32>
    %c0_1 = arith.constant 0 : index
    %c0_2 = arith.constant 0 : index
    %1 = vector.load %arg2[%c0_1, %c0_2] : memref<128x256xbf16, #tpu.memory_space<vmem>>, vector<128x256xbf16>
    %c0_3 = arith.constant 0 : index
    %c0_4 = arith.constant 0 : index
    %2 = vector.load %arg3[%c0_3, %c0_4] : memref<1x256xf32, #tpu.memory_space<vmem>>, vector<1x256xf32>
    %3 = arith.truncf %0 : vector<16x128xf32> to vector<16x128xbf16>
    %cst = arith.constant dense<0.000000e+00> : vector<16x256xf32>
    %4 = tpu.matmul %3, %1, %cst {dimension_numbers = #tpu.dot_dimension_numbers<[1], [0], [0], [1], [0, 0, 1, 1], [], []>} : vector<16x128xbf16>, vector<128x256xbf16>, vector<16x256xf32> -> vector<16x256xf32>
    %5 = vector.broadcast %2 : vector<1x256xf32> to vector<16x256xf32>
    %6 = arith.addf %4, %5 : vector<16x256xf32>
    %cst_5 = arith.constant 0.000000e+00 : f32
    %7 = vector.broadcast %cst_5 : f32 to vector<16x256xf32>
    %8 = arith.maximumf %6, %7 : vector<16x256xf32>
    %c0_6 = arith.constant 0 : index
    %c0_7 = arith.constant 0 : index
    %9 = vector.load %arg4[%c0_6, %c0_7] : memref<256x256xbf16, #tpu.memory_space<vmem>>, vector<256x256xbf16>
    %c0_8 = arith.constant 0 : index
    %c0_9 = arith.constant 0 : index
    %10 = vector.load %arg5[%c0_8, %c0_9] : memref<1x256xf32, #tpu.memory_space<vmem>>, vector<1x256xf32>
    %11 = arith.truncf %8 : vector<16x256xf32> to vector<16x256xbf16>
    %cst_10 = arith.constant dense<0.000000e+00> : vector<16x256xf32>
    %12 = tpu.matmul %11, %9, %cst_10 {dimension_numbers = #tpu.dot_dimension_numbers<[1], [0], [0], [1], [0, 0, 1, 1], [], []>} : vector<16x256xbf16>, vector<256x256xbf16>, vector<16x256xf32> -> vector<16x256xf32>
    %13 = vector.broadcast %10 : vector<1x256xf32> to vector<16x256xf32>
    %14 = arith.addf %12, %13 : vector<16x256xf32>
    %cst_11 = arith.constant 0.000000e+00 : f32
    %15 = vector.broadcast %cst_11 : f32 to vector<16x256xf32>
    %16 = arith.maximumf %14, %15 : vector<16x256xf32>
    %c0_12 = arith.constant 0 : index
    %c0_13 = arith.constant 0 : index
    %17 = vector.load %arg6[%c0_12, %c0_13] : memref<256x256xbf16, #tpu.memory_space<vmem>>, vector<256x256xbf16>
    %c0_14 = arith.constant 0 : index
    %c0_15 = arith.constant 0 : index
    %18 = vector.load %arg7[%c0_14, %c0_15] : memref<1x256xf32, #tpu.memory_space<vmem>>, vector<1x256xf32>
    %19 = arith.truncf %16 : vector<16x256xf32> to vector<16x256xbf16>
    %cst_16 = arith.constant dense<0.000000e+00> : vector<16x256xf32>
    %20 = tpu.matmul %19, %17, %cst_16 {dimension_numbers = #tpu.dot_dimension_numbers<[1], [0], [0], [1], [0, 0, 1, 1], [], []>} : vector<16x256xbf16>, vector<256x256xbf16>, vector<16x256xf32> -> vector<16x256xf32>
    %21 = vector.broadcast %18 : vector<1x256xf32> to vector<16x256xf32>
    %22 = arith.addf %20, %21 : vector<16x256xf32>
    %cst_17 = arith.constant 0.000000e+00 : f32
    %23 = vector.broadcast %cst_17 : f32 to vector<16x256xf32>
    %24 = arith.maximumf %22, %23 : vector<16x256xf32>
    %c0_18 = arith.constant 0 : index
    %c0_19 = arith.constant 0 : index
    %25 = vector.load %arg8[%c0_18, %c0_19] : memref<256x256xbf16, #tpu.memory_space<vmem>>, vector<256x256xbf16>
    %c0_20 = arith.constant 0 : index
    %c0_21 = arith.constant 0 : index
    %26 = vector.load %arg9[%c0_20, %c0_21] : memref<1x256xf32, #tpu.memory_space<vmem>>, vector<1x256xf32>
    %27 = arith.truncf %24 : vector<16x256xf32> to vector<16x256xbf16>
    %cst_22 = arith.constant dense<0.000000e+00> : vector<16x256xf32>
    %28 = tpu.matmul %27, %25, %cst_22 {dimension_numbers = #tpu.dot_dimension_numbers<[1], [0], [0], [1], [0, 0, 1, 1], [], []>} : vector<16x256xbf16>, vector<256x256xbf16>, vector<16x256xf32> -> vector<16x256xf32>
    %29 = vector.broadcast %26 : vector<1x256xf32> to vector<16x256xf32>
    %30 = arith.addf %28, %29 : vector<16x256xf32>
    %cst_23 = arith.constant 0.000000e+00 : f32
    %31 = vector.broadcast %cst_23 : f32 to vector<16x256xf32>
    %32 = arith.maximumf %30, %31 : vector<16x256xf32>
    %c0_24 = arith.constant 0 : index
    %c0_25 = arith.constant 0 : index
    %33 = vector.load %arg10[%c0_24, %c0_25] : memref<256x128xbf16, #tpu.memory_space<vmem>>, vector<256x128xbf16>
    %c0_26 = arith.constant 0 : index
    %c0_27 = arith.constant 0 : index
    %34 = vector.load %arg11[%c0_26, %c0_27] : memref<1x128xf32, #tpu.memory_space<vmem>>, vector<1x128xf32>
    %35 = arith.truncf %32 : vector<16x256xf32> to vector<16x256xbf16>
    %cst_28 = arith.constant dense<0.000000e+00> : vector<16x128xf32>
    %36 = tpu.matmul %35, %33, %cst_28 {dimension_numbers = #tpu.dot_dimension_numbers<[1], [0], [0], [1], [0, 0, 1, 1], [], []>} : vector<16x256xbf16>, vector<256x128xbf16>, vector<16x128xf32> -> vector<16x128xf32>
    %37 = vector.broadcast %34 : vector<1x128xf32> to vector<16x128xf32>
    %38 = arith.addf %36, %37 : vector<16x128xf32>
    %c0_29 = arith.constant 0 : index
    %c0_30 = arith.constant 0 : index
    %39 = vector.load %arg12[%c0_29, %c0_30] : memref<16x128xf32, #tpu.memory_space<vmem>>, vector<16x128xf32>
    tpu.vector_store %arg12[%c0_29, %c0_30], %38 {strides = array<i32>} : memref<16x128xf32, #tpu.memory_space<vmem>>, vector<16x128xf32>,
    return
  }
  func.func @transform_0(%arg0: i32) -> (i32, i32) {
    %c0_i32 = arith.constant 0 : i32
    %c0_i32_0 = arith.constant 0 : i32
    return %arg0, %c0_i32 : i32, i32
  }
  func.func @transform_1(%arg0: i32) -> (i32, i32) {
    %c0_i32 = arith.constant 0 : i32
    %c0_i32_0 = arith.constant 0 : i32
    %c0_i32_1 = arith.constant 0 : i32
    return %c0_i32, %c0_i32_0 : i32, i32
  }
  func.func @transform_2(%arg0: i32) -> (i32, i32) {
    %c0_i32 = arith.constant 0 : i32
    %c0_i32_0 = arith.constant 0 : i32
    %c0_i32_1 = arith.constant 0 : i32
    return %c0_i32, %c0_i32_0 : i32, i32
  }
  func.func @transform_3(%arg0: i32) -> (i32, i32) {
    %c0_i32 = arith.constant 0 : i32
    %c0_i32_0 = arith.constant 0 : i32
    %c0_i32_1 = arith.constant 0 : i32
    return %c0_i32, %c0_i32_0 : i32, i32
  }
  func.func @transform_4(%arg0: i32) -> (i32, i32) {
    %c0_i32 = arith.constant 0 : i32
    %c0_i32_0 = arith.constant 0 : i32
    %c0_i32_1 = arith.constant 0 : i32
    return %c0_i32, %c0_i32_0 : i32, i32
  }
  func.func @transform_5(%arg0: i32) -> (i32, i32) {
    %c0_i32 = arith.constant 0 : i32
    %c0_i32_0 = arith.constant 0 : i32
    %c0_i32_1 = arith.constant 0 : i32
    return %c0_i32, %c0_i32_0 : i32, i32
  }
  func.func @transform_6(%arg0: i32) -> (i32, i32) {
    %c0_i32 = arith.constant 0 : i32
    %c0_i32_0 = arith.constant 0 : i32
    %c0_i32_1 = arith.constant 0 : i32
    return %c0_i32, %c0_i32_0 : i32, i32
  }
  func.func @transform_7(%arg0: i32) -> (i32, i32) {
    %c0_i32 = arith.constant 0 : i32
    %c0_i32_0 = arith.constant 0 : i32
    %c0_i32_1 = arith.constant 0 : i32
    return %c0_i32, %c0_i32_0 : i32, i32
  }
  func.func @transform_8(%arg0: i32) -> (i32, i32) {
    %c0_i32 = arith.constant 0 : i32
    %c0_i32_0 = arith.constant 0 : i32
    %c0_i32_1 = arith.constant 0 : i32
    return %c0_i32, %c0_i32_0 : i32, i32
  }
  func.func @transform_9(%arg0: i32) -> (i32, i32) {
    %c0_i32 = arith.constant 0 : i32
    %c0_i32_0 = arith.constant 0 : i32
    %c0_i32_1 = arith.constant 0 : i32
    return %c0_i32, %c0_i32_0 : i32, i32
  }
  func.func @transform_10(%arg0: i32) -> (i32, i32) {
    %c0_i32 = arith.constant 0 : i32
    %c0_i32_0 = arith.constant 0 : i32
    %c0_i32_1 = arith.constant 0 : i32
    return %c0_i32, %c0_i32_0 : i32, i32
  }
  func.func @transform_11(%arg0: i32) -> (i32, i32) {
    %c0_i32 = arith.constant 0 : i32
    %c0_i32_0 = arith.constant 0 : i32
    return %arg0, %c0_i32 : i32, i32
  }
}

module attributes {stable_mosaic.version = 11 : i64} {
  func.func @kernel(%arg0: i32, %arg1: memref<16x128xf32, #tpu.memory_space<vmem>>, %arg2: memref<128x256xbf16, #tpu.memory_space<vmem>>, %arg3: memref<1x256xf32, #tpu.memory_space<vmem>>, %arg4: memref<256x256xbf16, #tpu.memory_space<vmem>>, %arg5: memref<1x256xf32, #tpu.memory_space<vmem>>, %arg6: memref<256x256xbf16, #tpu.memory_space<vmem>>, %arg7: memref<1x256xf32, #tpu.memory_space<vmem>>, %arg8: memref<256x256xbf16, #tpu.memory_space<vmem>>, %arg9: memref<1x256xf32, #tpu.memory_space<vmem>>, %arg10: memref<256x128xbf16, #tpu.memory_space<vmem>>, %arg11: memref<1x128xf32, #tpu.memory_space<vmem>>, %arg12: memref<16x128xf32, #tpu.memory_space<vmem>>) attributes {dimension_semantics = [#tpu.dimension_semantics<parallel>], iteration_bounds = array<i64: 1>, scalar_prefetch = 0 : i64, scratch_operands = 0 : i64, tpu.core_type = #tpu.core_type<tc>, window_params = [{transform_indices = @transform_0, window_bounds = array<i64: 16, 128>}, {pipeline_mode = #tpu.pipeline_mode<synchronous>, transform_indices = @transform_1, window_bounds = array<i64: 128, 256>}, {pipeline_mode = #tpu.pipeline_mode<synchronous>, transform_indices = @transform_2, window_bounds = array<i64: 1, 256>}, {pipeline_mode = #tpu.pipeline_mode<synchronous>, transform_indices = @transform_3, window_bounds = array<i64: 256, 256>}, {pipeline_mode = #tpu.pipeline_mode<synchronous>, transform_indices = @transform_4, window_bounds = array<i64: 1, 256>}, {pipeline_mode = #tpu.pipeline_mode<synchronous>, transform_indices = @transform_5, window_bounds = array<i64: 256, 256>}, {pipeline_mode = #tpu.pipeline_mode<synchronous>, transform_indices = @transform_6, window_bounds = array<i64: 1, 256>}, {pipeline_mode = #tpu.pipeline_mode<synchronous>, transform_indices = @transform_7, window_bounds = array<i64: 256, 256>}, {pipeline_mode = #tpu.pipeline_mode<synchronous>, transform_indices = @transform_8, window_bounds = array<i64: 1, 256>}, {pipeline_mode = #tpu.pipeline_mode<synchronous>, transform_indices = @transform_9, window_bounds = array<i64: 256, 128>}, {pipeline_mode = #tpu.pipeline_mode<synchronous>, transform_indices = @transform_10, window_bounds = array<i64: 1, 128>}, {transform_indices = @transform_11, window_bounds = array<i64: 16, 128>}]} {
    %c0 = arith.constant 0 : index
    %c0_0 = arith.constant 0 : index
    %0 = vector.load %arg1[%c0, %c0_0] : memref<16x128xf32, #tpu.memory_space<vmem>>, vector<16x128xf32>
    %c0_1 = arith.constant 0 : index
    %c0_2 = arith.constant 0 : index
    %1 = vector.load %arg2[%c0_1, %c0_2] : memref<128x256xbf16, #tpu.memory_space<vmem>>, vector<128x256xbf16>
    %c0_3 = arith.constant 0 : index
    %c0_4 = arith.constant 0 : index
    %2 = vector.load %arg3[%c0_3, %c0_4] : memref<1x256xf32, #tpu.memory_space<vmem>>, vector<1x256xf32>
    %3 = arith.truncf %0 : vector<16x128xf32> to vector<16x128xbf16>
    %cst = arith.constant dense<0.000000e+00> : vector<16x256xf32>
    %4 = tpu.matmul %3, %1, %cst {dimension_numbers = #tpu.dot_dimension_numbers<[1], [0], [0], [1], [0, 0, 1, 1], [], []>} : vector<16x128xbf16>, vector<128x256xbf16>, vector<16x256xf32> -> vector<16x256xf32>
    %5 = vector.broadcast %2 : vector<1x256xf32> to vector<16x256xf32>
    %6 = arith.addf %4, %5 : vector<16x256xf32>
    %cst_5 = arith.constant 0.000000e+00 : f32
    %7 = vector.broadcast %cst_5 : f32 to vector<16x256xf32>
    %8 = arith.maximumf %6, %7 : vector<16x256xf32>
    %c0_6 = arith.constant 0 : index
    %c0_7 = arith.constant 0 : index
    %9 = vector.load %arg4[%c0_6, %c0_7] : memref<256x256xbf16, #tpu.memory_space<vmem>>, vector<256x256xbf16>
    %c0_8 = arith.constant 0 : index
    %c0_9 = arith.constant 0 : index
    %10 = vector.load %arg5[%c0_8, %c0_9] : memref<1x256xf32, #tpu.memory_space<vmem>>, vector<1x256xf32>
    %11 = arith.truncf %8 : vector<16x256xf32> to vector<16x256xbf16>
    %cst_10 = arith.constant dense<0.000000e+00> : vector<16x256xf32>
    %12 = tpu.matmul %11, %9, %cst_10 {dimension_numbers = #tpu.dot_dimension_numbers<[1], [0], [0], [1], [0, 0, 1, 1], [], []>} : vector<16x256xbf16>, vector<256x256xbf16>, vector<16x256xf32> -> vector<16x256xf32>
    %13 = vector.broadcast %10 : vector<1x256xf32> to vector<16x256xf32>
    %14 = arith.addf %12, %13 : vector<16x256xf32>
    %cst_11 = arith.constant 0.000000e+00 : f32
    %15 = vector.broadcast %cst_11 : f32 to vector<16x256xf32>
    %16 = arith.maximumf %14, %15 : vector<16x256xf32>
    %c0_12 = arith.constant 0 : index
    %c0_13 = arith.constant 0 : index
    %17 = vector.load %arg6[%c0_12, %c0_13] : memref<256x256xbf16, #tpu.memory_space<vmem>>, vector<256x256xbf16>
    %c0_14 = arith.constant 0 : index
    %c0_15 = arith.constant 0 : index
    %18 = vector.load %arg7[%c0_14, %c0_15] : memref<1x256xf32, #tpu.memory_space<vmem>>, vector<1x256xf32>
    %19 = arith.truncf %16 : vector<16x256xf32> to vector<16x256xbf16>
    %cst_16 = arith.constant dense<0.000000e+00> : vector<16x256xf32>
    %20 = tpu.matmul %19, %17, %cst_16 {dimension_numbers = #tpu.dot_dimension_numbers<[1], [0], [0], [1], [0, 0, 1, 1], [], []>} : vector<16x256xbf16>, vector<256x256xbf16>, vector<16x256xf32> -> vector<16x256xf32>
    %21 = vector.broadcast %18 : vector<1x256xf32> to vector<16x256xf32>
    %22 = arith.addf %20, %21 : vector<16x256xf32>
    %cst_17 = arith.constant 0.000000e+00 : f32
    %23 = vector.broadcast %cst_17 : f32 to vector<16x256xf32>
    %24 = arith.maximumf %22, %23 : vector<16x256xf32>
    %c0_18 = arith.constant 0 : index
    %c0_19 = arith.constant 0 : index
    %25 = vector.load %arg8[%c0_18, %c0_19] : memref<256x256xbf16, #tpu.memory_space<vmem>>, vector<256x256xbf16>
    %c0_20 = arith.constant 0 : index
    %c0_21 = arith.constant 0 : index
    %26 = vector.load %arg9[%c0_20, %c0_21] : memref<1x256xf32, #tpu.memory_space<vmem>>, vector<1x256xf32>
    %27 = arith.truncf %24 : vector<16x256xf32> to vector<16x256xbf16>
    %cst_22 = arith.constant dense<0.000000e+00> : vector<16x256xf32>
    %28 = tpu.matmul %27, %25, %cst_22 {dimension_numbers = #tpu.dot_dimension_numbers<[1], [0], [0], [1], [0, 0, 1, 1], [], []>} : vector<16x256xbf16>, vector<256x256xbf16>, vector<16x256xf32> -> vector<16x256xf32>
    %29 = vector.broadcast %26 : vector<1x256xf32> to vector<16x256xf32>
    %30 = arith.addf %28, %29 : vector<16x256xf32>
    %cst_23 = arith.constant 0.000000e+00 : f32
    %31 = vector.broadcast %cst_23 : f32 to vector<16x256xf32>
    %32 = arith.maximumf %30, %31 : vector<16x256xf32>
    %c0_24 = arith.constant 0 : index
    %c0_25 = arith.constant 0 : index
    %33 = vector.load %arg10[%c0_24, %c0_25] : memref<256x128xbf16, #tpu.memory_space<vmem>>, vector<256x128xbf16>
    %c0_26 = arith.constant 0 : index
    %c0_27 = arith.constant 0 : index
    %34 = vector.load %arg11[%c0_26, %c0_27] : memref<1x128xf32, #tpu.memory_space<vmem>>, vector<1x128xf32>
    %35 = arith.truncf %32 : vector<16x256xf32> to vector<16x256xbf16>
    %cst_28 = arith.constant dense<0.000000e+00> : vector<16x128xf32>
    %36 = tpu.matmul %35, %33, %cst_28 {dimension_numbers = #tpu.dot_dimension_numbers<[1], [0], [0], [1], [0, 0, 1, 1], [], []>} : vector<16x256xbf16>, vector<256x128xbf16>, vector<16x128xf32> -> vector<16x128xf32>
    %37 = vector.broadcast %34 : vector<1x128xf32> to vector<16x128xf32>
    %38 = arith.addf %36, %37 : vector<16x128xf32>
    %c0_29 = arith.constant 0 : index
    %c0_30 = arith.constant 0 : index
    %39 = vector.load %arg12[%c0_29, %c0_30] : memref<16x128xf32, #tpu.memory_space<vmem>>, vector<16x128xf32>
    tpu.vector_store %arg12[%c0_29, %c0_30], %38 {strides = array<i32>} : memref<16x128xf32, #tpu.memory_space<vmem>>, vector<16x128xf32>,
    return
  }
  func.func @transform_0(%arg0: i32) -> (i32, i32) {
    %c0_i32 = arith.constant 0 : i32
    %c0_i32_0 = arith.constant 0 : i32
    return %arg0, %c0_i32 : i32, i32
  }
  func.func @transform_1(%arg0: i32) -> (i32, i32) {
    %c0_i32 = arith.constant 0 : i32
    %c0_i32_0 = arith.constant 0 : i32
    %c0_i32_1 = arith.constant 0 : i32
    return %c0_i32, %c0_i32_0 : i32, i32
  }
  func.func @transform_2(%arg0: i32) -> (i32, i32) {
    %c0_i32 = arith.constant 0 : i32
    %c0_i32_0 = arith.constant 0 : i32
    %c0_i32_1 = arith.constant 0 : i32
    return %c0_i32, %c0_i32_0 : i32, i32
  }
  func.func @transform_3(%arg0: i32) -> (i32, i32) {
    %c0_i32 = arith.constant 0 : i32
    %c0_i32_0 = arith.constant 0 : i32
    %c0_i32_1 = arith.constant 0 : i32
    return %c0_i32, %c0_i32_0 : i32, i32
  }
  func.func @transform_4(%arg0: i32) -> (i32, i32) {
    %c0_i32 = arith.constant 0 : i32
    %c0_i32_0 = arith.constant 0 : i32
    %c0_i32_1 = arith.constant 0 : i32
    return %c0_i32, %c0_i32_0 : i32, i32
  }
  func.func @transform_5(%arg0: i32) -> (i32, i32) {
    %c0_i32 = arith.constant 0 : i32
    %c0_i32_0 = arith.constant 0 : i32
    %c0_i32_1 = arith.constant 0 : i32
    return %c0_i32, %c0_i32_0 : i32, i32
  }
  func.func @transform_6(%arg0: i32) -> (i32, i32) {
    %c0_i32 = arith.constant 0 : i32
    %c0_i32_0 = arith.constant 0 : i32
    %c0_i32_1 = arith.constant 0 : i32
    return %c0_i32, %c0_i32_0 : i32, i32
  }
  func.func @transform_7(%arg0: i32) -> (i32, i32) {
    %c0_i32 = arith.constant 0 : i32
    %c0_i32_0 = arith.constant 0 : i32
    %c0_i32_1 = arith.constant 0 : i32
    return %c0_i32, %c0_i32_0 : i32, i32
  }
  func.func @transform_8(%arg0: i32) -> (i32, i32) {
    %c0_i32 = arith.constant 0 : i32
    %c0_i32_0 = arith.constant 0 : i32
    %c0_i32_1 = arith.constant 0 : i32
    return %c0_i32, %c0_i32_0 : i32, i32
  }
  func.func @transform_9(%arg0: i32) -> (i32, i32) {
    %c0_i32 = arith.constant 0 : i32
    %c0_i32_0 = arith.constant 0 : i32
    %c0_i32_1 = arith.constant 0 : i32
    return %c0_i32, %c0_i32_0 : i32, i32
  }
  func.func @transform_10(%arg0: i32) -> (i32, i32) {
    %c0_i32 = arith.constant 0 : i32
    %c0_i32_0 = arith.constant 0 : i32
    %c0_i32_1 = arith.constant 0 : i32
    return %c0_i32, %c0_i32_0 : i32, i32
  }
  func.func @transform_11(%arg0: i32) -> (i32, i32) {
    %c0_i32 = arith.constant 0 : i32
    %c0_i32_0 = arith.constant 0 : i32
    return %arg0, %c0_i32 : i32, i32
  }
}

module attributes {stable_mosaic.version = 11 : i64} {
  func.func @kernel(%arg0: i32, %arg1: memref<16x8xf32, #tpu.memory_space<vmem>>, %arg2: memref<8x128xbf16, #tpu.memory_space<vmem>>, %arg3: memref<1x128xf32, #tpu.memory_space<vmem>>, %arg4: memref<16x128xf32, #tpu.memory_space<vmem>>) attributes {dimension_semantics = [#tpu.dimension_semantics<parallel>], iteration_bounds = array<i64: 1>, scalar_prefetch = 0 : i64, scratch_operands = 0 : i64, tpu.core_type = #tpu.core_type<tc>, window_params = [{transform_indices = @transform_0, window_bounds = array<i64: 16, 8>}, {pipeline_mode = #tpu.pipeline_mode<synchronous>, transform_indices = @transform_1, window_bounds = array<i64: 8, 128>}, {pipeline_mode = #tpu.pipeline_mode<synchronous>, transform_indices = @transform_2, window_bounds = array<i64: 1, 128>}, {transform_indices = @transform_3, window_bounds = array<i64: 16, 128>}]} {
    %c0 = arith.constant 0 : index
    %c0_0 = arith.constant 0 : index
    %0 = vector.load %arg1[%c0, %c0_0] : memref<16x8xf32, #tpu.memory_space<vmem>>, vector<16x8xf32>
    %c0_1 = arith.constant 0 : index
    %c0_2 = arith.constant 0 : index
    %1 = vector.load %arg2[%c0_1, %c0_2] : memref<8x128xbf16, #tpu.memory_space<vmem>>, vector<8x128xbf16>
    %c0_3 = arith.constant 0 : index
    %c0_4 = arith.constant 0 : index
    %2 = vector.load %arg3[%c0_3, %c0_4] : memref<1x128xf32, #tpu.memory_space<vmem>>, vector<1x128xf32>
    %3 = arith.truncf %0 : vector<16x8xf32> to vector<16x8xbf16>
    %cst = arith.constant dense<0.000000e+00> : vector<16x128xf32>
    %4 = tpu.matmul %3, %1, %cst {dimension_numbers = #tpu.dot_dimension_numbers<[1], [0], [0], [1], [0, 0, 1, 1], [], []>} : vector<16x8xbf16>, vector<8x128xbf16>, vector<16x128xf32> -> vector<16x128xf32>
    %5 = vector.broadcast %2 : vector<1x128xf32> to vector<16x128xf32>
    %6 = arith.addf %4, %5 : vector<16x128xf32>
    %c0_5 = arith.constant 0 : index
    %c0_6 = arith.constant 0 : index
    %7 = vector.load %arg4[%c0_5, %c0_6] : memref<16x128xf32, #tpu.memory_space<vmem>>, vector<16x128xf32>
    tpu.vector_store %arg4[%c0_5, %c0_6], %6 {strides = array<i32>} : memref<16x128xf32, #tpu.memory_space<vmem>>, vector<16x128xf32>,
    return
  }
  func.func @transform_0(%arg0: i32) -> (i32, i32) {
    %c0_i32 = arith.constant 0 : i32
    %c0_i32_0 = arith.constant 0 : i32
    return %arg0, %c0_i32 : i32, i32
  }
  func.func @transform_1(%arg0: i32) -> (i32, i32) {
    %c0_i32 = arith.constant 0 : i32
    %c0_i32_0 = arith.constant 0 : i32
    %c0_i32_1 = arith.constant 0 : i32
    return %c0_i32, %c0_i32_0 : i32, i32
  }
  func.func @transform_2(%arg0: i32) -> (i32, i32) {
    %c0_i32 = arith.constant 0 : i32
    %c0_i32_0 = arith.constant 0 : i32
    %c0_i32_1 = arith.constant 0 : i32
    return %c0_i32, %c0_i32_0 : i32, i32
  }
  func.func @transform_3(%arg0: i32) -> (i32, i32) {
    %c0_i32 = arith.constant 0 : i32
    %c0_i32_0 = arith.constant 0 : i32
    return %arg0, %c0_i32 : i32, i32
  }
}

module attributes {stable_mosaic.version = 11 : i64} {
  func.func @_attn_kernel(%arg0: i32, %arg1: memref<1x8x32xf32, #tpu.memory_space<vmem>>, %arg2: memref<1x8x32xf32, #tpu.memory_space<vmem>>, %arg3: memref<1x8x32xf32, #tpu.memory_space<vmem>>, %arg4: memref<8x8xf32, #tpu.memory_space<vmem>>, %arg5: memref<1x8x32xf32, #tpu.memory_space<vmem>>) attributes {dimension_semantics = [#tpu.dimension_semantics<parallel>], iteration_bounds = array<i64: 8>, scalar_prefetch = 0 : i64, scratch_operands = 0 : i64, tpu.core_type = #tpu.core_type<tc>, window_params = [{transform_indices = @transform_0, window_bounds = array<i64: 1, 8, 32>}, {transform_indices = @transform_1, window_bounds = array<i64: 1, 8, 32>}, {transform_indices = @transform_2, window_bounds = array<i64: 1, 8, 32>}, {pipeline_mode = #tpu.pipeline_mode<synchronous>, transform_indices = @transform_3, window_bounds = array<i64: 8, 8>}, {transform_indices = @transform_4, window_bounds = array<i64: 1, 8, 32>}]} {
    %c0 = arith.constant 0 : index
    %c0_0 = arith.constant 0 : index
    %c0_1 = arith.constant 0 : index
    %0 = vector.load %arg1[%c0, %c0_0, %c0_1] : memref<1x8x32xf32, #tpu.memory_space<vmem>>, vector<1x8x32xf32>
    %1 = vector.shape_cast %0 : vector<1x8x32xf32> to vector<8x32xf32>
    %c0_2 = arith.constant 0 : index
    %c0_3 = arith.constant 0 : index
    %c0_4 = arith.constant 0 : index
    %2 = vector.load %arg2[%c0_2, %c0_3, %c0_4] : memref<1x8x32xf32, #tpu.memory_space<vmem>>, vector<1x8x32xf32>
    %3 = vector.shape_cast %2 : vector<1x8x32xf32> to vector<8x32xf32>
    %c0_5 = arith.constant 0 : index
    %c0_6 = arith.constant 0 : index
    %c0_7 = arith.constant 0 : index
    %4 = vector.load %arg3[%c0_5, %c0_6, %c0_7] : memref<1x8x32xf32, #tpu.memory_space<vmem>>, vector<1x8x32xf32>
    %5 = vector.shape_cast %4 : vector<1x8x32xf32> to vector<8x32xf32>
    %cst = arith.constant dense<0.000000e+00> : vector<8x8xf32>
    %6 = tpu.matmul %1, %3, %cst {dimension_numbers = #tpu.dot_dimension_numbers<[1], [1], [0], [0], [0, 0, 1, 0], [], []>} : vector<8x32xf32>, vector<8x32xf32>, vector<8x8xf32> -> vector<8x8xf32>
    %cst_8 = arith.constant 0.176776692 : f32
    %7 = vector.broadcast %cst_8 : f32 to vector<8x8xf32>
    %8 = arith.mulf %6, %7 : vector<8x8xf32>
    %c0_9 = arith.constant 0 : index
    %c0_10 = arith.constant 0 : index
    %9 = vector.load %arg4[%c0_9, %c0_10] : memref<8x8xf32, #tpu.memory_space<vmem>>, vector<8x8xf32>
    %10 = arith.addf %8, %9 : vector<8x8xf32>
    %cst_11 = arith.constant dense<0xFF800000> : vector<8xf32>
    %11 = vector.multi_reduction <maximumf>, %10, %cst_11 [1] : vector<8x8xf32> to vector<8xf32>
    %12 = vector.shape_cast %11 : vector<8xf32> to vector<8x1xf32>
    %13 = vector.broadcast %12 : vector<8x1xf32> to vector<8x8xf32>
    %14 = arith.subf %10, %13 : vector<8x8xf32>
    %15 = math.exp %14 : vector<8x8xf32>
    %cst_12 = arith.constant dense<0.000000e+00> : vector<8xf32>
    %16 = vector.multi_reduction <add>, %15, %cst_12 [1] : vector<8x8xf32> to vector<8xf32>
    %17 = vector.shape_cast %16 : vector<8xf32> to vector<8x1xf32>
    %18 = tpu.reciprocal %17 {approx = true} : vector<8x1xf32> -> vector<8x1xf32>
    %19 = vector.broadcast %18 : vector<8x1xf32> to vector<8x8xf32>
    %20 = arith.mulf %15, %19 : vector<8x8xf32>
    %cst_13 = arith.constant dense<0.000000e+00> : vector<8x32xf32>
    %21 = tpu.matmul %20, %5, %cst_13 {dimension_numbers = #tpu.dot_dimension_numbers<[1], [0], [0], [1], [0, 0, 1, 1], [], []>} : vector<8x8xf32>, vector<8x32xf32>, vector<8x32xf32> -> vector<8x32xf32>
    %c0_14 = arith.constant 0 : index
    %c0_15 = arith.constant 0 : index
    %c0_16 = arith.constant 0 : index
    %22 = vector.load %arg5[%c0_14, %c0_15, %c0_16] : memref<1x8x32xf32, #tpu.memory_space<vmem>>, vector<1x8x32xf32>
    %23 = vector.shape_cast %22 : vector<1x8x32xf32> to vector<8x32xf32>
    %24 = vector.shape_cast %21 : vector<8x32xf32> to vector<1x8x32xf32>
    tpu.vector_store %arg5[%c0_14, %c0_15, %c0_16], %24 {strides = array<i32>} : memref<1x8x32xf32, #tpu.memory_space<vmem>>, vector<1x8x32xf32>,
    return
  }
  func.func @transform_0(%arg0: i32) -> (i32, i32, i32) {
    %c0_i32 = arith.constant 0 : i32
    %c0_i32_0 = arith.constant 0 : i32
    %c0_i32_1 = arith.constant 0 : i32
    return %arg0, %c0_i32, %c0_i32_0 : i32, i32, i32
  }
  func.func @transform_1(%arg0: i32) -> (i32, i32, i32) {
    %c0_i32 = arith.constant 0 : i32
    %c0_i32_0 = arith.constant 0 : i32
    %c0_i32_1 = arith.constant 0 : i32
    return %arg0, %c0_i32, %c0_i32_0 : i32, i32, i32
  }
  func.func @transform_2(%arg0: i32) -> (i32, i32, i32) {
    %c0_i32 = arith.constant 0 : i32
    %c0_i32_0 = arith.constant 0 : i32
    %c0_i32_1 = arith.constant 0 : i32
    return %arg0, %c0_i32, %c0_i32_0 : i32, i32, i32
  }
  func.func @transform_3(%arg0: i32) -> (i32, i32) {
    %c0_i32 = arith.constant 0 : i32
    %c0_i32_0 = arith.constant 0 : i32
    %c0_i32_1 = arith.constant 0 : i32
    return %c0_i32, %c0_i32_0 : i32, i32
  }
  func.func @transform_4(%arg0: i32) -> (i32, i32, i32) {
    %c0_i32 = arith.constant 0 : i32
    %c0_i32_0 = arith.constant 0 : i32
    %c0_i32_1 = arith.constant 0 : i32
    return %arg0, %c0_i32, %c0_i32_0 : i32, i32, i32
  }
}

module attributes {stable_mosaic.version = 11 : i64} {
  func.func @kernel(%arg0: i32, %arg1: memref<16x128xf32, #tpu.memory_space<vmem>>, %arg2: memref<128x128xbf16, #tpu.memory_space<vmem>>, %arg3: memref<1x128xf32, #tpu.memory_space<vmem>>, %arg4: memref<16x128xf32, #tpu.memory_space<vmem>>, %arg5: memref<1x128xf32, #tpu.memory_space<vmem>>, %arg6: memref<1x128xf32, #tpu.memory_space<vmem>>, %arg7: memref<16x128xf32, #tpu.memory_space<vmem>>) attributes {dimension_semantics = [#tpu.dimension_semantics<parallel>], iteration_bounds = array<i64: 1>, scalar_prefetch = 0 : i64, scratch_operands = 0 : i64, tpu.core_type = #tpu.core_type<tc>, window_params = [{transform_indices = @transform_0, window_bounds = array<i64: 16, 128>}, {pipeline_mode = #tpu.pipeline_mode<synchronous>, transform_indices = @transform_1, window_bounds = array<i64: 128, 128>}, {pipeline_mode = #tpu.pipeline_mode<synchronous>, transform_indices = @transform_2, window_bounds = array<i64: 1, 128>}, {transform_indices = @transform_3, window_bounds = array<i64: 16, 128>}, {pipeline_mode = #tpu.pipeline_mode<synchronous>, transform_indices = @transform_4, window_bounds = array<i64: 1, 128>}, {pipeline_mode = #tpu.pipeline_mode<synchronous>, transform_indices = @transform_5, window_bounds = array<i64: 1, 128>}, {transform_indices = @transform_6, window_bounds = array<i64: 16, 128>}]} {
    %c0 = arith.constant 0 : index
    %c0_0 = arith.constant 0 : index
    %0 = vector.load %arg1[%c0, %c0_0] : memref<16x128xf32, #tpu.memory_space<vmem>>, vector<16x128xf32>
    %c0_1 = arith.constant 0 : index
    %c0_2 = arith.constant 0 : index
    %1 = vector.load %arg2[%c0_1, %c0_2] : memref<128x128xbf16, #tpu.memory_space<vmem>>, vector<128x128xbf16>
    %c0_3 = arith.constant 0 : index
    %c0_4 = arith.constant 0 : index
    %2 = vector.load %arg3[%c0_3, %c0_4] : memref<1x128xf32, #tpu.memory_space<vmem>>, vector<1x128xf32>
    %3 = arith.truncf %0 : vector<16x128xf32> to vector<16x128xbf16>
    %cst = arith.constant dense<0.000000e+00> : vector<16x128xf32>
    %4 = tpu.matmul %3, %1, %cst {dimension_numbers = #tpu.dot_dimension_numbers<[1], [0], [0], [1], [0, 0, 1, 1], [], []>} : vector<16x128xbf16>, vector<128x128xbf16>, vector<16x128xf32> -> vector<16x128xf32>
    %5 = vector.broadcast %2 : vector<1x128xf32> to vector<16x128xf32>
    %6 = arith.addf %4, %5 : vector<16x128xf32>
    %c0_5 = arith.constant 0 : index
    %c0_6 = arith.constant 0 : index
    %7 = vector.load %arg4[%c0_5, %c0_6] : memref<16x128xf32, #tpu.memory_space<vmem>>, vector<16x128xf32>
    %8 = arith.addf %6, %7 : vector<16x128xf32>
    %cst_7 = arith.constant dense<0.000000e+00> : vector<16xf32>
    %9 = vector.multi_reduction <add>, %8, %cst_7 [1] : vector<16x128xf32> to vector<16xf32>
    %10 = vector.shape_cast %9 : vector<16xf32> to vector<16x1xf32>
    %cst_8 = arith.constant 1.280000e+02 : f32
    %11 = vector.broadcast %cst_8 : f32 to vector<16x1xf32>
    %12 = arith.divf %10, %11 : vector<16x1xf32>
    %13 = vector.broadcast %12 : vector<16x1xf32> to vector<16x128xf32>
    %14 = arith.subf %8, %13 : vector<16x128xf32>
    %15 = arith.mulf %14, %14 : vector<16x128xf32>
    %cst_9 = arith.constant dense<0.000000e+00> : vector<16xf32>
    %16 = vector.multi_reduction <add>, %15, %cst_9 [1] : vector<16x128xf32> to vector<16xf32>
    %17 = vector.shape_cast %16 : vector<16xf32> to vector<16x1xf32>
    %cst_10 = arith.constant 1.280000e+02 : f32
    %18 = vector.broadcast %cst_10 : f32 to vector<16x1xf32>
    %19 = arith.divf %17, %18 : vector<16x1xf32>
    %20 = vector.broadcast %12 : vector<16x1xf32> to vector<16x128xf32>
    %21 = arith.subf %8, %20 : vector<16x128xf32>
    %cst_11 = arith.constant 9.99999974E-6 : f32
    %22 = vector.broadcast %cst_11 : f32 to vector<16x1xf32>
    %23 = arith.addf %19, %22 : vector<16x1xf32>
    %24 = math.rsqrt %23 : vector<16x1xf32>
    %25 = vector.broadcast %24 : vector<16x1xf32> to vector<16x128xf32>
    %26 = arith.mulf %21, %25 : vector<16x128xf32>
    %c0_12 = arith.constant 0 : index
    %c0_13 = arith.constant 0 : index
    %27 = vector.load %arg5[%c0_12, %c0_13] : memref<1x128xf32, #tpu.memory_space<vmem>>, vector<1x128xf32>
    %28 = vector.broadcast %27 : vector<1x128xf32> to vector<16x128xf32>
    %29 = arith.mulf %26, %28 : vector<16x128xf32>
    %c0_14 = arith.constant 0 : index
    %c0_15 = arith.constant 0 : index
    %30 = vector.load %arg6[%c0_14, %c0_15] : memref<1x128xf32, #tpu.memory_space<vmem>>, vector<1x128xf32>
    %31 = vector.broadcast %30 : vector<1x128xf32> to vector<16x128xf32>
    %32 = arith.addf %29, %31 : vector<16x128xf32>
    %c0_16 = arith.constant 0 : index
    %c0_17 = arith.constant 0 : index
    %33 = vector.load %arg7[%c0_16, %c0_17] : memref<16x128xf32, #tpu.memory_space<vmem>>, vector<16x128xf32>
    tpu.vector_store %arg7[%c0_16, %c0_17], %32 {strides = array<i32>} : memref<16x128xf32, #tpu.memory_space<vmem>>, vector<16x128xf32>,
    return
  }
  func.func @transform_0(%arg0: i32) -> (i32, i32) {
    %c0_i32 = arith.constant 0 : i32
    %c0_i32_0 = arith.constant 0 : i32
    return %arg0, %c0_i32 : i32, i32
  }
  func.func @transform_1(%arg0: i32) -> (i32, i32) {
    %c0_i32 = arith.constant 0 : i32
    %c0_i32_0 = arith.constant 0 : i32
    %c0_i32_1 = arith.constant 0 : i32
    return %c0_i32, %c0_i32_0 : i32, i32
  }
  func.func @transform_2(%arg0: i32) -> (i32, i32) {
    %c0_i32 = arith.constant 0 : i32
    %c0_i32_0 = arith.constant 0 : i32
    %c0_i32_1 = arith.constant 0 : i32
    return %c0_i32, %c0_i32_0 : i32, i32
  }
  func.func @transform_3(%arg0: i32) -> (i32, i32) {
    %c0_i32 = arith.constant 0 : i32
    %c0_i32_0 = arith.constant 0 : i32
    return %arg0, %c0_i32 : i32, i32
  }
  func.func @transform_4(%arg0: i32) -> (i32, i32) {
    %c0_i32 = arith.constant 0 : i32
    %c0_i32_0 = arith.constant 0 : i32
    %c0_i32_1 = arith.constant 0 : i32
    return %c0_i32, %c0_i32_0 : i32, i32
  }
  func.func @transform_5(%arg0: i32) -> (i32, i32) {
    %c0_i32 = arith.constant 0 : i32
    %c0_i32_0 = arith.constant 0 : i32
    %c0_i32_1 = arith.constant 0 : i32
    return %c0_i32, %c0_i32_0 : i32, i32
  }
  func.func @transform_6(%arg0: i32) -> (i32, i32) {
    %c0_i32 = arith.constant 0 : i32
    %c0_i32_0 = arith.constant 0 : i32
    return %arg0, %c0_i32 : i32, i32
  }
}

module attributes {stable_mosaic.version = 11 : i64} {
  func.func @kernel(%arg0: i32, %arg1: memref<16x128xf32, #tpu.memory_space<vmem>>, %arg2: memref<128x256xbf16, #tpu.memory_space<vmem>>, %arg3: memref<1x256xf32, #tpu.memory_space<vmem>>, %arg4: memref<256x128xbf16, #tpu.memory_space<vmem>>, %arg5: memref<1x128xf32, #tpu.memory_space<vmem>>, %arg6: memref<1x128xf32, #tpu.memory_space<vmem>>, %arg7: memref<1x128xf32, #tpu.memory_space<vmem>>, %arg8: memref<16x128xf32, #tpu.memory_space<vmem>>) attributes {dimension_semantics = [#tpu.dimension_semantics<parallel>], iteration_bounds = array<i64: 1>, scalar_prefetch = 0 : i64, scratch_operands = 0 : i64, tpu.core_type = #tpu.core_type<tc>, window_params = [{transform_indices = @transform_0, window_bounds = array<i64: 16, 128>}, {pipeline_mode = #tpu.pipeline_mode<synchronous>, transform_indices = @transform_1, window_bounds = array<i64: 128, 256>}, {pipeline_mode = #tpu.pipeline_mode<synchronous>, transform_indices = @transform_2, window_bounds = array<i64: 1, 256>}, {pipeline_mode = #tpu.pipeline_mode<synchronous>, transform_indices = @transform_3, window_bounds = array<i64: 256, 128>}, {pipeline_mode = #tpu.pipeline_mode<synchronous>, transform_indices = @transform_4, window_bounds = array<i64: 1, 128>}, {pipeline_mode = #tpu.pipeline_mode<synchronous>, transform_indices = @transform_5, window_bounds = array<i64: 1, 128>}, {pipeline_mode = #tpu.pipeline_mode<synchronous>, transform_indices = @transform_6, window_bounds = array<i64: 1, 128>}, {transform_indices = @transform_7, window_bounds = array<i64: 16, 128>}]} {
    %c0 = arith.constant 0 : index
    %c0_0 = arith.constant 0 : index
    %0 = vector.load %arg1[%c0, %c0_0] : memref<16x128xf32, #tpu.memory_space<vmem>>, vector<16x128xf32>
    %c0_1 = arith.constant 0 : index
    %c0_2 = arith.constant 0 : index
    %1 = vector.load %arg2[%c0_1, %c0_2] : memref<128x256xbf16, #tpu.memory_space<vmem>>, vector<128x256xbf16>
    %c0_3 = arith.constant 0 : index
    %c0_4 = arith.constant 0 : index
    %2 = vector.load %arg3[%c0_3, %c0_4] : memref<1x256xf32, #tpu.memory_space<vmem>>, vector<1x256xf32>
    %3 = arith.truncf %0 : vector<16x128xf32> to vector<16x128xbf16>
    %cst = arith.constant dense<0.000000e+00> : vector<16x256xf32>
    %4 = tpu.matmul %3, %1, %cst {dimension_numbers = #tpu.dot_dimension_numbers<[1], [0], [0], [1], [0, 0, 1, 1], [], []>} : vector<16x128xbf16>, vector<128x256xbf16>, vector<16x256xf32> -> vector<16x256xf32>
    %5 = vector.broadcast %2 : vector<1x256xf32> to vector<16x256xf32>
    %6 = arith.addf %4, %5 : vector<16x256xf32>
    %cst_5 = arith.constant 0.000000e+00 : f32
    %7 = vector.broadcast %cst_5 : f32 to vector<16x256xf32>
    %8 = arith.maximumf %6, %7 : vector<16x256xf32>
    %c0_6 = arith.constant 0 : index
    %c0_7 = arith.constant 0 : index
    %9 = vector.load %arg4[%c0_6, %c0_7] : memref<256x128xbf16, #tpu.memory_space<vmem>>, vector<256x128xbf16>
    %c0_8 = arith.constant 0 : index
    %c0_9 = arith.constant 0 : index
    %10 = vector.load %arg5[%c0_8, %c0_9] : memref<1x128xf32, #tpu.memory_space<vmem>>, vector<1x128xf32>
    %11 = arith.truncf %8 : vector<16x256xf32> to vector<16x256xbf16>
    %cst_10 = arith.constant dense<0.000000e+00> : vector<16x128xf32>
    %12 = tpu.matmul %11, %9, %cst_10 {dimension_numbers = #tpu.dot_dimension_numbers<[1], [0], [0], [1], [0, 0, 1, 1], [], []>} : vector<16x256xbf16>, vector<256x128xbf16>, vector<16x128xf32> -> vector<16x128xf32>
    %13 = vector.broadcast %10 : vector<1x128xf32> to vector<16x128xf32>
    %14 = arith.addf %12, %13 : vector<16x128xf32>
    %15 = arith.addf %14, %0 : vector<16x128xf32>
    %cst_11 = arith.constant dense<0.000000e+00> : vector<16xf32>
    %16 = vector.multi_reduction <add>, %15, %cst_11 [1] : vector<16x128xf32> to vector<16xf32>
    %17 = vector.shape_cast %16 : vector<16xf32> to vector<16x1xf32>
    %cst_12 = arith.constant 1.280000e+02 : f32
    %18 = vector.broadcast %cst_12 : f32 to vector<16x1xf32>
    %19 = arith.divf %17, %18 : vector<16x1xf32>
    %20 = vector.broadcast %19 : vector<16x1xf32> to vector<16x128xf32>
    %21 = arith.subf %15, %20 : vector<16x128xf32>
    %22 = arith.mulf %21, %21 : vector<16x128xf32>
    %cst_13 = arith.constant dense<0.000000e+00> : vector<16xf32>
    %23 = vector.multi_reduction <add>, %22, %cst_13 [1] : vector<16x128xf32> to vector<16xf32>
    %24 = vector.shape_cast %23 : vector<16xf32> to vector<16x1xf32>
    %cst_14 = arith.constant 1.280000e+02 : f32
    %25 = vector.broadcast %cst_14 : f32 to vector<16x1xf32>
    %26 = arith.divf %24, %25 : vector<16x1xf32>
    %27 = vector.broadcast %19 : vector<16x1xf32> to vector<16x128xf32>
    %28 = arith.subf %15, %27 : vector<16x128xf32>
    %cst_15 = arith.constant 9.99999974E-6 : f32
    %29 = vector.broadcast %cst_15 : f32 to vector<16x1xf32>
    %30 = arith.addf %26, %29 : vector<16x1xf32>
    %31 = math.rsqrt %30 : vector<16x1xf32>
    %32 = vector.broadcast %31 : vector<16x1xf32> to vector<16x128xf32>
    %33 = arith.mulf %28, %32 : vector<16x128xf32>
    %c0_16 = arith.constant 0 : index
    %c0_17 = arith.constant 0 : index
    %34 = vector.load %arg6[%c0_16, %c0_17] : memref<1x128xf32, #tpu.memory_space<vmem>>, vector<1x128xf32>
    %35 = vector.broadcast %34 : vector<1x128xf32> to vector<16x128xf32>
    %36 = arith.mulf %33, %35 : vector<16x128xf32>
    %c0_18 = arith.constant 0 : index
    %c0_19 = arith.constant 0 : index
    %37 = vector.load %arg7[%c0_18, %c0_19] : memref<1x128xf32, #tpu.memory_space<vmem>>, vector<1x128xf32>
    %38 = vector.broadcast %37 : vector<1x128xf32> to vector<16x128xf32>
    %39 = arith.addf %36, %38 : vector<16x128xf32>
    %c0_20 = arith.constant 0 : index
    %c0_21 = arith.constant 0 : index
    %40 = vector.load %arg8[%c0_20, %c0_21] : memref<16x128xf32, #tpu.memory_space<vmem>>, vector<16x128xf32>
    tpu.vector_store %arg8[%c0_20, %c0_21], %39 {strides = array<i32>} : memref<16x128xf32, #tpu.memory_space<vmem>>, vector<16x128xf32>,
    return
  }
  func.func @transform_0(%arg0: i32) -> (i32, i32) {
    %c0_i32 = arith.constant 0 : i32
    %c0_i32_0 = arith.constant 0 : i32
    return %arg0, %c0_i32 : i32, i32
  }
  func.func @transform_1(%arg0: i32) -> (i32, i32) {
    %c0_i32 = arith.constant 0 : i32
    %c0_i32_0 = arith.constant 0 : i32
    %c0_i32_1 = arith.constant 0 : i32
    return %c0_i32, %c0_i32_0 : i32, i32
  }
  func.func @transform_2(%arg0: i32) -> (i32, i32) {
    %c0_i32 = arith.constant 0 : i32
    %c0_i32_0 = arith.constant 0 : i32
    %c0_i32_1 = arith.constant 0 : i32
    return %c0_i32, %c0_i32_0 : i32, i32
  }
  func.func @transform_3(%arg0: i32) -> (i32, i32) {
    %c0_i32 = arith.constant 0 : i32
    %c0_i32_0 = arith.constant 0 : i32
    %c0_i32_1 = arith.constant 0 : i32
    return %c0_i32, %c0_i32_0 : i32, i32
  }
  func.func @transform_4(%arg0: i32) -> (i32, i32) {
    %c0_i32 = arith.constant 0 : i32
    %c0_i32_0 = arith.constant 0 : i32
    %c0_i32_1 = arith.constant 0 : i32
    return %c0_i32, %c0_i32_0 : i32, i32
  }
  func.func @transform_5(%arg0: i32) -> (i32, i32) {
    %c0_i32 = arith.constant 0 : i32
    %c0_i32_0 = arith.constant 0 : i32
    %c0_i32_1 = arith.constant 0 : i32
    return %c0_i32, %c0_i32_0 : i32, i32
  }
  func.func @transform_6(%arg0: i32) -> (i32, i32) {
    %c0_i32 = arith.constant 0 : i32
    %c0_i32_0 = arith.constant 0 : i32
    %c0_i32_1 = arith.constant 0 : i32
    return %c0_i32, %c0_i32_0 : i32, i32
  }
  func.func @transform_7(%arg0: i32) -> (i32, i32) {
    %c0_i32 = arith.constant 0 : i32
    %c0_i32_0 = arith.constant 0 : i32
    return %arg0, %c0_i32 : i32, i32
  }
}

module attributes {stable_mosaic.version = 11 : i64} {
  func.func @kernel(%arg0: i32, %arg1: memref<16x128xf32, #tpu.memory_space<vmem>>, %arg2: memref<128x256xbf16, #tpu.memory_space<vmem>>, %arg3: memref<1x256xf32, #tpu.memory_space<vmem>>, %arg4: memref<256x256xbf16, #tpu.memory_space<vmem>>, %arg5: memref<1x256xf32, #tpu.memory_space<vmem>>, %arg6: memref<256x128xbf16, #tpu.memory_space<vmem>>, %arg7: memref<1x128xf32, #tpu.memory_space<vmem>>, %arg8: memref<16x128xf32, #tpu.memory_space<vmem>>) attributes {dimension_semantics = [#tpu.dimension_semantics<parallel>], iteration_bounds = array<i64: 1>, scalar_prefetch = 0 : i64, scratch_operands = 0 : i64, tpu.core_type = #tpu.core_type<tc>, window_params = [{transform_indices = @transform_0, window_bounds = array<i64: 16, 128>}, {pipeline_mode = #tpu.pipeline_mode<synchronous>, transform_indices = @transform_1, window_bounds = array<i64: 128, 256>}, {pipeline_mode = #tpu.pipeline_mode<synchronous>, transform_indices = @transform_2, window_bounds = array<i64: 1, 256>}, {pipeline_mode = #tpu.pipeline_mode<synchronous>, transform_indices = @transform_3, window_bounds = array<i64: 256, 256>}, {pipeline_mode = #tpu.pipeline_mode<synchronous>, transform_indices = @transform_4, window_bounds = array<i64: 1, 256>}, {pipeline_mode = #tpu.pipeline_mode<synchronous>, transform_indices = @transform_5, window_bounds = array<i64: 256, 128>}, {pipeline_mode = #tpu.pipeline_mode<synchronous>, transform_indices = @transform_6, window_bounds = array<i64: 1, 128>}, {transform_indices = @transform_7, window_bounds = array<i64: 16, 128>}]} {
    %c0 = arith.constant 0 : index
    %c0_0 = arith.constant 0 : index
    %0 = vector.load %arg1[%c0, %c0_0] : memref<16x128xf32, #tpu.memory_space<vmem>>, vector<16x128xf32>
    %c0_1 = arith.constant 0 : index
    %c0_2 = arith.constant 0 : index
    %1 = vector.load %arg2[%c0_1, %c0_2] : memref<128x256xbf16, #tpu.memory_space<vmem>>, vector<128x256xbf16>
    %c0_3 = arith.constant 0 : index
    %c0_4 = arith.constant 0 : index
    %2 = vector.load %arg3[%c0_3, %c0_4] : memref<1x256xf32, #tpu.memory_space<vmem>>, vector<1x256xf32>
    %3 = arith.truncf %0 : vector<16x128xf32> to vector<16x128xbf16>
    %cst = arith.constant dense<0.000000e+00> : vector<16x256xf32>
    %4 = tpu.matmul %3, %1, %cst {dimension_numbers = #tpu.dot_dimension_numbers<[1], [0], [0], [1], [0, 0, 1, 1], [], []>} : vector<16x128xbf16>, vector<128x256xbf16>, vector<16x256xf32> -> vector<16x256xf32>
    %5 = vector.broadcast %2 : vector<1x256xf32> to vector<16x256xf32>
    %6 = arith.addf %4, %5 : vector<16x256xf32>
    %cst_5 = arith.constant 0.000000e+00 : f32
    %7 = vector.broadcast %cst_5 : f32 to vector<16x256xf32>
    %8 = arith.maximumf %6, %7 : vector<16x256xf32>
    %c0_6 = arith.constant 0 : index
    %c0_7 = arith.constant 0 : index
    %9 = vector.load %arg4[%c0_6, %c0_7] : memref<256x256xbf16, #tpu.memory_space<vmem>>, vector<256x256xbf16>
    %c0_8 = arith.constant 0 : index
    %c0_9 = arith.constant 0 : index
    %10 = vector.load %arg5[%c0_8, %c0_9] : memref<1x256xf32, #tpu.memory_space<vmem>>, vector<1x256xf32>
    %11 = arith.truncf %8 : vector<16x256xf32> to vector<16x256xbf16>
    %cst_10 = arith.constant dense<0.000000e+00> : vector<16x256xf32>
    %12 = tpu.matmul %11, %9, %cst_10 {dimension_numbers = #tpu.dot_dimension_numbers<[1], [0], [0], [1], [0, 0, 1, 1], [], []>} : vector<16x256xbf16>, vector<256x256xbf16>, vector<16x256xf32> -> vector<16x256xf32>
    %13 = vector.broadcast %10 : vector<1x256xf32> to vector<16x256xf32>
    %14 = arith.addf %12, %13 : vector<16x256xf32>
    %cst_11 = arith.constant 0.000000e+00 : f32
    %15 = vector.broadcast %cst_11 : f32 to vector<16x256xf32>
    %16 = arith.maximumf %14, %15 : vector<16x256xf32>
    %c0_12 = arith.constant 0 : index
    %c0_13 = arith.constant 0 : index
    %17 = vector.load %arg6[%c0_12, %c0_13] : memref<256x128xbf16, #tpu.memory_space<vmem>>, vector<256x128xbf16>
    %c0_14 = arith.constant 0 : index
    %c0_15 = arith.constant 0 : index
    %18 = vector.load %arg7[%c0_14, %c0_15] : memref<1x128xf32, #tpu.memory_space<vmem>>, vector<1x128xf32>
    %19 = arith.truncf %16 : vector<16x256xf32> to vector<16x256xbf16>
    %cst_16 = arith.constant dense<0.000000e+00> : vector<16x128xf32>
    %20 = tpu.matmul %19, %17, %cst_16 {dimension_numbers = #tpu.dot_dimension_numbers<[1], [0], [0], [1], [0, 0, 1, 1], [], []>} : vector<16x256xbf16>, vector<256x128xbf16>, vector<16x128xf32> -> vector<16x128xf32>
    %21 = vector.broadcast %18 : vector<1x128xf32> to vector<16x128xf32>
    %22 = arith.addf %20, %21 : vector<16x128xf32>
    %c0_17 = arith.constant 0 : index
    %c0_18 = arith.constant 0 : index
    %23 = vector.load %arg8[%c0_17, %c0_18] : memref<16x128xf32, #tpu.memory_space<vmem>>, vector<16x128xf32>
    tpu.vector_store %arg8[%c0_17, %c0_18], %22 {strides = array<i32>} : memref<16x128xf32, #tpu.memory_space<vmem>>, vector<16x128xf32>,
    return
  }
  func.func @transform_0(%arg0: i32) -> (i32, i32) {
    %c0_i32 = arith.constant 0 : i32
    %c0_i32_0 = arith.constant 0 : i32
    return %arg0, %c0_i32 : i32, i32
  }
  func.func @transform_1(%arg0: i32) -> (i32, i32) {
    %c0_i32 = arith.constant 0 : i32
    %c0_i32_0 = arith.constant 0 : i32
    %c0_i32_1 = arith.constant 0 : i32
    return %c0_i32, %c0_i32_0 : i32, i32
  }
  func.func @transform_2(%arg0: i32) -> (i32, i32) {
    %c0_i32 = arith.constant 0 : i32
    %c0_i32_0 = arith.constant 0 : i32
    %c0_i32_1 = arith.constant 0 : i32
    return %c0_i32, %c0_i32_0 : i32, i32
  }
  func.func @transform_3(%arg0: i32) -> (i32, i32) {
    %c0_i32 = arith.constant 0 : i32
    %c0_i32_0 = arith.constant 0 : i32
    %c0_i32_1 = arith.constant 0 : i32
    return %c0_i32, %c0_i32_0 : i32, i32
  }
  func.func @transform_4(%arg0: i32) -> (i32, i32) {
    %c0_i32 = arith.constant 0 : i32
    %c0_i32_0 = arith.constant 0 : i32
    %c0_i32_1 = arith.constant 0 : i32
    return %c0_i32, %c0_i32_0 : i32, i32
  }
  func.func @transform_5(%arg0: i32) -> (i32, i32) {
    %c0_i32 = arith.constant 0 : i32
    %c0_i32_0 = arith.constant 0 : i32
    %c0_i32_1 = arith.constant 0 : i32
    return %c0_i32, %c0_i32_0 : i32, i32
  }
  func.func @transform_6(%arg0: i32) -> (i32, i32) {
    %c0_i32 = arith.constant 0 : i32
    %c0_i32_0 = arith.constant 0 : i32
    %c0_i32_1 = arith.constant 0 : i32
    return %c0_i32, %c0_i32_0 : i32, i32
  }
  func.func @transform_7(%arg0: i32) -> (i32, i32) {
    %c0_i32 = arith.constant 0 : i32
    %c0_i32_0 = arith.constant 0 : i32
    return %arg0, %c0_i32 : i32, i32
  }
}

</mosaic_0001>

<llo_original>
// kernel: transformer2d_forward.38
$region0: #{transformer2d_forward.38}
  #allocation0 [shape = 'u32[]', space=smem, size = 0x4, offset = 0x4, fixed_abs, tag = 'smem constant byte address 0x4 - core index']
  #allocation1 [shape = 'u32[144,128]{1,0:T(1,128)}', space=vmem, size = 0x12000, scoped, tag = 'internal scratch']
  %s0 = inlined_call_operand.vmem [shape: f32[16,12], index: 0, kind: input, shape index: {}]
  %s1 = inlined_call_operand.vmem [shape: bf16[12,128], index: 1, kind: input, shape index: {}]
  %s2 = inlined_call_operand.vmem [shape: f32[1,128], index: 2, kind: input, shape index: {}]
  %s3 = inlined_call_operand.vmem [shape: f32[16,128], index: 3, kind: output, shape index: {}]
  %s4 = sld [smem:[#allocation0]]
  $region22: #{transformer2d_forward.38} parent=0
    _
  %s6 = ssub.s32 1, %s4
  %s7 = scalar_select 0, %s6, %s4
  // Predicated region
  $region2: #{transformer2d_forward.38} parent=0 // pred_check
    _
  $region3: #{transformer2d_forward.38} parent=0 // pred_check_branch
    %9 = sbr.rel (0) target = $region5
  $region4: #{transformer2d_forward.38} parent=0 // pred_region
    _
  $region5: #{transformer2d_forward.38} parent=0 // pred_fallthru
    _
  // Predicated region
  $region6: #{transformer2d_forward.38} parent=0 // pred_check
    _
  $region7: #{transformer2d_forward.38} parent=0 // pred_check_branch
    %11 = sbr.rel (0) target = $region9
  $region8: #{transformer2d_forward.38} parent=0 // pred_region
    _
  $region9: #{transformer2d_forward.38} parent=0 // pred_fallthru
    _
  // Predicated region
  $region10: #{transformer2d_forward.38} parent=0 // pred_check
    _
  $region11: #{transformer2d_forward.38} parent=0 // pred_check_branch
    %13 = sbr.rel (0) target = $region13
  $region12: #{transformer2d_forward.38} parent=0 // pred_region
    _
  $region13: #{transformer2d_forward.38} parent=0 // pred_fallthru
    _
  %v15 = vld [vmem:[%s0] sm:$0xff]
  %v16 = vld [vmem:[%s0 + $0x8] sm:$0xff]
  %v17 = vld [vmem:[%s1] sm:$0xf]
  %v18 = vld [vmem:[%s1 + $0x4] sm:$0x3]
  %v19 = vld [vmem:[%s2] sm:$0x1]
  %v20 = vpack.c.bf16 %v16, %v15
  %v22 = vlaneseq
  %v23 = vshrl.u32 %v22, 7
  %v24 = vsub.s32 0, %v23
  %v25 = vrot.slane %v19, %v24
  %v29 = vunpack.c.l.b16 %v17
  %v30 = vunpack.c.l.b16 %v18
  %v31 = vpack.c.b16 %v30, %v29
  %vm32 = vcmask 97280
  %v34 = vsel %vm32, %v20, 0
  %vm36 = vcmask 1045504
  %v38 = vsel %vm36, %v31, 0
  %40 = vmatprep.subr.bf16.mxu0 0
  %41 = vmatpush1.bf16.msra.mxu0 %v38
  %42 = vmatprep.subr.bf16.mxu0 0
  %43 = vmatpush1.bf16.msra.mxu0 0
  %44 = vmatprep.subr.bf16.mxu0 0
  %45 = vmatpush1.bf16.msra.mxu0 0
  %46 = vmatprep.subr.bf16.mxu0 0
  %47 = vmatpush1.bf16.msra.mxu0 0
  %48 = vmatprep.subr.bf16.mxu0 0
  %49 = vmatpush1.bf16.msra.mxu0 0
  %50 = vmatprep.subr.bf16.mxu0 0
  %51 = vmatpush1.bf16.msra.mxu0 0
  %52 = vmatprep.subr.bf16.mxu0 0
  %53 = vmatpush1.bf16.msra.mxu0 0
  %54 = vmatprep.subr.bf16.mxu0 0
  %55 = vmatpush1.bf16.msra.mxu0 0
  %56 = vmatprep.subr.bf16.mxu0 0
  %57 = vmatpush1.bf16.msra.mxu0 0
  %58 = vmatprep.subr.bf16.mxu0 0
  %59 = vmatpush1.bf16.msra.mxu0 0
  %60 = vmatprep.subr.bf16.mxu0 0
  %61 = vmatpush1.bf16.msra.mxu0 0
  %62 = vmatprep.subr.bf16.mxu0 0
  %63 = vmatpush1.bf16.msra.mxu0 0
  %64 = vmatprep.subr.bf16.mxu0 0
  %65 = vmatpush1.bf16.msra.mxu0 0
  %66 = vmatprep.subr.bf16.mxu0 0
  %67 = vmatpush1.bf16.msra.mxu0 0
  %68 = vmatprep.subr.bf16.mxu0 0
  %69 = vmatpush1.bf16.msra.mxu0 0
  %70 = vmatprep.subr.bf16.mxu0 0
  %71 = vmatpush1.bf16.msra.mxu0 0
  %72 = vmatprep.mubr.bf16.mxu0 0
  %73 = vmatmul.mubr.bf16.gmra.mrb[0].mxu0 %v34
  %v74 = vpop.f32.mrb[0].mxu0
  %v75 = vadd.f32 %v25, %v74
  %v76 = vpop.f32.mrb[0].mxu0
  %v77 = vpop.f32.mrb[0].mxu0
  %v78 = vadd.f32 %v25, %v77
  %v79 = vpop.f32.mrb[0].mxu0
  %80 = vdwg.mxu0
  %81 = vst [vmem:[%s3] sm:$0xff] %v75
  %82 = vst [vmem:[%s3 + $0x8] sm:$0xff] %v78
  // Predicated region
  $region14: #{transformer2d_forward.38} parent=0 // pred_check
    _
  $region15: #{transformer2d_forward.38} parent=0 // pred_check_branch
    %84 = sbr.rel (0) target = $region17
  $region16: #{transformer2d_forward.38} parent=0 // pred_region
    _
  $region17: #{transformer2d_forward.38} parent=0 // pred_fallthru
    _
  // Predicated region
  $region18: #{transformer2d_forward.38} parent=0 // pred_check
    _
  $region19: #{transformer2d_forward.38} parent=0 // pred_check_branch
    %86 = sbr.rel (0) target = $region21
  $region20: #{transformer2d_forward.38} parent=0 // pred_region
    _
  $region21: #{transformer2d_forward.38} parent=0 // pred_fallthru
    _

// kernel: transformer2d_forward.48
$region0: #{transformer2d_forward.48}
  #allocation0 [shape = 'u32[]', space=smem, size = 0x4, offset = 0x4, fixed_abs, tag = 'smem constant byte address 0x4 - core index']
  #allocation1 [shape = 'u32[144,128]{1,0:T(1,128)}', space=vmem, size = 0x12000, scoped, tag = 'internal scratch']
  %s0 = inlined_call_operand.vmem [shape: f32[16,128], index: 0, kind: input, shape index: {}]
  %s1 = inlined_call_operand.vmem [shape: bf16[128,128], index: 1, kind: input, shape index: {}]
  %s2 = inlined_call_operand.vmem [shape: f32[1,128], index: 2, kind: input, shape index: {}]
  %s3 = inlined_call_operand.vmem [shape: f32[16,128], index: 3, kind: output, shape index: {}]
  %s4 = sld [smem:[#allocation0]]
  $region22: #{transformer2d_forward.48} parent=0
    _
  %s6 = ssub.s32 1, %s4
  %s7 = scalar_select 0, %s6, %s4
  // Predicated region
  $region2: #{transformer2d_forward.48} parent=0 // pred_check
    _
  $region3: #{transformer2d_forward.48} parent=0 // pred_check_branch
    %9 = sbr.rel (0) target = $region5
  $region4: #{transformer2d_forward.48} parent=0 // pred_region
    _
  $region5: #{transformer2d_forward.48} parent=0 // pred_fallthru
    _
  // Predicated region
  $region6: #{transformer2d_forward.48} parent=0 // pred_check
    _
  $region7: #{transformer2d_forward.48} parent=0 // pred_check_branch
    %11 = sbr.rel (0) target = $region9
  $region8: #{transformer2d_forward.48} parent=0 // pred_region
    _
  $region9: #{transformer2d_forward.48} parent=0 // pred_fallthru
    _
  // Predicated region
  $region10: #{transformer2d_forward.48} parent=0 // pred_check
    _
  $region11: #{transformer2d_forward.48} parent=0 // pred_check_branch
    %13 = sbr.rel (0) target = $region13
  $region12: #{transformer2d_forward.48} parent=0 // pred_region
    _
  $region13: #{transformer2d_forward.48} parent=0 // pred_fallthru
    _
  %v15 = vld [vmem:[%s0] sm:$0xff]
  %v16 = vld [vmem:[%s0 + $0x8] sm:$0xff]
  %v17 = vld [vmem:[%s1] sm:$0xf]
  %v18 = vld [vmem:[%s1 + $0x4] sm:$0xf]
  %v19 = vld [vmem:[%s1 + $0x8] sm:$0xf]
  %v20 = vld [vmem:[%s1 + $0xc] sm:$0xf]
  %v21 = vld [vmem:[%s1 + $0x10] sm:$0xf]
  %v22 = vld [vmem:[%s1 + $0x14] sm:$0xf]
  %v23 = vld [vmem:[%s1 + $0x18] sm:$0xf]
  %v24 = vld [vmem:[%s1 + $0x1c] sm:$0xf]
  %v25 = vld [vmem:[%s1 + $0x20] sm:$0xf]
  %v26 = vld [vmem:[%s1 + $0x24] sm:$0xf]
  %v27 = vld [vmem:[%s1 + $0x28] sm:$0xf]
  %v28 = vld [vmem:[%s1 + $0x2c] sm:$0xf]
  %v29 = vld [vmem:[%s1 + $0x30] sm:$0xf]
  %v30 = vld [vmem:[%s1 + $0x34] sm:$0xf]
  %v31 = vld [vmem:[%s1 + $0x38] sm:$0xf]
  %v32 = vld [vmem:[%s1 + $0x3c] sm:$0xf]
  %v33 = vld [vmem:[%s2] sm:$0x1]
  %v34 = vpack.c.bf16 %v16, %v15
  %v36 = vlaneseq
  %v37 = vshrl.u32 %v36, 7
  %v38 = vsub.s32 0, %v37
  %v39 = vrot.slane %v33, %v38
  %v57 = vunpack.c.l.b16 %v17
  %v58 = vunpack.c.l.b16 %v18
  %v59 = vunpack.c.l.b16 %v19
  %v60 = vunpack.c.l.b16 %v20
  %v61 = vunpack.c.l.b16 %v21
  %v62 = vunpack.c.l.b16 %v22
  %v63 = vunpack.c.l.b16 %v23
  %v64 = vunpack.c.l.b16 %v24
  %v65 = vunpack.c.l.b16 %v25
  %v66 = vunpack.c.l.b16 %v26
  %v67 = vunpack.c.l.b16 %v27
  %v68 = vunpack.c.l.b16 %v28
  %v69 = vunpack.c.l.b16 %v29
  %v70 = vunpack.c.l.b16 %v30
  %v71 = vunpack.c.l.b16 %v31
  %v72 = vunpack.c.l.b16 %v32
  %v73 = vpack.c.b16 %v58, %v57
  %v74 = vpack.c.b16 %v60, %v59
  %v75 = vpack.c.b16 %v62, %v61
  %v76 = vpack.c.b16 %v64, %v63
  %v77 = vpack.c.b16 %v66, %v65
  %v78 = vpack.c.b16 %v68, %v67
  %v79 = vpack.c.b16 %v70, %v69
  %v80 = vpack.c.b16 %v72, %v71
  %89 = vmatprep.subr.bf16.mxu0 0
  %90 = vmatpush1.bf16.msra.mxu0 %v73
  %91 = vmatprep.subr.bf16.mxu0 0
  %92 = vmatpush1.bf16.msra.mxu0 %v74
  %93 = vmatprep.subr.bf16.mxu0 0
  %94 = vmatpush1.bf16.msra.mxu0 %v75
  %95 = vmatprep.subr.bf16.mxu0 0
  %96 = vmatpush1.bf16.msra.mxu0 %v76
  %97 = vmatprep.subr.bf16.mxu0 0
  %98 = vmatpush1.bf16.msra.mxu0 %v77
  %99 = vmatprep.subr.bf16.mxu0 0
  %100 = vmatpush1.bf16.msra.mxu0 %v78
  %101 = vmatprep.subr.bf16.mxu0 0
  %102 = vmatpush1.bf16.msra.mxu0 %v79
  %103 = vmatprep.subr.bf16.mxu0 0
  %104 = vmatpush1.bf16.msra.mxu0 %v80
  %105 = vmatprep.subr.bf16.mxu0 0
  %106 = vmatpush1.bf16.msra.mxu0 0
  %107 = vmatprep.subr.bf16.mxu0 0
  %108 = vmatpush1.bf16.msra.mxu0 0
  %109 = vmatprep.subr.bf16.mxu0 0
  %110 = vmatpush1.bf16.msra.mxu0 0
  %111 = vmatprep.subr.bf16.mxu0 0
  %112 = vmatpush1.bf16.msra.mxu0 0
  %113 = vmatprep.subr.bf16.mxu0 0
  %114 = vmatpush1.bf16.msra.mxu0 0
  %115 = vmatprep.subr.bf16.mxu0 0
  %116 = vmatpush1.bf16.msra.mxu0 0
  %117 = vmatprep.subr.bf16.mxu0 0
  %118 = vmatpush1.bf16.msra.mxu0 0
  %119 = vmatprep.subr.bf16.mxu0 0
  %120 = vmatpush1.bf16.msra.mxu0 0
  %121 = vmatprep.mubr.bf16.mxu0 0
  %122 = vmatmul.mubr.bf16.gmra.mrb[0].mxu0 %v34
  %v123 = vpop.f32.mrb[0].mxu0
  %v124 = vadd.f32 %v39, %v123
  %v125 = vpop.f32.mrb[0].mxu0
  %v126 = vpop.f32.mrb[0].mxu0
  %v127 = vadd.f32 %v39, %v126
  %v128 = vpop.f32.mrb[0].mxu0
  %129 = vdwg.mxu0
  %130 = vst [vmem:[%s3] sm:$0xff] %v124
  %131 = vst [vmem:[%s3 + $0x8] sm:$0xff] %v127
  // Predicated region
  $region14: #{transformer2d_forward.48} parent=0 // pred_check
    _
  $region15: #{transformer2d_forward.48} parent=0 // pred_check_branch
    %133 = sbr.rel (0) target = $region17
  $region16: #{transformer2d_forward.48} parent=0 // pred_region
    _
  $region17: #{transformer2d_forward.48} parent=0 // pred_fallthru
    _
  // Predicated region
  $region18: #{transformer2d_forward.48} parent=0 // pred_check
    _
  $region19: #{transformer2d_forward.48} parent=0 // pred_check_branch
    %135 = sbr.rel (0) target = $region21
  $region20: #{transformer2d_forward.48} parent=0 // pred_region
    _
  $region21: #{transformer2d_forward.48} parent=0 // pred_fallthru
    _

// kernel: transformer2d_forward.36
$region0: #{transformer2d_forward.36}
  #allocation0 [shape = 'u32[]', space=smem, size = 0x4, offset = 0x4, fixed_abs, tag = 'smem constant byte address 0x4 - core index']
  #allocation1 [shape = 'u32[144,128]{1,0:T(1,128)}', space=vmem, size = 0x12000, scoped, tag = 'internal scratch']
  %s0 = inlined_call_operand.vmem [shape: f32[16,8], index: 0, kind: input, shape index: {}]
  %s1 = inlined_call_operand.vmem [shape: bf16[8,128], index: 1, kind: input, shape index: {}]
  %s2 = inlined_call_operand.vmem [shape: f32[1,128], index: 2, kind: input, shape index: {}]
  %s3 = inlined_call_operand.vmem [shape: f32[16,128], index: 3, kind: output, shape index: {}]
  %s4 = sld [smem:[#allocation0]]
  $region22: #{transformer2d_forward.36} parent=0
    _
  %s6 = ssub.s32 1, %s4
  %s7 = scalar_select 0, %s6, %s4
  // Predicated region
  $region2: #{transformer2d_forward.36} parent=0 // pred_check
    _
  $region3: #{transformer2d_forward.36} parent=0 // pred_check_branch
    %9 = sbr.rel (0) target = $region5
  $region4: #{transformer2d_forward.36} parent=0 // pred_region
    _
  $region5: #{transformer2d_forward.36} parent=0 // pred_fallthru
    _
  // Predicated region
  $region6: #{transformer2d_forward.36} parent=0 // pred_check
    _
  $region7: #{transformer2d_forward.36} parent=0 // pred_check_branch
    %11 = sbr.rel (0) target = $region9
  $region8: #{transformer2d_forward.36} parent=0 // pred_region
    _
  $region9: #{transformer2d_forward.36} parent=0 // pred_fallthru
    _
  // Predicated region
  $region10: #{transformer2d_forward.36} parent=0 // pred_check
    _
  $region11: #{transformer2d_forward.36} parent=0 // pred_check_branch
    %13 = sbr.rel (0) target = $region13
  $region12: #{transformer2d_forward.36} parent=0 // pred_region
    _
  $region13: #{transformer2d_forward.36} parent=0 // pred_fallthru
    _
  %v15 = vld [vmem:[%s0] sm:$0xff]
  %v16 = vld [vmem:[%s0 + $0x8] sm:$0xff]
  %v17 = vld [vmem:[%s1] sm:$0xf]
  %v18 = vld [vmem:[%s2] sm:$0x1]
  %v19 = vpack.c.bf16 %v16, %v15
  %v21 = vlaneseq
  %v22 = vshrl.u32 %v21, 7
  %v23 = vsub.s32 0, %v22
  %v24 = vrot.slane %v18, %v23
  %vm26 = vcmask 64512
  %v28 = vsel %vm26, %v19, 0
  %vm30 = vcmask 1043456
  %v32 = vsel %vm30, %v17, 0
  %34 = vmatprep.subr.bf16.mxu0 0
  %35 = vmatpush1.bf16.msra.mxu0 %v32
  %36 = vmatprep.subr.bf16.mxu0 0
  %37 = vmatpush1.bf16.msra.mxu0 0
  %38 = vmatprep.subr.bf16.mxu0 0
  %39 = vmatpush1.bf16.msra.mxu0 0
  %40 = vmatprep.subr.bf16.mxu0 0
  %41 = vmatpush1.bf16.msra.mxu0 0
  %42 = vmatprep.subr.bf16.mxu0 0
  %43 = vmatpush1.bf16.msra.mxu0 0
  %44 = vmatprep.subr.bf16.mxu0 0
  %45 = vmatpush1.bf16.msra.mxu0 0
  %46 = vmatprep.subr.bf16.mxu0 0
  %47 = vmatpush1.bf16.msra.mxu0 0
  %48 = vmatprep.subr.bf16.mxu0 0
  %49 = vmatpush1.bf16.msra.mxu0 0
  %50 = vmatprep.subr.bf16.mxu0 0
  %51 = vmatpush1.bf16.msra.mxu0 0
  %52 = vmatprep.subr.bf16.mxu0 0
  %53 = vmatpush1.bf16.msra.mxu0 0
  %54 = vmatprep.subr.bf16.mxu0 0
  %55 = vmatpush1.bf16.msra.mxu0 0
  %56 = vmatprep.subr.bf16.mxu0 0
  %57 = vmatpush1.bf16.msra.mxu0 0
  %58 = vmatprep.subr.bf16.mxu0 0
  %59 = vmatpush1.bf16.msra.mxu0 0
  %60 = vmatprep.subr.bf16.mxu0 0
  %61 = vmatpush1.bf16.msra.mxu0 0
  %62 = vmatprep.subr.bf16.mxu0 0
  %63 = vmatpush1.bf16.msra.mxu0 0
  %64 = vmatprep.subr.bf16.mxu0 0
  %65 = vmatpush1.bf16.msra.mxu0 0
  %66 = vmatprep.mubr.bf16.mxu0 0
  %67 = vmatmul.mubr.bf16.gmra.mrb[0].mxu0 %v28
  %v68 = vpop.f32.mrb[0].mxu0
  %v69 = vadd.f32 %v24, %v68
  %v70 = vpop.f32.mrb[0].mxu0
  %v71 = vpop.f32.mrb[0].mxu0
  %v72 = vadd.f32 %v24, %v71
  %v73 = vpop.f32.mrb[0].mxu0
  %74 = vdwg.mxu0
  %75 = vst [vmem:[%s3] sm:$0xff] %v69
  %76 = vst [vmem:[%s3 + $0x8] sm:$0xff] %v72
  // Predicated region
  $region14: #{transformer2d_forward.36} parent=0 // pred_check
    _
  $region15: #{transformer2d_forward.36} parent=0 // pred_check_branch
    %78 = sbr.rel (0) target = $region17
  $region16: #{transformer2d_forward.36} parent=0 // pred_region
    _
  $region17: #{transformer2d_forward.36} parent=0 // pred_fallthru
    _
  // Predicated region
  $region18: #{transformer2d_forward.36} parent=0 // pred_check
    _
  $region19: #{transformer2d_forward.36} parent=0 // pred_check_branch
    %80 = sbr.rel (0) target = $region21
  $region20: #{transformer2d_forward.36} parent=0 // pred_region
    _
  $region21: #{transformer2d_forward.36} parent=0 // pred_fallthru
    _

// kernel: transformer2d_forward.39
$region0: #{transformer2d_forward.39}
  #allocation0 [shape = 'u32[]', space=smem, size = 0x4, offset = 0x4, fixed_abs, tag = 'smem constant byte address 0x4 - core index']
  #allocation1 [shape = 'u32[144,128]{1,0:T(1,128)}', space=vmem, size = 0x12000, scoped, tag = 'internal scratch']
  %s0 = inlined_call_operand.vmem [shape: f32[16,128], index: 0, kind: input, shape index: {}]
  %s1 = inlined_call_operand.hbm [shape: bf16[128,256], index: 1, kind: input, shape index: {}]
  %s2 = inlined_call_operand.vmem [shape: f32[1,256], index: 2, kind: input, shape index: {}]
  %s3 = inlined_call_operand.vmem [shape: bf16[256,256], index: 3, kind: input, shape index: {}]
  %s4 = inlined_call_operand.vmem [shape: f32[1,256], index: 4, kind: input, shape index: {}]
  %s5 = inlined_call_operand.vmem [shape: bf16[256,256], index: 5, kind: input, shape index: {}]
  %s6 = inlined_call_operand.vmem [shape: f32[1,256], index: 6, kind: input, shape index: {}]
  %s7 = inlined_call_operand.vmem [shape: bf16[256,256], index: 7, kind: input, shape index: {}]
  %s8 = inlined_call_operand.vmem [shape: f32[1,256], index: 8, kind: input, shape index: {}]
  %s9 = inlined_call_operand.hbm [shape: bf16[256,128], index: 9, kind: input, shape index: {}]
  %s10 = inlined_call_operand.vmem [shape: f32[1,128], index: 10, kind: input, shape index: {}]
  %s11 = inlined_call_operand.vmem [shape: f32[16,128], index: 11, kind: output, shape index: {}]
  %s12 = sld [smem:[#allocation0]]
  $region62: #{transformer2d_forward.39} parent=0
    _
  %s14 = ssub.s32 1, %s12
  %s15 = scalar_select 0, %s14, %s12
  $region1: #{transformer2d_forward.39} parent=0
    #allocation2 [shape = 'u8[65536]{0}', space=vmem, size = 0x10000, scoped, tag = 'input window, operand 1, single buffered']
    #allocation3 [shape = 's32[1]{0}', space=sflag, size = 0x4, scoped, tag = 'scoped memory for transformer2d_forward.39']
    #allocation4 [shape = 'u8[65536]{0}', space=vmem, size = 0x10000, scoped, tag = 'input window, operand 9, single buffered']
    #allocation5 [shape = 's32[1]{0}', space=sflag, size = 0x4, scoped, tag = 'scoped memory for transformer2d_forward.39']
    %16 = vsyncpa [#allocation3], 0
    %17 = vsyncpa [#allocation5], 0
    // Predicated region
    $region2: #{transformer2d_forward.39} parent=1 // pred_check
      _
    $region3: #{transformer2d_forward.39} parent=1 // pred_check_branch
      %19 = sbr.rel (0) target = $region5
    $region4: #{transformer2d_forward.39} parent=1 // pred_region
      _
    $region5: #{transformer2d_forward.39} parent=1 // pred_fallthru
      _
    // Predicated region
    $region6: #{transformer2d_forward.39} parent=1 // pred_check
      _
    $region7: #{transformer2d_forward.39} parent=1 // pred_check_branch
      %21 = sbr.rel (0) target = $region9
    $region8: #{transformer2d_forward.39} parent=1 // pred_region
      %s23 = ssub.s32 2048, 2048
      %24 = vsyncadd [#allocation3], %s23
      %s25 = sshll.u32 [#allocation2], 4
      %s26 = int_to_ptr.vmem [resolvable:$true] %s25
      %31 = dma.hbm_to_vmem [thread:$0]  %s1, 2048, %s26, [#allocation3], 128, 128, 8
    $region9: #{transformer2d_forward.39} parent=1 // pred_fallthru
      _
    // Predicated region
    $region10: #{transformer2d_forward.39} parent=1 // pred_check
      _
    $region11: #{transformer2d_forward.39} parent=1 // pred_check_branch
      %33 = sbr.rel (0) target = $region13
    $region12: #{transformer2d_forward.39} parent=1 // pred_region
      _
    $region13: #{transformer2d_forward.39} parent=1 // pred_fallthru
      _
    // Predicated region
    $region14: #{transformer2d_forward.39} parent=1 // pred_check
      _
    $region15: #{transformer2d_forward.39} parent=1 // pred_check_branch
      %35 = sbr.rel (0) target = $region17
    $region16: #{transformer2d_forward.39} parent=1 // pred_region
      _
    $region17: #{transformer2d_forward.39} parent=1 // pred_fallthru
      _
    // Predicated region
    $region18: #{transformer2d_forward.39} parent=1 // pred_check
      _
    $region19: #{transformer2d_forward.39} parent=1 // pred_check_branch
      %37 = sbr.rel (0) target = $region21
    $region20: #{transformer2d_forward.39} parent=1 // pred_region
      _
    $region21: #{transformer2d_forward.39} parent=1 // pred_fallthru
      _
    // Predicated region
    $region22: #{transformer2d_forward.39} parent=1 // pred_check
      _
    $region23: #{transformer2d_forward.39} parent=1 // pred_check_branch
      %39 = sbr.rel (0) target = $region25
    $region24: #{transformer2d_forward.39} parent=1 // pred_region
      _
    $region25: #{transformer2d_forward.39} parent=1 // pred_fallthru
      _
    // Predicated region
    $region26: #{transformer2d_forward.39} parent=1 // pred_check
      _
    $region27: #{transformer2d_forward.39} parent=1 // pred_check_branch
      %41 = sbr.rel (0) target = $region29
    $region28: #{transformer2d_forward.39} parent=1 // pred_region
      _
    $region29: #{transformer2d_forward.39} parent=1 // pred_fallthru
      _
    // Predicated region
    $region30: #{transformer2d_forward.39} parent=1 // pred_check
      _
    $region31: #{transformer2d_forward.39} parent=1 // pred_check_branch
      %43 = sbr.rel (0) target = $region33
    $region32: #{transformer2d_forward.39} parent=1 // pred_region
      _
    $region33: #{transformer2d_forward.39} parent=1 // pred_fallthru
      _
    // Predicated region
    $region34: #{transformer2d_forward.39} parent=1 // pred_check
      _
    $region35: #{transformer2d_forward.39} parent=1 // pred_check_branch
      %45 = sbr.rel (0) target = $region37
    $region36: #{transformer2d_forward.39} parent=1 // pred_region
      _
    $region37: #{transformer2d_forward.39} parent=1 // pred_fallthru
      _
    // Predicated region
    $region38: #{transformer2d_forward.39} parent=1 // pred_check
      _
    $region39: #{transformer2d_forward.39} parent=1 // pred_check_branch
      %47 = sbr.rel (0) target = $region41
    $region40: #{transformer2d_forward.39} parent=1 // pred_region
      %s49 = ssub.s32 2048, 2048
      %50 = vsyncadd [#allocation5], %s49
      %s51 = sshll.u32 [#allocation4], 4
      %s52 = int_to_ptr.vmem [resolvable:$true] %s51
      %57 = dma.hbm_to_vmem [thread:$0]  %s9, 2048, %s52, [#allocation5], 64, 64, 4
    $region41: #{transformer2d_forward.39} parent=1 // pred_fallthru
      _
    // Predicated region
    $region42: #{transformer2d_forward.39} parent=1 // pred_check
      _
    $region43: #{transformer2d_forward.39} parent=1 // pred_check_branch
      %59 = sbr.rel (0) target = $region45
    $region44: #{transformer2d_forward.39} parent=1 // pred_region
      _
    $region45: #{transformer2d_forward.39} parent=1 // pred_fallthru
      _
    // Predicated region
    $region46: #{transformer2d_forward.39} parent=1 // pred_check
      _
    $region47: #{transformer2d_forward.39} parent=1 // pred_check_branch
      %61 = sbr.rel (0) target = $region49
    $region48: #{transformer2d_forward.39} parent=1 // pred_region
      %62 = dma.done [#allocation3], 2048
    $region49: #{transformer2d_forward.39} parent=1 // pred_fallthru
      _
    // Predicated region
    $region50: #{transformer2d_forward.39} parent=1 // pred_check
      _
    $region51: #{transformer2d_forward.39} parent=1 // pred_check_branch
      %64 = sbr.rel (0) target = $region53
    $region52: #{transformer2d_forward.39} parent=1 // pred_region
      %65 = dma.done [#allocation5], 2048
    $region53: #{transformer2d_forward.39} parent=1 // pred_fallthru
      _
    %v67 = vld [vmem:[%s0] sm:$0xff]
    %v68 = vld [vmem:[%s0 + $0x8] sm:$0xff]
    %v69 = vld [vmem:[#allocation2] sm:$0xff]
    %v70 = vld [vmem:[#allocation2 + $0x8] sm:$0xff]
    %v71 = vld [vmem:[#allocation2 + $0x10] sm:$0xff]
    %v72 = vld [vmem:[#allocation2 + $0x18] sm:$0xff]
    %v73 = vld [vmem:[#allocation2 + $0x20] sm:$0xff]
    %v74 = vld [vmem:[#allocation2 + $0x28] sm:$0xff]
    %v75 = vld [vmem:[#allocation2 + $0x30] sm:$0xff]
    %v76 = vld [vmem:[#allocation2 + $0x38] sm:$0xff]
    %v77 = vld [vmem:[#allocation2 + $0x40] sm:$0xff]
    %v78 = vld [vmem:[#allocation2 + $0x48] sm:$0xff]
    %v79 = vld [vmem:[#allocation2 + $0x50] sm:$0xff]
    %v80 = vld [vmem:[#allocation2 + $0x58] sm:$0xff]
    %v81 = vld [vmem:[#allocation2 + $0x60] sm:$0xff]
    %v82 = vld [vmem:[#allocation2 + $0x68] sm:$0xff]
    %v83 = vld [vmem:[#allocation2 + $0x70] sm:$0xff]
    %v84 = vld [vmem:[#allocation2 + $0x78] sm:$0xff]
    %v85 = vld [vmem:[%s2] sm:$0x3]
    %v86 = vpack.c.bf16 %v68, %v67
    %v88 = vlaneseq
    %v89 = vshrl.u32 %v88, 7
    %v90 = vsub.s32 0, %v89
    %v91 = vrot.slane %v85, %v90
    %v92 = vlaneseq
    %v93 = vshrl.u32 %v92, 7
    %v94 = vsub.s32 1, %v93
    %v95 = vrot.slane %v85, %v94
    %v114 = vunpack.c.l.b16 %v69
    %v115 = vunpack.c.h.b16 %v69
    %v116 = vunpack.c.l.b16 %v70
    %v117 = vunpack.c.h.b16 %v70
    %v118 = vunpack.c.l.b16 %v71
    %v119 = vunpack.c.h.b16 %v71
    %v120 = vunpack.c.l.b16 %v72
    %v121 = vunpack.c.h.b16 %v72
    %v122 = vunpack.c.l.b16 %v73
    %v123 = vunpack.c.h.b16 %v73
    %v124 = vunpack.c.l.b16 %v74
    %v125 = vunpack.c.h.b16 %v74
    %v126 = vunpack.c.l.b16 %v75
    %v127 = vunpack.c.h.b16 %v75
    %v128 = vunpack.c.l.b16 %v76
    %v129 = vunpack.c.h.b16 %v76
    %v130 = vunpack.c.l.b16 %v77
    %v131 = vunpack.c.h.b16 %v77
    %v132 = vunpack.c.l.b16 %v78
    %v133 = vunpack.c.h.b16 %v78
    %v134 = vunpack.c.l.b16 %v79
    %v135 = vunpack.c.h.b16 %v79
    %v136 = vunpack.c.l.b16 %v80
    %v137 = vunpack.c.h.b16 %v80
    %v138 = vunpack.c.l.b16 %v81
    %v139 = vunpack.c.h.b16 %v81
    %v140 = vunpack.c.l.b16 %v82
    %v141 = vunpack.c.h.b16 %v82
    %v142 = vunpack.c.l.b16 %v83
    %v143 = vunpack.c.h.b16 %v83
    %v144 = vunpack.c.l.b16 %v84
    %v145 = vunpack.c.h.b16 %v84
    %v146 = vpack.c.b16 %v116, %v114
    %v147 = vpack.c.b16 %v117, %v115
    %v148 = vpack.c.b16 %v120, %v118
    %v149 = vpack.c.b16 %v121, %v119
    %v150 = vpack.c.b16 %v124, %v122
    %v151 = vpack.c.b16 %v125, %v123
    %v152 = vpack.c.b16 %v128, %v126
    %v153 = vpack.c.b16 %v129, %v127
    %v154 = vpack.c.b16 %v132, %v130
    %v155 = vpack.c.b16 %v133, %v131
    %v156 = vpack.c.b16 %v136, %v134
    %v157 = vpack.c.b16 %v137, %v135
    %v158 = vpack.c.b16 %v140, %v138
    %v159 = vpack.c.b16 %v141, %v139
    %v160 = vpack.c.b16 %v144, %v142
    %v161 = vpack.c.b16 %v145, %v143
    %178 = vmatprep.subr.bf16.mxu0 %v147
    %179 = vmatpush1.bf16.msra.mxu0 %v146
    %180 = vmatprep.subr.bf16.mxu0 %v149
    %181 = vmatpush1.bf16.msra.mxu0 %v148
    %182 = vmatprep.subr.bf16.mxu0 %v151
    %183 = vmatpush1.bf16.msra.mxu0 %v150
    %184 = vmatprep.subr.bf16.mxu0 %v153
    %185 = vmatpush1.bf16.msra.mxu0 %v152
    %186 = vmatprep.subr.bf16.mxu0 %v155
    %187 = vmatpush1.bf16.msra.mxu0 %v154
    %188 = vmatprep.subr.bf16.mxu0 %v157
    %189 = vmatpush1.bf16.msra.mxu0 %v156
    %190 = vmatprep.subr.bf16.mxu0 %v159
    %191 = vmatpush1.bf16.msra.mxu0 %v158
    %192 = vmatprep.subr.bf16.mxu0 %v161
    %193 = vmatpush1.bf16.msra.mxu0 %v160
    %194 = vmatprep.subr.bf16.mxu0 0
    %195 = vmatpush1.bf16.msra.mxu0 0
    %196 = vmatprep.subr.bf16.mxu0 0
    %197 = vmatpush1.bf16.msra.mxu0 0
    %198 = vmatprep.subr.bf16.mxu0 0
    %199 = vmatpush1.bf16.msra.mxu0 0
    %200 = vmatprep.subr.bf16.mxu0 0
    %201 = vmatpush1.bf16.msra.mxu0 0
    %202 = vmatprep.subr.bf16.mxu0 0
    %203 = vmatpush1.bf16.msra.mxu0 0
    %204 = vmatprep.subr.bf16.mxu0 0
    %205 = vmatpush1.bf16.msra.mxu0 0
    %206 = vmatprep.subr.bf16.mxu0 0
    %207 = vmatpush1.bf16.msra.mxu0 0
    %208 = vmatprep.subr.bf16.mxu0 0
    %209 = vmatpush1.bf16.msra.mxu0 0
    %210 = vmatprep.mubr.bf16.mxu0 0
    %211 = vmatmul.mubr.bf16.gmra.mrb[0].mxu0 %v86
    %v212 = vpop.f32.mrb[0].mxu0
    %v213 = vadd.f32 %v91, %v212
    %v214 = vpop.f32.mrb[0].mxu0
    %v215 = vadd.f32 %v95, %v214
    %v216 = vpop.f32.mrb[0].mxu0
    %v217 = vadd.f32 %v91, %v216
    %v218 = vpop.f32.mrb[0].mxu0
    %v219 = vadd.f32 %v95, %v218
    %220 = vdwg.mxu0
    %v221 = vmax.f32 %v213, 0.0
    %v222 = vmax.f32 %v215, 0.0
    %v223 = vmax.f32 %v217, 0.0
    %v224 = vmax.f32 %v219, 0.0
    %v225 = vld [vmem:[%s3] sm:$0xff]
    %v226 = vld [vmem:[%s3 + $0x8] sm:$0xff]
    %v227 = vld [vmem:[%s3 + $0x10] sm:$0xff]
    %v228 = vld [vmem:[%s3 + $0x18] sm:$0xff]
    %v229 = vld [vmem:[%s3 + $0x20] sm:$0xff]
    %v230 = vld [vmem:[%s3 + $0x28] sm:$0xff]
    %v231 = vld [vmem:[%s3 + $0x30] sm:$0xff]
    %v232 = vld [vmem:[%s3 + $0x38] sm:$0xff]
    %v233 = vld [vmem:[%s3 + $0x40] sm:$0xff]
    %v234 = vld [vmem:[%s3 + $0x48] sm:$0xff]
    %v235 = vld [vmem:[%s3 + $0x50] sm:$0xff]
    %v236 = vld [vmem:[%s3 + $0x58] sm:$0xff]
    %v237 = vld [vmem:[%s3 + $0x60] sm:$0xff]
    %v238 = vld [vmem:[%s3 + $0x68] sm:$0xff]
    %v239 = vld [vmem:[%s3 + $0x70] sm:$0xff]
    %v240 = vld [vmem:[%s3 + $0x78] sm:$0xff]
    %v241 = vld [vmem:[%s3 + $0x80] sm:$0xff]
    %v242 = vld [vmem:[%s3 + $0x88] sm:$0xff]
    %v243 = vld [vmem:[%s3 + $0x90] sm:$0xff]
    %v244 = vld [vmem:[%s3 + $0x98] sm:$0xff]
    %v245 = vld [vmem:[%s3 + $0xa0] sm:$0xff]
    %v246 = vld [vmem:[%s3 + $0xa8] sm:$0xff]
    %v247 = vld [vmem:[%s3 + $0xb0] sm:$0xff]
    %v248 = vld [vmem:[%s3 + $0xb8] sm:$0xff]
    %v249 = vld [vmem:[%s3 + $0xc0] sm:$0xff]
    %v250 = vld [vmem:[%s3 + $0xc8] sm:$0xff]
    %v251 = vld [vmem:[%s3 + $0xd0] sm:$0xff]
    %v252 = vld [vmem:[%s3 + $0xd8] sm:$0xff]
    %v253 = vld [vmem:[%s3 + $0xe0] sm:$0xff]
    %v254 = vld [vmem:[%s3 + $0xe8] sm:$0xff]
    %v255 = vld [vmem:[%s3 + $0xf0] sm:$0xff]
    %v256 = vld [vmem:[%s3 + $0xf8] sm:$0xff]
    %v257 = vld [vmem:[%s4] sm:$0x3]
    %v258 = vpack.c.bf16 %v223, %v221
    %v259 = vpack.c.bf16 %v224, %v222
    %v261 = vlaneseq
    %v262 = vshrl.u32 %v261, 7
    %v263 = vsub.s32 0, %v262
    %v264 = vrot.slane %v257, %v263
    %v265 = vlaneseq
    %v266 = vshrl.u32 %v265, 7
    %v267 = vsub.s32 1, %v266
    %v268 = vrot.slane %v257, %v267
    %v303 = vunpack.c.l.b16 %v225
    %v304 = vunpack.c.h.b16 %v225
    %v305 = vunpack.c.l.b16 %v226
    %v306 = vunpack.c.h.b16 %v226
    %v307 = vunpack.c.l.b16 %v227
    %v308 = vunpack.c.h.b16 %v227
    %v309 = vunpack.c.l.b16 %v228
    %v310 = vunpack.c.h.b16 %v228
    %v311 = vunpack.c.l.b16 %v229
    %v312 = vunpack.c.h.b16 %v229
    %v313 = vunpack.c.l.b16 %v230
    %v314 = vunpack.c.h.b16 %v230
    %v315 = vunpack.c.l.b16 %v231
    %v316 = vunpack.c.h.b16 %v231
    %v317 = vunpack.c.l.b16 %v232
    %v318 = vunpack.c.h.b16 %v232
    %v319 = vunpack.c.l.b16 %v233
    %v320 = vunpack.c.h.b16 %v233
    %v321 = vunpack.c.l.b16 %v234
    %v322 = vunpack.c.h.b16 %v234
    %v323 = vunpack.c.l.b16 %v235
    %v324 = vunpack.c.h.b16 %v235
    %v325 = vunpack.c.l.b16 %v236
    %v326 = vunpack.c.h.b16 %v236
    %v327 = vunpack.c.l.b16 %v237
    %v328 = vunpack.c.h.b16 %v237
    %v329 = vunpack.c.l.b16 %v238
    %v330 = vunpack.c.h.b16 %v238
    %v331 = vunpack.c.l.b16 %v239
    %v332 = vunpack.c.h.b16 %v239
    %v333 = vunpack.c.l.b16 %v240
    %v334 = vunpack.c.h.b16 %v240
    %v335 = vunpack.c.l.b16 %v241
    %v336 = vunpack.c.h.b16 %v241
    %v337 = vunpack.c.l.b16 %v242
    %v338 = vunpack.c.h.b16 %v242
    %v339 = vunpack.c.l.b16 %v243
    %v340 = vunpack.c.h.b16 %v243
    %v341 = vunpack.c.l.b16 %v244
    %v342 = vunpack.c.h.b16 %v244
    %v343 = vunpack.c.l.b16 %v245
    %v344 = vunpack.c.h.b16 %v245
    %v345 = vunpack.c.l.b16 %v246
    %v346 = vunpack.c.h.b16 %v246
    %v347 = vunpack.c.l.b16 %v247
    %v348 = vunpack.c.h.b16 %v247
    %v349 = vunpack.c.l.b16 %v248
    %v350 = vunpack.c.h.b16 %v248
    %v351 = vunpack.c.l.b16 %v249
    %v352 = vunpack.c.h.b16 %v249
    %v353 = vunpack.c.l.b16 %v250
    %v354 = vunpack.c.h.b16 %v250
    %v355 = vunpack.c.l.b16 %v251
    %v356 = vunpack.c.h.b16 %v251
    %v357 = vunpack.c.l.b16 %v252
    %v358 = vunpack.c.h.b16 %v252
    %v359 = vunpack.c.l.b16 %v253
    %v360 = vunpack.c.h.b16 %v253
    %v361 = vunpack.c.l.b16 %v254
    %v362 = vunpack.c.h.b16 %v254
    %v363 = vunpack.c.l.b16 %v255
    %v364 = vunpack.c.h.b16 %v255
    %v365 = vunpack.c.l.b16 %v256
    %v366 = vunpack.c.h.b16 %v256
    %v367 = vpack.c.b16 %v305, %v303
    %v368 = vpack.c.b16 %v306, %v304
    %v369 = vpack.c.b16 %v309, %v307
    %v370 = vpack.c.b16 %v310, %v308
    %v371 = vpack.c.b16 %v313, %v311
    %v372 = vpack.c.b16 %v314, %v312
    %v373 = vpack.c.b16 %v317, %v315
    %v374 = vpack.c.b16 %v318, %v316
    %v375 = vpack.c.b16 %v321, %v319
    %v376 = vpack.c.b16 %v322, %v320
    %v377 = vpack.c.b16 %v325, %v323
    %v378 = vpack.c.b16 %v326, %v324
    %v379 = vpack.c.b16 %v329, %v327
    %v380 = vpack.c.b16 %v330, %v328
    %v381 = vpack.c.b16 %v333, %v331
    %v382 = vpack.c.b16 %v334, %v332
    %v383 = vpack.c.b16 %v337, %v335
    %v384 = vpack.c.b16 %v338, %v336
    %v385 = vpack.c.b16 %v341, %v339
    %v386 = vpack.c.b16 %v342, %v340
    %v387 = vpack.c.b16 %v345, %v343
    %v388 = vpack.c.b16 %v346, %v344
    %v389 = vpack.c.b16 %v349, %v347
    %v390 = vpack.c.b16 %v350, %v348
    %v391 = vpack.c.b16 %v353, %v351
    %v392 = vpack.c.b16 %v354, %v352
    %v393 = vpack.c.b16 %v357, %v355
    %v394 = vpack.c.b16 %v358, %v356
    %v395 = vpack.c.b16 %v361, %v359
    %v396 = vpack.c.b16 %v362, %v360
    %v397 = vpack.c.b16 %v365, %v363
    %v398 = vpack.c.b16 %v366, %v364
    %431 = vmatprep.subr.bf16.mxu0 %v368
    %432 = vmatpush1.bf16.msra.mxu0 %v367
    %433 = vmatprep.subr.bf16.mxu0 %v370
    %434 = vmatpush1.bf16.msra.mxu0 %v369
    %435 = vmatprep.subr.bf16.mxu0 %v372
    %436 = vmatpush1.bf16.msra.mxu0 %v371
    %437 = vmatprep.subr.bf16.mxu0 %v374
    %438 = vmatpush1.bf16.msra.mxu0 %v373
    %439 = vmatprep.subr.bf16.mxu0 %v376
    %440 = vmatpush1.bf16.msra.mxu0 %v375
    %441 = vmatprep.subr.bf16.mxu0 %v378
    %442 = vmatpush1.bf16.msra.mxu0 %v377
    %443 = vmatprep.subr.bf16.mxu0 %v380
    %444 = vmatpush1.bf16.msra.mxu0 %v379
    %445 = vmatprep.subr.bf16.mxu0 %v382
    %446 = vmatpush1.bf16.msra.mxu0 %v381
    %447 = vmatprep.subr.bf16.mxu0 %v384
    %448 = vmatpush1.bf16.msra.mxu0 %v383
    %449 = vmatprep.subr.bf16.mxu0 %v386
    %450 = vmatpush1.bf16.msra.mxu0 %v385
    %451 = vmatprep.subr.bf16.mxu0 %v388
    %452 = vmatpush1.bf16.msra.mxu0 %v387
    %453 = vmatprep.subr.bf16.mxu0 %v390
    %454 = vmatpush1.bf16.msra.mxu0 %v389
    %455 = vmatprep.subr.bf16.mxu0 %v392
    %456 = vmatpush1.bf16.msra.mxu0 %v391
    %457 = vmatprep.subr.bf16.mxu0 %v394
    %458 = vmatpush1.bf16.msra.mxu0 %v393
    %459 = vmatprep.subr.bf16.mxu0 %v396
    %460 = vmatpush1.bf16.msra.mxu0 %v395
    %461 = vmatprep.subr.bf16.mxu0 %v398
    %462 = vmatpush1.bf16.msra.mxu0 %v397
    %463 = vmatprep.mubr.bf16.mxu0 %v259
    %464 = vmatmul.mubr.bf16.gmra.mrb[0].mxu0 %v258
    %v465 = vpop.f32.mrb[0].mxu0
    %v466 = vadd.f32 %v264, %v465
    %v467 = vpop.f32.mrb[0].mxu0
    %v468 = vadd.f32 %v268, %v467
    %v469 = vpop.f32.mrb[0].mxu0
    %v470 = vadd.f32 %v264, %v469
    %v471 = vpop.f32.mrb[0].mxu0
    %v472 = vadd.f32 %v268, %v471
    %473 = vdwg.mxu0
    %v474 = vmax.f32 %v466, 0.0
    %v475 = vmax.f32 %v468, 0.0
    %v476 = vmax.f32 %v470, 0.0
    %v477 = vmax.f32 %v472, 0.0
    %v478 = vld [vmem:[%s5] sm:$0xff]
    %v479 = vld [vmem:[%s5 + $0x8] sm:$0xff]
    %v480 = vld [vmem:[%s5 + $0x10] sm:$0xff]
    %v481 = vld [vmem:[%s5 + $0x18] sm:$0xff]
    %v482 = vld [vmem:[%s5 + $0x20] sm:$0xff]
    %v483 = vld [vmem:[%s5 + $0x28] sm:$0xff]
    %v484 = vld [vmem:[%s5 + $0x30] sm:$0xff]
    %v485 = vld [vmem:[%s5 + $0x38] sm:$0xff]
    %v486 = vld [vmem:[%s5 + $0x40] sm:$0xff]
    %v487 = vld [vmem:[%s5 + $0x48] sm:$0xff]
    %v488 = vld [vmem:[%s5 + $0x50] sm:$0xff]
    %v489 = vld [vmem:[%s5 + $0x58] sm:$0xff]
    %v490 = vld [vmem:[%s5 + $0x60] sm:$0xff]
    %v491 = vld [vmem:[%s5 + $0x68] sm:$0xff]
    %v492 = vld [vmem:[%s5 + $0x70] sm:$0xff]
    %v493 = vld [vmem:[%s5 + $0x78] sm:$0xff]
    %v494 = vld [vmem:[%s5 + $0x80] sm:$0xff]
    %v495 = vld [vmem:[%s5 + $0x88] sm:$0xff]
    %v496 = vld [vmem:[%s5 + $0x90] sm:$0xff]
    %v497 = vld [vmem:[%s5 + $0x98] sm:$0xff]
    %v498 = vld [vmem:[%s5 + $0xa0] sm:$0xff]
    %v499 = vld [vmem:[%s5 + $0xa8] sm:$0xff]
    %v500 = vld [vmem:[%s5 + $0xb0] sm:$0xff]
    %v501 = vld [vmem:[%s5 + $0xb8] sm:$0xff]
    %v502 = vld [vmem:[%s5 + $0xc0] sm:$0xff]
    %v503 = vld [vmem:[%s5 + $0xc8] sm:$0xff]
    %v504 = vld [vmem:[%s5 + $0xd0] sm:$0xff]
    %v505 = vld [vmem:[%s5 + $0xd8] sm:$0xff]
    %v506 = vld [vmem:[%s5 + $0xe0] sm:$0xff]
    %v507 = vld [vmem:[%s5 + $0xe8] sm:$0xff]
    %v508 = vld [vmem:[%s5 + $0xf0] sm:$0xff]
    %v509 = vld [vmem:[%s5 + $0xf8] sm:$0xff]
    %v510 = vld [vmem:[%s6] sm:$0x3]
    %v511 = vpack.c.bf16 %v476, %v474
    %v512 = vpack.c.bf16 %v477, %v475
    %v514 = vlaneseq
    %v515 = vshrl.u32 %v514, 7
    %v516 = vsub.s32 0, %v515
    %v517 = vrot.slane %v510, %v516
    %v518 = vlaneseq
    %v519 = vshrl.u32 %v518, 7
    %v520 = vsub.s32 1, %v519
    %v521 = vrot.slane %v510, %v520
    %v556 = vunpack.c.l.b16 %v478
    %v557 = vunpack.c.h.b16 %v478
    %v558 = vunpack.c.l.b16 %v479
    %v559 = vunpack.c.h.b16 %v479
    %v560 = vunpack.c.l.b16 %v480
    %v561 = vunpack.c.h.b16 %v480
    %v562 = vunpack.c.l.b16 %v481
    %v563 = vunpack.c.h.b16 %v481
    %v564 = vunpack.c.l.b16 %v482
    %v565 = vunpack.c.h.b16 %v482
    %v566 = vunpack.c.l.b16 %v483
    %v567 = vunpack.c.h.b16 %v483
    %v568 = vunpack.c.l.b16 %v484
    %v569 = vunpack.c.h.b16 %v484
    %v570 = vunpack.c.l.b16 %v485
    %v571 = vunpack.c.h.b16 %v485
    %v572 = vunpack.c.l.b16 %v486
    %v573 = vunpack.c.h.b16 %v486
    %v574 = vunpack.c.l.b16 %v487
    %v575 = vunpack.c.h.b16 %v487
    %v576 = vunpack.c.l.b16 %v488
    %v577 = vunpack.c.h.b16 %v488
    %v578 = vunpack.c.l.b16 %v489
    %v579 = vunpack.c.h.b16 %v489
    %v580 = vunpack.c.l.b16 %v490
    %v581 = vunpack.c.h.b16 %v490
    %v582 = vunpack.c.l.b16 %v491
    %v583 = vunpack.c.h.b16 %v491
    %v584 = vunpack.c.l.b16 %v492
    %v585 = vunpack.c.h.b16 %v492
    %v586 = vunpack.c.l.b16 %v493
    %v587 = vunpack.c.h.b16 %v493
    %v588 = vunpack.c.l.b16 %v494
    %v589 = vunpack.c.h.b16 %v494
    %v590 = vunpack.c.l.b16 %v495
    %v591 = vunpack.c.h.b16 %v495
    %v592 = vunpack.c.l.b16 %v496
    %v593 = vunpack.c.h.b16 %v496
    %v594 = vunpack.c.l.b16 %v497
    %v595 = vunpack.c.h.b16 %v497
    %v596 = vunpack.c.l.b16 %v498
    %v597 = vunpack.c.h.b16 %v498
    %v598 = vunpack.c.l.b16 %v499
    %v599 = vunpack.c.h.b16 %v499
    %v600 = vunpack.c.l.b16 %v500
    %v601 = vunpack.c.h.b16 %v500
    %v602 = vunpack.c.l.b16 %v501
    %v603 = vunpack.c.h.b16 %v501
    %v604 = vunpack.c.l.b16 %v502
    %v605 = vunpack.c.h.b16 %v502
    %v606 = vunpack.c.l.b16 %v503
    %v607 = vunpack.c.h.b16 %v503
    %v608 = vunpack.c.l.b16 %v504
    %v609 = vunpack.c.h.b16 %v504
    %v610 = vunpack.c.l.b16 %v505
    %v611 = vunpack.c.h.b16 %v505
    %v612 = vunpack.c.l.b16 %v506
    %v613 = vunpack.c.h.b16 %v506
    %v614 = vunpack.c.l.b16 %v507
    %v615 = vunpack.c.h.b16 %v507
    %v616 = vunpack.c.l.b16 %v508
    %v617 = vunpack.c.h.b16 %v508
    %v618 = vunpack.c.l.b16 %v509
    %v619 = vunpack.c.h.b16 %v509
    %v620 = vpack.c.b16 %v558, %v556
    %v621 = vpack.c.b16 %v559, %v557
    %v622 = vpack.c.b16 %v562, %v560
    %v623 = vpack.c.b16 %v563, %v561
    %v624 = vpack.c.b16 %v566, %v564
    %v625 = vpack.c.b16 %v567, %v565
    %v626 = vpack.c.b16 %v570, %v568
    %v627 = vpack.c.b16 %v571, %v569
    %v628 = vpack.c.b16 %v574, %v572
    %v629 = vpack.c.b16 %v575, %v573
    %v630 = vpack.c.b16 %v578, %v576
    %v631 = vpack.c.b16 %v579, %v577
    %v632 = vpack.c.b16 %v582, %v580
    %v633 = vpack.c.b16 %v583, %v581
    %v634 = vpack.c.b16 %v586, %v584
    %v635 = vpack.c.b16 %v587, %v585
    %v636 = vpack.c.b16 %v590, %v588
    %v637 = vpack.c.b16 %v591, %v589
    %v638 = vpack.c.b16 %v594, %v592
    %v639 = vpack.c.b16 %v595, %v593
    %v640 = vpack.c.b16 %v598, %v596
    %v641 = vpack.c.b16 %v599, %v597
    %v642 = vpack.c.b16 %v602, %v600
    %v643 = vpack.c.b16 %v603, %v601
    %v644 = vpack.c.b16 %v606, %v604
    %v645 = vpack.c.b16 %v607, %v605
    %v646 = vpack.c.b16 %v610, %v608
    %v647 = vpack.c.b16 %v611, %v609
    %v648 = vpack.c.b16 %v614, %v612
    %v649 = vpack.c.b16 %v615, %v613
    %v650 = vpack.c.b16 %v618, %v616
    %v651 = vpack.c.b16 %v619, %v617
    %684 = vmatprep.subr.bf16.mxu0 %v621
    %685 = vmatpush1.bf16.msra.mxu0 %v620
    %686 = vmatprep.subr.bf16.mxu0 %v623
    %687 = vmatpush1.bf16.msra.mxu0 %v622
    %688 = vmatprep.subr.bf16.mxu0 %v625
    %689 = vmatpush1.bf16.msra.mxu0 %v624
    %690 = vmatprep.subr.bf16.mxu0 %v627
    %691 = vmatpush1.bf16.msra.mxu0 %v626
    %692 = vmatprep.subr.bf16.mxu0 %v629
    %693 = vmatpush1.bf16.msra.mxu0 %v628
    %694 = vmatprep.subr.bf16.mxu0 %v631
    %695 = vmatpush1.bf16.msra.mxu0 %v630
    %696 = vmatprep.subr.bf16.mxu0 %v633
    %697 = vmatpush1.bf16.msra.mxu0 %v632
    %698 = vmatprep.subr.bf16.mxu0 %v635
    %699 = vmatpush1.bf16.msra.mxu0 %v634
    %700 = vmatprep.subr.bf16.mxu0 %v637
    %701 = vmatpush1.bf16.msra.mxu0 %v636
    %702 = vmatprep.subr.bf16.mxu0 %v639
    %703 = vmatpush1.bf16.msra.mxu0 %v638
    %704 = vmatprep.subr.bf16.mxu0 %v641
    %705 = vmatpush1.bf16.msra.mxu0 %v640
    %706 = vmatprep.subr.bf16.mxu0 %v643
    %707 = vmatpush1.bf16.msra.mxu0 %v642
    %708 = vmatprep.subr.bf16.mxu0 %v645
    %709 = vmatpush1.bf16.msra.mxu0 %v644
    %710 = vmatprep.subr.bf16.mxu0 %v647
    %711 = vmatpush1.bf16.msra.mxu0 %v646
    %712 = vmatprep.subr.bf16.mxu0 %v649
    %713 = vmatpush1.bf16.msra.mxu0 %v648
    %714 = vmatprep.subr.bf16.mxu0 %v651
    %715 = vmatpush1.bf16.msra.mxu0 %v650
    %716 = vmatprep.mubr.bf16.mxu0 %v512
    %717 = vmatmul.mubr.bf16.gmra.mrb[0].mxu0 %v511
    %v718 = vpop.f32.mrb[0].mxu0
    %v719 = vadd.f32 %v517, %v718
    %v720 = vpop.f32.mrb[0].mxu0
    %v721 = vadd.f32 %v521, %v720
    %v722 = vpop.f32.mrb[0].mxu0
    %v723 = vadd.f32 %v517, %v722
    %v724 = vpop.f32.mrb[0].mxu0
    %v725 = vadd.f32 %v521, %v724
    %726 = vdwg.mxu0
    %v727 = vmax.f32 %v719, 0.0
    %v728 = vmax.f32 %v721, 0.0
    %v729 = vmax.f32 %v723, 0.0
    %v730 = vmax.f32 %v725, 0.0
    %v731 = vld [vmem:[%s7] sm:$0xff]
    %v732 = vld [vmem:[%s7 + $0x8] sm:$0xff]
    %v733 = vld [vmem:[%s7 + $0x10] sm:$0xff]
    %v734 = vld [vmem:[%s7 + $0x18] sm:$0xff]
    %v735 = vld [vmem:[%s7 + $0x20] sm:$0xff]
    %v736 = vld [vmem:[%s7 + $0x28] sm:$0xff]
    %v737 = vld [vmem:[%s7 + $0x30] sm:$0xff]
    %v738 = vld [vmem:[%s7 + $0x38] sm:$0xff]
    %v739 = vld [vmem:[%s7 + $0x40] sm:$0xff]
    %v740 = vld [vmem:[%s7 + $0x48] sm:$0xff]
    %v741 = vld [vmem:[%s7 + $0x50] sm:$0xff]
    %v742 = vld [vmem:[%s7 + $0x58] sm:$0xff]
    %v743 = vld [vmem:[%s7 + $0x60] sm:$0xff]
    %v744 = vld [vmem:[%s7 + $0x68] sm:$0xff]
    %v745 = vld [vmem:[%s7 + $0x70] sm:$0xff]
    %v746 = vld [vmem:[%s7 + $0x78] sm:$0xff]
    %v747 = vld [vmem:[%s7 + $0x80] sm:$0xff]
    %v748 = vld [vmem:[%s7 + $0x88] sm:$0xff]
    %v749 = vld [vmem:[%s7 + $0x90] sm:$0xff]
    %v750 = vld [vmem:[%s7 + $0x98] sm:$0xff]
    %v751 = vld [vmem:[%s7 + $0xa0] sm:$0xff]
    %v752 = vld [vmem:[%s7 + $0xa8] sm:$0xff]
    %v753 = vld [vmem:[%s7 + $0xb0] sm:$0xff]
    %v754 = vld [vmem:[%s7 + $0xb8] sm:$0xff]
    %v755 = vld [vmem:[%s7 + $0xc0] sm:$0xff]
    %v756 = vld [vmem:[%s7 + $0xc8] sm:$0xff]
    %v757 = vld [vmem:[%s7 + $0xd0] sm:$0xff]
    %v758 = vld [vmem:[%s7 + $0xd8] sm:$0xff]
    %v759 = vld [vmem:[%s7 + $0xe0] sm:$0xff]
    %v760 = vld [vmem:[%s7 + $0xe8] sm:$0xff]
    %v761 = vld [vmem:[%s7 + $0xf0] sm:$0xff]
    %v762 = vld [vmem:[%s7 + $0xf8] sm:$0xff]
    %v763 = vld [vmem:[%s8] sm:$0x3]
    %v764 = vpack.c.bf16 %v729, %v727
    %v765 = vpack.c.bf16 %v730, %v728
    %v767 = vlaneseq
    %v768 = vshrl.u32 %v767, 7
    %v769 = vsub.s32 0, %v768
    %v770 = vrot.slane %v763, %v769
    %v771 = vlaneseq
    %v772 = vshrl.u32 %v771, 7
    %v773 = vsub.s32 1, %v772
    %v774 = vrot.slane %v763, %v773
    %v809 = vunpack.c.l.b16 %v731
    %v810 = vunpack.c.h.b16 %v731
    %v811 = vunpack.c.l.b16 %v732
    %v812 = vunpack.c.h.b16 %v732
    %v813 = vunpack.c.l.b16 %v733
    %v814 = vunpack.c.h.b16 %v733
    %v815 = vunpack.c.l.b16 %v734
    %v816 = vunpack.c.h.b16 %v734
    %v817 = vunpack.c.l.b16 %v735
    %v818 = vunpack.c.h.b16 %v735
    %v819 = vunpack.c.l.b16 %v736
    %v820 = vunpack.c.h.b16 %v736
    %v821 = vunpack.c.l.b16 %v737
    %v822 = vunpack.c.h.b16 %v737
    %v823 = vunpack.c.l.b16 %v738
    %v824 = vunpack.c.h.b16 %v738
    %v825 = vunpack.c.l.b16 %v739
    %v826 = vunpack.c.h.b16 %v739
    %v827 = vunpack.c.l.b16 %v740
    %v828 = vunpack.c.h.b16 %v740
    %v829 = vunpack.c.l.b16 %v741
    %v830 = vunpack.c.h.b16 %v741
    %v831 = vunpack.c.l.b16 %v742
    %v832 = vunpack.c.h.b16 %v742
    %v833 = vunpack.c.l.b16 %v743
    %v834 = vunpack.c.h.b16 %v743
    %v835 = vunpack.c.l.b16 %v744
    %v836 = vunpack.c.h.b16 %v744
    %v837 = vunpack.c.l.b16 %v745
    %v838 = vunpack.c.h.b16 %v745
    %v839 = vunpack.c.l.b16 %v746
    %v840 = vunpack.c.h.b16 %v746
    %v841 = vunpack.c.l.b16 %v747
    %v842 = vunpack.c.h.b16 %v747
    %v843 = vunpack.c.l.b16 %v748
    %v844 = vunpack.c.h.b16 %v748
    %v845 = vunpack.c.l.b16 %v749
    %v846 = vunpack.c.h.b16 %v749
    %v847 = vunpack.c.l.b16 %v750
    %v848 = vunpack.c.h.b16 %v750
    %v849 = vunpack.c.l.b16 %v751
    %v850 = vunpack.c.h.b16 %v751
    %v851 = vunpack.c.l.b16 %v752
    %v852 = vunpack.c.h.b16 %v752
    %v853 = vunpack.c.l.b16 %v753
    %v854 = vunpack.c.h.b16 %v753
    %v855 = vunpack.c.l.b16 %v754
    %v856 = vunpack.c.h.b16 %v754
    %v857 = vunpack.c.l.b16 %v755
    %v858 = vunpack.c.h.b16 %v755
    %v859 = vunpack.c.l.b16 %v756
    %v860 = vunpack.c.h.b16 %v756
    %v861 = vunpack.c.l.b16 %v757
    %v862 = vunpack.c.h.b16 %v757
    %v863 = vunpack.c.l.b16 %v758
    %v864 = vunpack.c.h.b16 %v758
    %v865 = vunpack.c.l.b16 %v759
    %v866 = vunpack.c.h.b16 %v759
    %v867 = vunpack.c.l.b16 %v760
    %v868 = vunpack.c.h.b16 %v760
    %v869 = vunpack.c.l.b16 %v761
    %v870 = vunpack.c.h.b16 %v761
    %v871 = vunpack.c.l.b16 %v762
    %v872 = vunpack.c.h.b16 %v762
    %v873 = vpack.c.b16 %v811, %v809
    %v874 = vpack.c.b16 %v812, %v810
    %v875 = vpack.c.b16 %v815, %v813
    %v876 = vpack.c.b16 %v816, %v814
    %v877 = vpack.c.b16 %v819, %v817
    %v878 = vpack.c.b16 %v820, %v818
    %v879 = vpack.c.b16 %v823, %v821
    %v880 = vpack.c.b16 %v824, %v822
    %v881 = vpack.c.b16 %v827, %v825
    %v882 = vpack.c.b16 %v828, %v826
    %v883 = vpack.c.b16 %v831, %v829
    %v884 = vpack.c.b16 %v832, %v830
    %v885 = vpack.c.b16 %v835, %v833
    %v886 = vpack.c.b16 %v836, %v834
    %v887 = vpack.c.b16 %v839, %v837
    %v888 = vpack.c.b16 %v840, %v838
    %v889 = vpack.c.b16 %v843, %v841
    %v890 = vpack.c.b16 %v844, %v842
    %v891 = vpack.c.b16 %v847, %v845
    %v892 = vpack.c.b16 %v848, %v846
    %v893 = vpack.c.b16 %v851, %v849
    %v894 = vpack.c.b16 %v852, %v850
    %v895 = vpack.c.b16 %v855, %v853
    %v896 = vpack.c.b16 %v856, %v854
    %v897 = vpack.c.b16 %v859, %v857
    %v898 = vpack.c.b16 %v860, %v858
    %v899 = vpack.c.b16 %v863, %v861
    %v900 = vpack.c.b16 %v864, %v862
    %v901 = vpack.c.b16 %v867, %v865
    %v902 = vpack.c.b16 %v868, %v866
    %v903 = vpack.c.b16 %v871, %v869
    %v904 = vpack.c.b16 %v872, %v870
    %937 = vmatprep.subr.bf16.mxu0 %v874
    %938 = vmatpush1.bf16.msra.mxu0 %v873
    %939 = vmatprep.subr.bf16.mxu0 %v876
    %940 = vmatpush1.bf16.msra.mxu0 %v875
    %941 = vmatprep.subr.bf16.mxu0 %v878
    %942 = vmatpush1.bf16.msra.mxu0 %v877
    %943 = vmatprep.subr.bf16.mxu0 %v880
    %944 = vmatpush1.bf16.msra.mxu0 %v879
    %945 = vmatprep.subr.bf16.mxu0 %v882
    %946 = vmatpush1.bf16.msra.mxu0 %v881
    %947 = vmatprep.subr.bf16.mxu0 %v884
    %948 = vmatpush1.bf16.msra.mxu0 %v883
    %949 = vmatprep.subr.bf16.mxu0 %v886
    %950 = vmatpush1.bf16.msra.mxu0 %v885
    %951 = vmatprep.subr.bf16.mxu0 %v888
    %952 = vmatpush1.bf16.msra.mxu0 %v887
    %953 = vmatprep.subr.bf16.mxu0 %v890
    %954 = vmatpush1.bf16.msra.mxu0 %v889
    %955 = vmatprep.subr.bf16.mxu0 %v892
    %956 = vmatpush1.bf16.msra.mxu0 %v891
    %957 = vmatprep.subr.bf16.mxu0 %v894
    %958 = vmatpush1.bf16.msra.mxu0 %v893
    %959 = vmatprep.subr.bf16.mxu0 %v896
    %960 = vmatpush1.bf16.msra.mxu0 %v895
    %961 = vmatprep.subr.bf16.mxu0 %v898
    %962 = vmatpush1.bf16.msra.mxu0 %v897
    %963 = vmatprep.subr.bf16.mxu0 %v900
    %964 = vmatpush1.bf16.msra.mxu0 %v899
    %965 = vmatprep.subr.bf16.mxu0 %v902
    %966 = vmatpush1.bf16.msra.mxu0 %v901
    %967 = vmatprep.subr.bf16.mxu0 %v904
    %968 = vmatpush1.bf16.msra.mxu0 %v903
    %969 = vmatprep.mubr.bf16.mxu0 %v765
    %970 = vmatmul.mubr.bf16.gmra.mrb[0].mxu0 %v764
    %v971 = vpop.f32.mrb[0].mxu0
    %v972 = vadd.f32 %v770, %v971
    %v973 = vpop.f32.mrb[0].mxu0
    %v974 = vadd.f32 %v774, %v973
    %v975 = vpop.f32.mrb[0].mxu0
    %v976 = vadd.f32 %v770, %v975
    %v977 = vpop.f32.mrb[0].mxu0
    %v978 = vadd.f32 %v774, %v977
    %979 = vdwg.mxu0
    %v980 = vmax.f32 %v972, 0.0
    %v981 = vmax.f32 %v974, 0.0
    %v982 = vmax.f32 %v976, 0.0
    %v983 = vmax.f32 %v978, 0.0
    %v984 = vld [vmem:[#allocation4] sm:$0xf]
    %v985 = vld [vmem:[#allocation4 + $0x4] sm:$0xf]
    %v986 = vld [vmem:[#allocation4 + $0x8] sm:$0xf]
    %v987 = vld [vmem:[#allocation4 + $0xc] sm:$0xf]
    %v988 = vld [vmem:[#allocation4 + $0x10] sm:$0xf]
    %v989 = vld [vmem:[#allocation4 + $0x14] sm:$0xf]
    %v990 = vld [vmem:[#allocation4 + $0x18] sm:$0xf]
    %v991 = vld [vmem:[#allocation4 + $0x1c] sm:$0xf]
    %v992 = vld [vmem:[#allocation4 + $0x20] sm:$0xf]
    %v993 = vld [vmem:[#allocation4 + $0x24] sm:$0xf]
    %v994 = vld [vmem:[#allocation4 + $0x28] sm:$0xf]
    %v995 = vld [vmem:[#allocation4 + $0x2c] sm:$0xf]
    %v996 = vld [vmem:[#allocation4 + $0x30] sm:$0xf]
    %v997 = vld [vmem:[#allocation4 + $0x34] sm:$0xf]
    %v998 = vld [vmem:[#allocation4 + $0x38] sm:$0xf]
    %v999 = vld [vmem:[#allocation4 + $0x3c] sm:$0xf]
    %v1000 = vld [vmem:[#allocation4 + $0x40] sm:$0xf]
    %v1001 = vld [vmem:[#allocation4 + $0x44] sm:$0xf]
    %v1002 = vld [vmem:[#allocation4 + $0x48] sm:$0xf]
    %v1003 = vld [vmem:[#allocation4 + $0x4c] sm:$0xf]
    %v1004 = vld [vmem:[#allocation4 + $0x50] sm:$0xf]
    %v1005 = vld [vmem:[#allocation4 + $0x54] sm:$0xf]
    %v1006 = vld [vmem:[#allocation4 + $0x58] sm:$0xf]
    %v1007 = vld [vmem:[#allocation4 + $0x5c] sm:$0xf]
    %v1008 = vld [vmem:[#allocation4 + $0x60] sm:$0xf]
    %v1009 = vld [vmem:[#allocation4 + $0x64] sm:$0xf]
    %v1010 = vld [vmem:[#allocation4 + $0x68] sm:$0xf]
    %v1011 = vld [vmem:[#allocation4 + $0x6c] sm:$0xf]
    %v1012 = vld [vmem:[#allocation4 + $0x70] sm:$0xf]
    %v1013 = vld [vmem:[#allocation4 + $0x74] sm:$0xf]
    %v1014 = vld [vmem:[#allocation4 + $0x78] sm:$0xf]
    %v1015 = vld [vmem:[#allocation4 + $0x7c] sm:$0xf]
    %v1016 = vld [vmem:[%s10] sm:$0x1]
    %v1017 = vpack.c.bf16 %v982, %v980
    %v1018 = vpack.c.bf16 %v983, %v981
    %v1020 = vlaneseq
    %v1021 = vshrl.u32 %v1020, 7
    %v1022 = vsub.s32 0, %v1021
    %v1023 = vrot.slane %v1016, %v1022
    %v1057 = vunpack.c.l.b16 %v984
    %v1058 = vunpack.c.l.b16 %v985
    %v1059 = vunpack.c.l.b16 %v986
    %v1060 = vunpack.c.l.b16 %v987
    %v1061 = vunpack.c.l.b16 %v988
    %v1062 = vunpack.c.l.b16 %v989
    %v1063 = vunpack.c.l.b16 %v990
    %v1064 = vunpack.c.l.b16 %v991
    %v1065 = vunpack.c.l.b16 %v992
    %v1066 = vunpack.c.l.b16 %v993
    %v1067 = vunpack.c.l.b16 %v994
    %v1068 = vunpack.c.l.b16 %v995
    %v1069 = vunpack.c.l.b16 %v996
    %v1070 = vunpack.c.l.b16 %v997
    %v1071 = vunpack.c.l.b16 %v998
    %v1072 = vunpack.c.l.b16 %v999
    %v1073 = vunpack.c.l.b16 %v1000
    %v1074 = vunpack.c.l.b16 %v1001
    %v1075 = vunpack.c.l.b16 %v1002
    %v1076 = vunpack.c.l.b16 %v1003
    %v1077 = vunpack.c.l.b16 %v1004
    %v1078 = vunpack.c.l.b16 %v1005
    %v1079 = vunpack.c.l.b16 %v1006
    %v1080 = vunpack.c.l.b16 %v1007
    %v1081 = vunpack.c.l.b16 %v1008
    %v1082 = vunpack.c.l.b16 %v1009
    %v1083 = vunpack.c.l.b16 %v1010
    %v1084 = vunpack.c.l.b16 %v1011
    %v1085 = vunpack.c.l.b16 %v1012
    %v1086 = vunpack.c.l.b16 %v1013
    %v1087 = vunpack.c.l.b16 %v1014
    %v1088 = vunpack.c.l.b16 %v1015
    %v1089 = vpack.c.b16 %v1058, %v1057
    %v1090 = vpack.c.b16 %v1060, %v1059
    %v1091 = vpack.c.b16 %v1062, %v1061
    %v1092 = vpack.c.b16 %v1064, %v1063
    %v1093 = vpack.c.b16 %v1066, %v1065
    %v1094 = vpack.c.b16 %v1068, %v1067
    %v1095 = vpack.c.b16 %v1070, %v1069
    %v1096 = vpack.c.b16 %v1072, %v1071
    %v1097 = vpack.c.b16 %v1074, %v1073
    %v1098 = vpack.c.b16 %v1076, %v1075
    %v1099 = vpack.c.b16 %v1078, %v1077
    %v1100 = vpack.c.b16 %v1080, %v1079
    %v1101 = vpack.c.b16 %v1082, %v1081
    %v1102 = vpack.c.b16 %v1084, %v1083
    %v1103 = vpack.c.b16 %v1086, %v1085
    %v1104 = vpack.c.b16 %v1088, %v1087
    %1121 = vmatprep.subr.bf16.mxu0 0
    %1122 = vmatpush1.bf16.msra.mxu0 %v1089
    %1123 = vmatprep.subr.bf16.mxu0 0
    %1124 = vmatpush1.bf16.msra.mxu0 %v1090
    %1125 = vmatprep.subr.bf16.mxu0 0
    %1126 = vmatpush1.bf16.msra.mxu0 %v1091
    %1127 = vmatprep.subr.bf16.mxu0 0
    %1128 = vmatpush1.bf16.msra.mxu0 %v1092
    %1129 = vmatprep.subr.bf16.mxu0 0
    %1130 = vmatpush1.bf16.msra.mxu0 %v1093
    %1131 = vmatprep.subr.bf16.mxu0 0
    %1132 = vmatpush1.bf16.msra.mxu0 %v1094
    %1133 = vmatprep.subr.bf16.mxu0 0
    %1134 = vmatpush1.bf16.msra.mxu0 %v1095
    %1135 = vmatprep.subr.bf16.mxu0 0
    %1136 = vmatpush1.bf16.msra.mxu0 %v1096
    %1137 = vmatprep.subr.bf16.mxu0 0
    %1138 = vmatpush1.bf16.msra.mxu0 %v1097
    %1139 = vmatprep.subr.bf16.mxu0 0
    %1140 = vmatpush1.bf16.msra.mxu0 %v1098
    %1141 = vmatprep.subr.bf16.mxu0 0
    %1142 = vmatpush1.bf16.msra.mxu0 %v1099
    %1143 = vmatprep.subr.bf16.mxu0 0
    %1144 = vmatpush1.bf16.msra.mxu0 %v1100
    %1145 = vmatprep.subr.bf16.mxu0 0
    %1146 = vmatpush1.bf16.msra.mxu0 %v1101
    %1147 = vmatprep.subr.bf16.mxu0 0
    %1148 = vmatpush1.bf16.msra.mxu0 %v1102
    %1149 = vmatprep.subr.bf16.mxu0 0
    %1150 = vmatpush1.bf16.msra.mxu0 %v1103
    %1151 = vmatprep.subr.bf16.mxu0 0
    %1152 = vmatpush1.bf16.msra.mxu0 %v1104
    %1153 = vmatprep.mubr.bf16.mxu0 %v1018
    %1154 = vmatmul.mubr.bf16.gmra.mrb[0].mxu0 %v1017
    %v1155 = vpop.f32.mrb[0].mxu0
    %v1156 = vadd.f32 %v1023, %v1155
    %v1157 = vpop.f32.mrb[0].mxu0
    %v1158 = vpop.f32.mrb[0].mxu0
    %v1159 = vadd.f32 %v1023, %v1158
    %v1160 = vpop.f32.mrb[0].mxu0
    %1161 = vdwg.mxu0
    %1162 = vst [vmem:[%s11] sm:$0xff] %v1156
    %1163 = vst [vmem:[%s11 + $0x8] sm:$0xff] %v1159
    // Predicated region
    $region54: #{transformer2d_forward.39} parent=1 // pred_check
      _
    $region55: #{transformer2d_forward.39} parent=1 // pred_check_branch
      %1165 = sbr.rel (0) target = $region57
    $region56: #{transformer2d_forward.39} parent=1 // pred_region
      _
    $region57: #{transformer2d_forward.39} parent=1 // pred_fallthru
      _
    // Predicated region
    $region58: #{transformer2d_forward.39} parent=1 // pred_check
      _
    $region59: #{transformer2d_forward.39} parent=1 // pred_check_branch
      %1167 = sbr.rel (0) target = $region61
    $region60: #{transformer2d_forward.39} parent=1 // pred_region
      _
    $region61: #{transformer2d_forward.39} parent=1 // pred_fallthru
      _
    %1168 = vsyncpa [#allocation3], 1
    %1169 = vsyncpa [#allocation5], 1

// kernel: transformer2d_forward.51
$region0: #{transformer2d_forward.51}
  #allocation0 [shape = 'u32[]', space=smem, size = 0x4, offset = 0x4, fixed_abs, tag = 'smem constant byte address 0x4 - core index']
  #allocation1 [shape = 'u32[144,128]{1,0:T(1,128)}', space=vmem, size = 0x12000, scoped, tag = 'internal scratch']
  %s0 = inlined_call_operand.vmem [shape: f32[8,8,32], index: 0, kind: input, shape index: {}]
  %s1 = inlined_call_operand.vmem [shape: f32[8,8,32], index: 1, kind: input, shape index: {}]
  %s2 = inlined_call_operand.vmem [shape: f32[8,8,32], index: 2, kind: input, shape index: {}]
  %s3 = inlined_call_operand.vmem [shape: f32[8,8], index: 3, kind: input, shape index: {}]
  %s4 = inlined_call_operand.vmem [shape: f32[8,8,32], index: 4, kind: output, shape index: {}]
  %s5 = sld [smem:[#allocation0]]
  $region49: #{transformer2d_forward.51} parent=0
    _
  %s7 = ssub.s32 1, %s5
  %s8 = scalar_select 0, %s7, %s5
  loop: start=0, step=1, limit=10
  $region2: #{transformer2d_forward.51} parent=0 // loop_pre_header
    _
  $region3: #{transformer2d_forward.51} parent=0 // loop_header
    %s10 = sphi 0, %s14
    %p11 = scmp.ge.s32.totalorder %s10, 10
    %s20 = sphi 0, %s22
    %s23 = sphi 0, %s20
    %s24 = sphi 0, %s23
    %s40 = sphi 0, %s24
    %s46 = sphi 0, %s48
    %s49 = sphi 0, %s46
    %s50 = sphi 0, %s49
    %s66 = sphi 0, %s50
    %s72 = sphi 0, %s74
    %s75 = sphi 0, %s72
    %s76 = sphi 0, %s75
    %s92 = sphi 0, %s76
    %s96 = sphi 0, %s96
    %s98 = sphi 0, %s96
    %s99 = sphi 0, %s98
    %s113 = sphi 0, %s99
    %s119 = sphi 0, %s121
    %s122 = sphi 0, %s119
    %s123 = sphi 0, %s122
    %s139 = sphi 0, %s123
  $region4: #{transformer2d_forward.51} parent=0 // loop_header_branch
    %13 = sbr.rel (%p11) target = $region8
  $region5: #{transformer2d_forward.51} parent=0 // loop_body
    %s15 = ssub.s32 %s10, 1
    %s16 = ssub.s32 %s10, 2
    %s17 = sadd.s32 %s10, 1
    %s18 = ssub.s32 %s10, %s17
    %p19 = scmp.eq.s32.totalorder %s18, 0
    %s21 = sadd.s32 %s20, 1
    %s22 = scalar_select %p19, %s20, %s21
    %p25 = pneg %p19
    %p26 = scmp.eq.s32.totalorder %s10, 7
    %p27 = por %p25, %p26
    %p28 = scmp.ne.s32.totalorder %s20, %s23
    %p29 = scmp.eq.s32.totalorder %s10, 0
    %p30 = por %p28, %p29
    %p31 = scmp.ne.s32.totalorder %s20, %s23
    %p32 = scmp.eq.s32.totalorder %s15, 7
    %p33 = por %p31, %p32
    %p34 = scmp.ne.s32.totalorder %s23, %s24
    %p35 = scmp.eq.s32.totalorder %s15, 0
    %p36 = por %p34, %p35
    %p37 = scmp.ne.s32.totalorder %s23, %s24
    %p38 = scmp.eq.s32.totalorder %s16, 7
    %p39 = por %p37, %p38
    %p41 = scmp.ne.s32.totalorder %s24, %s40
    %p42 = scmp.eq.s32.totalorder %s16, 0
    %p43 = por %p41, %p42
    %s44 = ssub.s32 %s10, %s17
    %p45 = scmp.eq.s32.totalorder %s44, 0
    %s47 = sadd.s32 %s46, 1
    %s48 = scalar_select %p45, %s46, %s47
    %p51 = pneg %p45
    %p52 = scmp.eq.s32.totalorder %s10, 7
    %p53 = por %p51, %p52
    %p54 = scmp.ne.s32.totalorder %s46, %s49
    %p55 = scmp.eq.s32.totalorder %s10, 0
    %p56 = por %p54, %p55
    %p57 = scmp.ne.s32.totalorder %s46, %s49
    %p58 = scmp.eq.s32.totalorder %s15, 7
    %p59 = por %p57, %p58
    %p60 = scmp.ne.s32.totalorder %s49, %s50
    %p61 = scmp.eq.s32.totalorder %s15, 0
    %p62 = por %p60, %p61
    %p63 = scmp.ne.s32.totalorder %s49, %s50
    %p64 = scmp.eq.s32.totalorder %s16, 7
    %p65 = por %p63, %p64
    %p67 = scmp.ne.s32.totalorder %s50, %s66
    %p68 = scmp.eq.s32.totalorder %s16, 0
    %p69 = por %p67, %p68
    %s70 = ssub.s32 %s10, %s17
    %p71 = scmp.eq.s32.totalorder %s70, 0
    %s73 = sadd.s32 %s72, 1
    %s74 = scalar_select %p71, %s72, %s73
    %p77 = pneg %p71
    %p78 = scmp.eq.s32.totalorder %s10, 7
    %p79 = por %p77, %p78
    %p80 = scmp.ne.s32.totalorder %s72, %s75
    %p81 = scmp.eq.s32.totalorder %s10, 0
    %p82 = por %p80, %p81
    %p83 = scmp.ne.s32.totalorder %s72, %s75
    %p84 = scmp.eq.s32.totalorder %s15, 7
    %p85 = por %p83, %p84
    %p86 = scmp.ne.s32.totalorder %s75, %s76
    %p87 = scmp.eq.s32.totalorder %s15, 0
    %p88 = por %p86, %p87
    %p89 = scmp.ne.s32.totalorder %s75, %s76
    %p90 = scmp.eq.s32.totalorder %s16, 7
    %p91 = por %p89, %p90
    %p93 = scmp.ne.s32.totalorder %s76, %s92
    %p94 = scmp.eq.s32.totalorder %s16, 0
    %p95 = por %p93, %p94
    %s97 = sadd.s32 %s96, 1
    %p100 = scmp.eq.s32.totalorder %s10, 7
    %p101 = scmp.ne.s32.totalorder %s96, %s98
    %p102 = scmp.eq.s32.totalorder %s10, 0
    %p103 = por %p101, %p102
    %p104 = scmp.ne.s32.totalorder %s96, %s98
    %p105 = scmp.eq.s32.totalorder %s15, 7
    %p106 = por %p104, %p105
    %p107 = scmp.ne.s32.totalorder %s98, %s99
    %p108 = scmp.eq.s32.totalorder %s15, 0
    %p109 = por %p107, %p108
    %p110 = scmp.ne.s32.totalorder %s98, %s99
    %p111 = scmp.eq.s32.totalorder %s16, 7
    %p112 = por %p110, %p111
    %p114 = scmp.ne.s32.totalorder %s99, %s113
    %p115 = scmp.eq.s32.totalorder %s16, 0
    %p116 = por %p114, %p115
    %s117 = ssub.s32 %s10, %s17
    %p118 = scmp.eq.s32.totalorder %s117, 0
    %s120 = sadd.s32 %s119, 1
    %s121 = scalar_select %p118, %s119, %s120
    %p124 = pneg %p118
    %p125 = scmp.eq.s32.totalorder %s10, 7
    %p126 = por %p124, %p125
    %p127 = scmp.ne.s32.totalorder %s119, %s122
    %p128 = scmp.eq.s32.totalorder %s10, 0
    %p129 = por %p127, %p128
    %p130 = scmp.ne.s32.totalorder %s119, %s122
    %p131 = scmp.eq.s32.totalorder %s15, 7
    %p132 = por %p130, %p131
    %p133 = scmp.ne.s32.totalorder %s122, %s123
    %p134 = scmp.eq.s32.totalorder %s15, 0
    %p135 = por %p133, %p134
    %p136 = scmp.ne.s32.totalorder %s122, %s123
    %p137 = scmp.eq.s32.totalorder %s16, 7
    %p138 = por %p136, %p137
    %p140 = scmp.ne.s32.totalorder %s123, %s139
    %p141 = scmp.eq.s32.totalorder %s16, 0
    %p142 = por %p140, %p141
    %p143 = scmp.le.s32.totalorder 1, %s10
    %p144 = scmp.lt.s32.totalorder %s10, 9
    %p145 = pnand %p143, %p144
    %p146 = pneg %p145
    // Predicated region
    $region9: #{transformer2d_forward.51} parent=5 // pred_check
      _
    $region10: #{transformer2d_forward.51} parent=5 // pred_check_branch
      %148 = sbr.rel (%p145) target = $region12
    $region11: #{transformer2d_forward.51} parent=5 // pred_region
      %s149 = ssub.s32 %s10, 1
      // Predicated region
      $region13: #{transformer2d_forward.51} parent=11 // pred_check
        %p150 = pneg %p109
      $region14: #{transformer2d_forward.51} parent=11 // pred_check_branch
        %152 = sbr.rel (%p150) target = $region16
      $region15: #{transformer2d_forward.51} parent=11 // pred_region
        _
      $region16: #{transformer2d_forward.51} parent=11 // pred_fallthru
        _
    $region12: #{transformer2d_forward.51} parent=5 // pred_fallthru
      _
    %p153 = scmp.lt.s32.totalorder %s10, 8
    // Predicated region
    $region17: #{transformer2d_forward.51} parent=5 // pred_check
      %p154 = pneg %p153
    $region18: #{transformer2d_forward.51} parent=5 // pred_check_branch
      %156 = sbr.rel (%p154) target = $region20
    $region19: #{transformer2d_forward.51} parent=5 // pred_region
      // Predicated region
      $region21: #{transformer2d_forward.51} parent=19 // pred_check
        %p157 = pneg %p30
      $region22: #{transformer2d_forward.51} parent=19 // pred_check_branch
        %159 = sbr.rel (%p157) target = $region24
      $region23: #{transformer2d_forward.51} parent=19 // pred_region
        %p160 = scmp.lt.s32.totalorder %s10, 7
        %s161 = scalar_select %p160, %s10, 7
        %s162 = smul.addr %s161, 8
        %s163 = scalar_lea.vmem %s0, %s162
      $region24: #{transformer2d_forward.51} parent=19 // pred_fallthru
        _
      // Predicated region
      $region25: #{transformer2d_forward.51} parent=19 // pred_check
        %p164 = pneg %p56
      $region26: #{transformer2d_forward.51} parent=19 // pred_check_branch
        %166 = sbr.rel (%p164) target = $region28
      $region27: #{transformer2d_forward.51} parent=19 // pred_region
        %p167 = scmp.lt.s32.totalorder %s10, 7
        %s168 = scalar_select %p167, %s10, 7
        %s169 = smul.addr %s168, 8
        %s170 = scalar_lea.vmem %s1, %s169
      $region28: #{transformer2d_forward.51} parent=19 // pred_fallthru
        _
      // Predicated region
      $region29: #{transformer2d_forward.51} parent=19 // pred_check
        %p171 = pneg %p82
      $region30: #{transformer2d_forward.51} parent=19 // pred_check_branch
        %173 = sbr.rel (%p171) target = $region32
      $region31: #{transformer2d_forward.51} parent=19 // pred_region
        %p174 = scmp.lt.s32.totalorder %s10, 7
        %s175 = scalar_select %p174, %s10, 7
        %s176 = smul.addr %s175, 8
        %s177 = scalar_lea.vmem %s2, %s176
      $region32: #{transformer2d_forward.51} parent=19 // pred_fallthru
        _
    $region20: #{transformer2d_forward.51} parent=5 // pred_fallthru
      _
    %p178 = scmp.le.s32.totalorder 1, %s10
    %p179 = scmp.lt.s32.totalorder %s10, 9
    %p180 = pnand %p178, %p179
    %p181 = pneg %p180
    // Predicated region
    $region33: #{transformer2d_forward.51} parent=5 // pred_check
      _
    $region34: #{transformer2d_forward.51} parent=5 // pred_check_branch
      %183 = sbr.rel (%p180) target = $region36
    $region35: #{transformer2d_forward.51} parent=5 // pred_region
      %s184 = ssub.s32 %s10, 1
      %p185 = scmp.lt.s32.totalorder %s15, 7
      %s186 = scalar_select %p185, %s15, 7
      %s187 = smul.addr %s186, 8
      %s188 = scalar_lea.vmem %s0, %s187
      %p189 = pneg %p36
      %p190 = pneg %p33
      %p191 = scmp.lt.s32.totalorder %s15, 7
      %s192 = scalar_select %p191, %s15, 7
      %s193 = smul.addr %s192, 8
      %s194 = scalar_lea.vmem %s1, %s193
      %p195 = pneg %p62
      %p196 = pneg %p59
      %p197 = scmp.lt.s32.totalorder %s15, 7
      %s198 = scalar_select %p197, %s15, 7
      %s199 = smul.addr %s198, 8
      %s200 = scalar_lea.vmem %s2, %s199
      %p201 = pneg %p88
      %p202 = pneg %p85
      %p203 = pneg %p109
      %p204 = pneg %p106
      %p205 = pneg %p135
      %p206 = pneg %p132
      %p207 = scmp.lt.s32.totalorder %s15, 7
      %s208 = scalar_select %p207, %s15, 7
      %s209 = smul.addr %s208, 8
      %s210 = scalar_lea.vmem %s4, %s209
      %p211 = scmp.lt.s32.totalorder %s15, 7
      %s212 = scalar_select %p211, %s15, 7
      %s213 = smul.addr %s212, 8
      %s214 = scalar_lea.vmem %s0, %s213
      %p215 = scmp.lt.s32.totalorder %s15, 7
      %s216 = scalar_select %p215, %s15, 7
      %s217 = smul.addr %s216, 8
      %s218 = scalar_lea.vmem %s1, %s217
      %p219 = scmp.lt.s32.totalorder %s15, 7
      %s220 = scalar_select %p219, %s15, 7
      %s221 = smul.addr %s220, 8
      %s222 = scalar_lea.vmem %s2, %s221
      %p223 = scmp.lt.s32.totalorder %s15, 7
      %s224 = scalar_select %p223, %s15, 7
      %s225 = smul.addr %s224, 8
      %s226 = scalar_lea.vmem %s4, %s225
      %v227 = vld [vmem:[%s214] sm:$0xff]
      %v228 = vld [vmem:[%s218] sm:$0xff]
      %v229 = vld [vmem:[%s222] sm:$0xff]
      %vm230 = vcmask 261120
      %v232 = vsel %vm230, %v227, 0
      %v235 = vsel %vm230, %v228, 0
      %237 = vmatprep.subr.mxu0 0.0
      %238 = vmatpush1.xpose.msra.mxu0 %v235
      %239 = vmatprep.subr.mxu0 0.0
      %240 = vmatpush1.xpose.msra.mxu0 0.0
      %241 = vmatprep.subr.mxu0 0.0
      %242 = vmatpush1.xpose.msra.mxu0 0.0
      %243 = vmatprep.subr.mxu0 0.0
      %244 = vmatpush1.xpose.msra.mxu0 0.0
      %245 = vmatprep.subr.mxu0 0.0
      %246 = vmatpush1.xpose.msra.mxu0 0.0
      %247 = vmatprep.subr.mxu0 0.0
      %248 = vmatpush1.xpose.msra.mxu0 0.0
      %249 = vmatprep.subr.mxu0 0.0
      %250 = vmatpush1.xpose.msra.mxu0 0.0
      %251 = vmatprep.subr.mxu0 0.0
      %252 = vmatpush1.xpose.msra.mxu0 0.0
      %253 = vmatprep.subr.mxu0 0.0
      %254 = vmatpush1.xpose.msra.mxu0 0.0
      %255 = vmatprep.subr.mxu0 0.0
      %256 = vmatpush1.xpose.msra.mxu0 0.0
      %257 = vmatprep.subr.mxu0 0.0
      %258 = vmatpush1.xpose.msra.mxu0 0.0
      %259 = vmatprep.subr.mxu0 0.0
      %260 = vmatpush1.xpose.msra.mxu0 0.0
      %261 = vmatprep.subr.mxu0 0.0
      %262 = vmatpush1.xpose.msra.mxu0 0.0
      %263 = vmatprep.subr.mxu0 0.0
      %264 = vmatpush1.xpose.msra.mxu0 0.0
      %265 = vmatprep.subr.mxu0 0.0
      %266 = vmatpush1.xpose.msra.mxu0 0.0
      %267 = vmatprep.subr.mxu0 0.0
      %268 = vmatpush1.xpose.msra.mxu0 0.0
      %269 = vmatprep.subr.mxu0 0.0
      %270 = vmatpush1.xpose.msra.mxu0 0.0
      %271 = vmatprep.subr.mxu0 0.0
      %272 = vmatpush1.xpose.msra.mxu0 0.0
      %273 = vmatprep.subr.mxu0 0.0
      %274 = vmatpush1.xpose.msra.mxu0 0.0
      %275 = vmatprep.subr.mxu0 0.0
      %276 = vmatpush1.xpose.msra.mxu0 0.0
      %277 = vmatprep.subr.mxu0 0.0
      %278 = vmatpush1.xpose.msra.mxu0 0.0
      %279 = vmatprep.subr.mxu0 0.0
      %280 = vmatpush1.xpose.msra.mxu0 0.0
      %281 = vmatprep.subr.mxu0 0.0
      %282 = vmatpush1.xpose.msra.mxu0 0.0
      %283 = vmatprep.subr.mxu0 0.0
      %284 = vmatpush1.xpose.msra.mxu0 0.0
      %285 = vmatprep.subr.mxu0 0.0
      %286 = vmatpush1.xpose.msra.mxu0 0.0
      %287 = vmatprep.subr.mxu0 0.0
      %288 = vmatpush1.xpose.msra.mxu0 0.0
      %289 = vmatprep.subr.mxu0 0.0
      %290 = vmatpush1.xpose.msra.mxu0 0.0
      %291 = vmatprep.subr.mxu0 0.0
      %292 = vmatpush1.xpose.msra.mxu0 0.0
      %293 = vmatprep.subr.mxu0 0.0
      %294 = vmatpush1.xpose.msra.mxu0 0.0
      %295 = vmatprep.subr.mxu0 0.0
      %296 = vmatpush1.xpose.msra.mxu0 0.0
      %297 = vmatprep.subr.mxu0 0.0
      %298 = vmatpush1.xpose.msra.mxu0 0.0
      %299 = vmatprep.subr.mxu0 0.0
      %300 = vmatpush1.xpose.msra.mxu0 0.0
      %301 = vmatprep.mubr.f32.mxu0 0.0
      %302 = vmatmul.mubr.f32.gmra.mrb[0].mxu0 %v232
      %v303 = vpop.f32.mrb[0].mxu0
      %v304 = vadd.f32 0.0, %v303
      %v305 = vpop.f32.mrb[0].mxu0
      %306 = vdwg.mxu0
      %v307 = vmul.f32 %v304, 0.17677669
      %v308 = vld [vmem:[%s3] sm:$0xff]
      %v309 = vadd.f32 %v307, %v308
      %vm310 = vcmask 64512
      %v311 = vsel %vm310, %v309, -inf
      %312 = vmax.xlane.f32.xlu0 %v311
      %v313 = vpop.xlane.xlu0 %312
      %v314 = vsub.f32 %v309, %v313
      %v315 = vmul.f32 %v314, 1.442695
      %v316 = vpow.pop %v315
      %v317 = vsel %vm310, %v316, 0.0
      %318 = vadd.xlane.f32.xlu0 %v317
      %v319 = vpop.xlane.xlu0 %318
      %v320 = vrcp.pop %v319
      %v321 = vmul.f32 %v316, %v320
      %v323 = vsel %vm310, %v321, 0
      %325 = vmatprep.subr.mxu0 0.0
      %326 = vmatpush1.msra.mxu0 %v229
      %327 = vmatprep.subr.mxu0 0.0
      %328 = vmatpush1.msra.mxu0 0.0
      %329 = vmatprep.subr.mxu0 0.0
      %330 = vmatpush1.msra.mxu0 0.0
      %331 = vmatprep.subr.mxu0 0.0
      %332 = vmatpush1.msra.mxu0 0.0
      %333 = vmatprep.subr.mxu0 0.0
      %334 = vmatpush1.msra.mxu0 0.0
      %335 = vmatprep.subr.mxu0 0.0
      %336 = vmatpush1.msra.mxu0 0.0
      %337 = vmatprep.subr.mxu0 0.0
      %338 = vmatpush1.msra.mxu0 0.0
      %339 = vmatprep.subr.mxu0 0.0
      %340 = vmatpush1.msra.mxu0 0.0
      %341 = vmatprep.subr.mxu0 0.0
      %342 = vmatpush1.msra.mxu0 0.0
      %343 = vmatprep.subr.mxu0 0.0
      %344 = vmatpush1.msra.mxu0 0.0
      %345 = vmatprep.subr.mxu0 0.0
      %346 = vmatpush1.msra.mxu0 0.0
      %347 = vmatprep.subr.mxu0 0.0
      %348 = vmatpush1.msra.mxu0 0.0
      %349 = vmatprep.subr.mxu0 0.0
      %350 = vmatpush1.msra.mxu0 0.0
      %351 = vmatprep.subr.mxu0 0.0
      %352 = vmatpush1.msra.mxu0 0.0
      %353 = vmatprep.subr.mxu0 0.0
      %354 = vmatpush1.msra.mxu0 0.0
      %355 = vmatprep.subr.mxu0 0.0
      %356 = vmatpush1.msra.mxu0 0.0
      %357 = vmatprep.subr.mxu0 0.0
      %358 = vmatpush1.msra.mxu0 0.0
      %359 = vmatprep.subr.mxu0 0.0
      %360 = vmatpush1.msra.mxu0 0.0
      %361 = vmatprep.subr.mxu0 0.0
      %362 = vmatpush1.msra.mxu0 0.0
      %363 = vmatprep.subr.mxu0 0.0
      %364 = vmatpush1.msra.mxu0 0.0
      %365 = vmatprep.subr.mxu0 0.0
      %366 = vmatpush1.msra.mxu0 0.0
      %367 = vmatprep.subr.mxu0 0.0
      %368 = vmatpush1.msra.mxu0 0.0
      %369 = vmatprep.subr.mxu0 0.0
      %370 = vmatpush1.msra.mxu0 0.0
      %371 = vmatprep.subr.mxu0 0.0
      %372 = vmatpush1.msra.mxu0 0.0
      %373 = vmatprep.subr.mxu0 0.0
      %374 = vmatpush1.msra.mxu0 0.0
      %375 = vmatprep.subr.mxu0 0.0
      %376 = vmatpush1.msra.mxu0 0.0
      %377 = vmatprep.subr.mxu0 0.0
      %378 = vmatpush1.msra.mxu0 0.0
      %379 = vmatprep.subr.mxu0 0.0
      %380 = vmatpush1.msra.mxu0 0.0
      %381 = vmatprep.subr.mxu0 0.0
      %382 = vmatpush1.msra.mxu0 0.0
      %383 = vmatprep.subr.mxu0 0.0
      %384 = vmatpush1.msra.mxu0 0.0
      %385 = vmatprep.subr.mxu0 0.0
      %386 = vmatpush1.msra.mxu0 0.0
      %387 = vmatprep.subr.mxu0 0.0
      %388 = vmatpush1.msra.mxu0 0.0
      %389 = vmatprep.mubr.f32.mxu0 0.0
      %390 = vmatmul.mubr.f32.gmra.mrb[0].mxu0 %v323
      %v391 = vpop.f32.mrb[0].mxu0
      %v392 = vadd.f32 0.0, %v391
      %v393 = vpop.f32.mrb[0].mxu0
      %394 = vdwg.mxu0
      %395 = vst.msk [vmem:[%s226] sm:$0xff] %vm230, %v392
      %p396 = scmp.lt.s32.totalorder %s15, 7
      %s397 = scalar_select %p396, %s15, 7
      %s398 = smul.addr %s397, 8
      %s399 = scalar_lea.vmem %s4, %s398
      // Predicated region
      $region37: #{transformer2d_forward.51} parent=35 // pred_check
        %p400 = pneg %p132
      $region38: #{transformer2d_forward.51} parent=35 // pred_check_branch
        %402 = sbr.rel (%p400) target = $region40
      $region39: #{transformer2d_forward.51} parent=35 // pred_region
        _
      $region40: #{transformer2d_forward.51} parent=35 // pred_fallthru
        _
    $region36: #{transformer2d_forward.51} parent=5 // pred_fallthru
      _
    %p403 = scmp.le.s32.totalorder 2, %s10
    // Predicated region
    $region41: #{transformer2d_forward.51} parent=5 // pred_check
      %p404 = pneg %p403
    $region42: #{transformer2d_forward.51} parent=5 // pred_check_branch
      %406 = sbr.rel (%p404) target = $region44
    $region43: #{transformer2d_forward.51} parent=5 // pred_region
      %s407 = ssub.s32 %s10, 2
      // Predicated region
      $region45: #{transformer2d_forward.51} parent=43 // pred_check
        %p408 = pneg %p138
      $region46: #{transformer2d_forward.51} parent=43 // pred_check_branch
        %410 = sbr.rel (%p408) target = $region48
      $region47: #{transformer2d_forward.51} parent=43 // pred_region
        %p411 = scmp.lt.s32.totalorder %s16, 7
        %s412 = scalar_select %p411, %s16, 7
        %s413 = smul.addr %s412, 8
        %s414 = scalar_lea.vmem %s4, %s413
      $region48: #{transformer2d_forward.51} parent=43 // pred_fallthru
        _
    $region44: #{transformer2d_forward.51} parent=5 // pred_fallthru
      _
  $region6: #{transformer2d_forward.51} parent=0 // loop_footer
    %s14 = sadd.s32 1, %s10
  $region7: #{transformer2d_forward.51} parent=0 // loop_footer_branch
    %9 = sbr.rel target = $region3
  $region8: #{transformer2d_forward.51} parent=0 // loop_exit
    _

// kernel: transformer2d_forward.41
$region0: #{transformer2d_forward.41}
  #allocation0 [shape = 'u32[]', space=smem, size = 0x4, offset = 0x4, fixed_abs, tag = 'smem constant byte address 0x4 - core index']
  #allocation1 [shape = 'u32[144,128]{1,0:T(1,128)}', space=vmem, size = 0x12000, scoped, tag = 'internal scratch']
  %s0 = inlined_call_operand.vmem [shape: f32[16,128], index: 0, kind: input, shape index: {}]
  %s1 = inlined_call_operand.vmem [shape: bf16[128,256], index: 1, kind: input, shape index: {}]
  %s2 = inlined_call_operand.vmem [shape: f32[1,256], index: 2, kind: input, shape index: {}]
  %s3 = inlined_call_operand.vmem [shape: bf16[256,256], index: 3, kind: input, shape index: {}]
  %s4 = inlined_call_operand.vmem [shape: f32[1,256], index: 4, kind: input, shape index: {}]
  %s5 = inlined_call_operand.vmem [shape: bf16[256,256], index: 5, kind: input, shape index: {}]
  %s6 = inlined_call_operand.vmem [shape: f32[1,256], index: 6, kind: input, shape index: {}]
  %s7 = inlined_call_operand.vmem [shape: bf16[256,256], index: 7, kind: input, shape index: {}]
  %s8 = inlined_call_operand.vmem [shape: f32[1,256], index: 8, kind: input, shape index: {}]
  %s9 = inlined_call_operand.vmem [shape: bf16[256,128], index: 9, kind: input, shape index: {}]
  %s10 = inlined_call_operand.vmem [shape: f32[1,128], index: 10, kind: input, shape index: {}]
  %s11 = inlined_call_operand.vmem [shape: f32[16,128], index: 11, kind: output, shape index: {}]
  %s12 = sld [smem:[#allocation0]]
  $region54: #{transformer2d_forward.41} parent=0
    _
  %s14 = ssub.s32 1, %s12
  %s15 = scalar_select 0, %s14, %s12
  // Predicated region
  $region2: #{transformer2d_forward.41} parent=0 // pred_check
    _
  $region3: #{transformer2d_forward.41} parent=0 // pred_check_branch
    %17 = sbr.rel (0) target = $region5
  $region4: #{transformer2d_forward.41} parent=0 // pred_region
    _
  $region5: #{transformer2d_forward.41} parent=0 // pred_fallthru
    _
  // Predicated region
  $region6: #{transformer2d_forward.41} parent=0 // pred_check
    _
  $region7: #{transformer2d_forward.41} parent=0 // pred_check_branch
    %19 = sbr.rel (0) target = $region9
  $region8: #{transformer2d_forward.41} parent=0 // pred_region
    _
  $region9: #{transformer2d_forward.41} parent=0 // pred_fallthru
    _
  // Predicated region
  $region10: #{transformer2d_forward.41} parent=0 // pred_check
    _
  $region11: #{transformer2d_forward.41} parent=0 // pred_check_branch
    %21 = sbr.rel (0) target = $region13
  $region12: #{transformer2d_forward.41} parent=0 // pred_region
    _
  $region13: #{transformer2d_forward.41} parent=0 // pred_fallthru
    _
  // Predicated region
  $region14: #{transformer2d_forward.41} parent=0 // pred_check
    _
  $region15: #{transformer2d_forward.41} parent=0 // pred_check_branch
    %23 = sbr.rel (0) target = $region17
  $region16: #{transformer2d_forward.41} parent=0 // pred_region
    _
  $region17: #{transformer2d_forward.41} parent=0 // pred_fallthru
    _
  // Predicated region
  $region18: #{transformer2d_forward.41} parent=0 // pred_check
    _
  $region19: #{transformer2d_forward.41} parent=0 // pred_check_branch
    %25 = sbr.rel (0) target = $region21
  $region20: #{transformer2d_forward.41} parent=0 // pred_region
    _
  $region21: #{transformer2d_forward.41} parent=0 // pred_fallthru
    _
  // Predicated region
  $region22: #{transformer2d_forward.41} parent=0 // pred_check
    _
  $region23: #{transformer2d_forward.41} parent=0 // pred_check_branch
    %27 = sbr.rel (0) target = $region25
  $region24: #{transformer2d_forward.41} parent=0 // pred_region
    _
  $region25: #{transformer2d_forward.41} parent=0 // pred_fallthru
    _
  // Predicated region
  $region26: #{transformer2d_forward.41} parent=0 // pred_check
    _
  $region27: #{transformer2d_forward.41} parent=0 // pred_check_branch
    %29 = sbr.rel (0) target = $region29
  $region28: #{transformer2d_forward.41} parent=0 // pred_region
    _
  $region29: #{transformer2d_forward.41} parent=0 // pred_fallthru
    _
  // Predicated region
  $region30: #{transformer2d_forward.41} parent=0 // pred_check
    _
  $region31: #{transformer2d_forward.41} parent=0 // pred_check_branch
    %31 = sbr.rel (0) target = $region33
  $region32: #{transformer2d_forward.41} parent=0 // pred_region
    _
  $region33: #{transformer2d_forward.41} parent=0 // pred_fallthru
    _
  // Predicated region
  $region34: #{transformer2d_forward.41} parent=0 // pred_check
    _
  $region35: #{transformer2d_forward.41} parent=0 // pred_check_branch
    %33 = sbr.rel (0) target = $region37
  $region36: #{transformer2d_forward.41} parent=0 // pred_region
    _
  $region37: #{transformer2d_forward.41} parent=0 // pred_fallthru
    _
  // Predicated region
  $region38: #{transformer2d_forward.41} parent=0 // pred_check
    _
  $region39: #{transformer2d_forward.41} parent=0 // pred_check_branch
    %35 = sbr.rel (0) target = $region41
  $region40: #{transformer2d_forward.41} parent=0 // pred_region
    _
  $region41: #{transformer2d_forward.41} parent=0 // pred_fallthru
    _
  // Predicated region
  $region42: #{transformer2d_forward.41} parent=0 // pred_check
    _
  $region43: #{transformer2d_forward.41} parent=0 // pred_check_branch
    %37 = sbr.rel (0) target = $region45
  $region44: #{transformer2d_forward.41} parent=0 // pred_region
    _
  $region45: #{transformer2d_forward.41} parent=0 // pred_fallthru
    _
  %v39 = vld [vmem:[%s0] sm:$0xff]
  %v40 = vld [vmem:[%s0 + $0x8] sm:$0xff]
  %v41 = vld [vmem:[%s1] sm:$0xff]
  %v42 = vld [vmem:[%s1 + $0x8] sm:$0xff]
  %v43 = vld [vmem:[%s1 + $0x10] sm:$0xff]
  %v44 = vld [vmem:[%s1 + $0x18] sm:$0xff]
  %v45 = vld [vmem:[%s1 + $0x20] sm:$0xff]
  %v46 = vld [vmem:[%s1 + $0x28] sm:$0xff]
  %v47 = vld [vmem:[%s1 + $0x30] sm:$0xff]
  %v48 = vld [vmem:[%s1 + $0x38] sm:$0xff]
  %v49 = vld [vmem:[%s1 + $0x40] sm:$0xff]
  %v50 = vld [vmem:[%s1 + $0x48] sm:$0xff]
  %v51 = vld [vmem:[%s1 + $0x50] sm:$0xff]
  %v52 = vld [vmem:[%s1 + $0x58] sm:$0xff]
  %v53 = vld [vmem:[%s1 + $0x60] sm:$0xff]
  %v54 = vld [vmem:[%s1 + $0x68] sm:$0xff]
  %v55 = vld [vmem:[%s1 + $0x70] sm:$0xff]
  %v56 = vld [vmem:[%s1 + $0x78] sm:$0xff]
  %v57 = vld [vmem:[%s2] sm:$0x3]
  %v58 = vpack.c.bf16 %v40, %v39
  %v60 = vlaneseq
  %v61 = vshrl.u32 %v60, 7
  %v62 = vsub.s32 0, %v61
  %v63 = vrot.slane %v57, %v62
  %v64 = vlaneseq
  %v65 = vshrl.u32 %v64, 7
  %v66 = vsub.s32 1, %v65
  %v67 = vrot.slane %v57, %v66
  %v86 = vunpack.c.l.b16 %v41
  %v87 = vunpack.c.h.b16 %v41
  %v88 = vunpack.c.l.b16 %v42
  %v89 = vunpack.c.h.b16 %v42
  %v90 = vunpack.c.l.b16 %v43
  %v91 = vunpack.c.h.b16 %v43
  %v92 = vunpack.c.l.b16 %v44
  %v93 = vunpack.c.h.b16 %v44
  %v94 = vunpack.c.l.b16 %v45
  %v95 = vunpack.c.h.b16 %v45
  %v96 = vunpack.c.l.b16 %v46
  %v97 = vunpack.c.h.b16 %v46
  %v98 = vunpack.c.l.b16 %v47
  %v99 = vunpack.c.h.b16 %v47
  %v100 = vunpack.c.l.b16 %v48
  %v101 = vunpack.c.h.b16 %v48
  %v102 = vunpack.c.l.b16 %v49
  %v103 = vunpack.c.h.b16 %v49
  %v104 = vunpack.c.l.b16 %v50
  %v105 = vunpack.c.h.b16 %v50
  %v106 = vunpack.c.l.b16 %v51
  %v107 = vunpack.c.h.b16 %v51
  %v108 = vunpack.c.l.b16 %v52
  %v109 = vunpack.c.h.b16 %v52
  %v110 = vunpack.c.l.b16 %v53
  %v111 = vunpack.c.h.b16 %v53
  %v112 = vunpack.c.l.b16 %v54
  %v113 = vunpack.c.h.b16 %v54
  %v114 = vunpack.c.l.b16 %v55
  %v115 = vunpack.c.h.b16 %v55
  %v116 = vunpack.c.l.b16 %v56
  %v117 = vunpack.c.h.b16 %v56
  %v118 = vpack.c.b16 %v88, %v86
  %v119 = vpack.c.b16 %v89, %v87
  %v120 = vpack.c.b16 %v92, %v90
  %v121 = vpack.c.b16 %v93, %v91
  %v122 = vpack.c.b16 %v96, %v94
  %v123 = vpack.c.b16 %v97, %v95
  %v124 = vpack.c.b16 %v100, %v98
  %v125 = vpack.c.b16 %v101, %v99
  %v126 = vpack.c.b16 %v104, %v102
  %v127 = vpack.c.b16 %v105, %v103
  %v128 = vpack.c.b16 %v108, %v106
  %v129 = vpack.c.b16 %v109, %v107
  %v130 = vpack.c.b16 %v112, %v110
  %v131 = vpack.c.b16 %v113, %v111
  %v132 = vpack.c.b16 %v116, %v114
  %v133 = vpack.c.b16 %v117, %v115
  %150 = vmatprep.subr.bf16.mxu0 %v119
  %151 = vmatpush1.bf16.msra.mxu0 %v118
  %152 = vmatprep.subr.bf16.mxu0 %v121
  %153 = vmatpush1.bf16.msra.mxu0 %v120
  %154 = vmatprep.subr.bf16.mxu0 %v123
  %155 = vmatpush1.bf16.msra.mxu0 %v122
  %156 = vmatprep.subr.bf16.mxu0 %v125
  %157 = vmatpush1.bf16.msra.mxu0 %v124
  %158 = vmatprep.subr.bf16.mxu0 %v127
  %159 = vmatpush1.bf16.msra.mxu0 %v126
  %160 = vmatprep.subr.bf16.mxu0 %v129
  %161 = vmatpush1.bf16.msra.mxu0 %v128
  %162 = vmatprep.subr.bf16.mxu0 %v131
  %163 = vmatpush1.bf16.msra.mxu0 %v130
  %164 = vmatprep.subr.bf16.mxu0 %v133
  %165 = vmatpush1.bf16.msra.mxu0 %v132
  %166 = vmatprep.subr.bf16.mxu0 0
  %167 = vmatpush1.bf16.msra.mxu0 0
  %168 = vmatprep.subr.bf16.mxu0 0
  %169 = vmatpush1.bf16.msra.mxu0 0
  %170 = vmatprep.subr.bf16.mxu0 0
  %171 = vmatpush1.bf16.msra.mxu0 0
  %172 = vmatprep.subr.bf16.mxu0 0
  %173 = vmatpush1.bf16.msra.mxu0 0
  %174 = vmatprep.subr.bf16.mxu0 0
  %175 = vmatpush1.bf16.msra.mxu0 0
  %176 = vmatprep.subr.bf16.mxu0 0
  %177 = vmatpush1.bf16.msra.mxu0 0
  %178 = vmatprep.subr.bf16.mxu0 0
  %179 = vmatpush1.bf16.msra.mxu0 0
  %180 = vmatprep.subr.bf16.mxu0 0
  %181 = vmatpush1.bf16.msra.mxu0 0
  %182 = vmatprep.mubr.bf16.mxu0 0
  %183 = vmatmul.mubr.bf16.gmra.mrb[0].mxu0 %v58
  %v184 = vpop.f32.mrb[0].mxu0
  %v185 = vadd.f32 %v63, %v184
  %v186 = vpop.f32.mrb[0].mxu0
  %v187 = vadd.f32 %v67, %v186
  %v188 = vpop.f32.mrb[0].mxu0
  %v189 = vadd.f32 %v63, %v188
  %v190 = vpop.f32.mrb[0].mxu0
  %v191 = vadd.f32 %v67, %v190
  %192 = vdwg.mxu0
  %v193 = vmax.f32 %v185, 0.0
  %v194 = vmax.f32 %v187, 0.0
  %v195 = vmax.f32 %v189, 0.0
  %v196 = vmax.f32 %v191, 0.0
  %v197 = vld [vmem:[%s3] sm:$0xff]
  %v198 = vld [vmem:[%s3 + $0x8] sm:$0xff]
  %v199 = vld [vmem:[%s3 + $0x10] sm:$0xff]
  %v200 = vld [vmem:[%s3 + $0x18] sm:$0xff]
  %v201 = vld [vmem:[%s3 + $0x20] sm:$0xff]
  %v202 = vld [vmem:[%s3 + $0x28] sm:$0xff]
  %v203 = vld [vmem:[%s3 + $0x30] sm:$0xff]
  %v204 = vld [vmem:[%s3 + $0x38] sm:$0xff]
  %v205 = vld [vmem:[%s3 + $0x40] sm:$0xff]
  %v206 = vld [vmem:[%s3 + $0x48] sm:$0xff]
  %v207 = vld [vmem:[%s3 + $0x50] sm:$0xff]
  %v208 = vld [vmem:[%s3 + $0x58] sm:$0xff]
  %v209 = vld [vmem:[%s3 + $0x60] sm:$0xff]
  %v210 = vld [vmem:[%s3 + $0x68] sm:$0xff]
  %v211 = vld [vmem:[%s3 + $0x70] sm:$0xff]
  %v212 = vld [vmem:[%s3 + $0x78] sm:$0xff]
  %v213 = vld [vmem:[%s3 + $0x80] sm:$0xff]
  %v214 = vld [vmem:[%s3 + $0x88] sm:$0xff]
  %v215 = vld [vmem:[%s3 + $0x90] sm:$0xff]
  %v216 = vld [vmem:[%s3 + $0x98] sm:$0xff]
  %v217 = vld [vmem:[%s3 + $0xa0] sm:$0xff]
  %v218 = vld [vmem:[%s3 + $0xa8] sm:$0xff]
  %v219 = vld [vmem:[%s3 + $0xb0] sm:$0xff]
  %v220 = vld [vmem:[%s3 + $0xb8] sm:$0xff]
  %v221 = vld [vmem:[%s3 + $0xc0] sm:$0xff]
  %v222 = vld [vmem:[%s3 + $0xc8] sm:$0xff]
  %v223 = vld [vmem:[%s3 + $0xd0] sm:$0xff]
  %v224 = vld [vmem:[%s3 + $0xd8] sm:$0xff]
  %v225 = vld [vmem:[%s3 + $0xe0] sm:$0xff]
  %v226 = vld [vmem:[%s3 + $0xe8] sm:$0xff]
  %v227 = vld [vmem:[%s3 + $0xf0] sm:$0xff]
  %v228 = vld [vmem:[%s3 + $0xf8] sm:$0xff]
  %v229 = vld [vmem:[%s4] sm:$0x3]
  %v230 = vpack.c.bf16 %v195, %v193
  %v231 = vpack.c.bf16 %v196, %v194
  %v233 = vlaneseq
  %v234 = vshrl.u32 %v233, 7
  %v235 = vsub.s32 0, %v234
  %v236 = vrot.slane %v229, %v235
  %v237 = vlaneseq
  %v238 = vshrl.u32 %v237, 7
  %v239 = vsub.s32 1, %v238
  %v240 = vrot.slane %v229, %v239
  %v275 = vunpack.c.l.b16 %v197
  %v276 = vunpack.c.h.b16 %v197
  %v277 = vunpack.c.l.b16 %v198
  %v278 = vunpack.c.h.b16 %v198
  %v279 = vunpack.c.l.b16 %v199
  %v280 = vunpack.c.h.b16 %v199
  %v281 = vunpack.c.l.b16 %v200
  %v282 = vunpack.c.h.b16 %v200
  %v283 = vunpack.c.l.b16 %v201
  %v284 = vunpack.c.h.b16 %v201
  %v285 = vunpack.c.l.b16 %v202
  %v286 = vunpack.c.h.b16 %v202
  %v287 = vunpack.c.l.b16 %v203
  %v288 = vunpack.c.h.b16 %v203
  %v289 = vunpack.c.l.b16 %v204
  %v290 = vunpack.c.h.b16 %v204
  %v291 = vunpack.c.l.b16 %v205
  %v292 = vunpack.c.h.b16 %v205
  %v293 = vunpack.c.l.b16 %v206
  %v294 = vunpack.c.h.b16 %v206
  %v295 = vunpack.c.l.b16 %v207
  %v296 = vunpack.c.h.b16 %v207
  %v297 = vunpack.c.l.b16 %v208
  %v298 = vunpack.c.h.b16 %v208
  %v299 = vunpack.c.l.b16 %v209
  %v300 = vunpack.c.h.b16 %v209
  %v301 = vunpack.c.l.b16 %v210
  %v302 = vunpack.c.h.b16 %v210
  %v303 = vunpack.c.l.b16 %v211
  %v304 = vunpack.c.h.b16 %v211
  %v305 = vunpack.c.l.b16 %v212
  %v306 = vunpack.c.h.b16 %v212
  %v307 = vunpack.c.l.b16 %v213
  %v308 = vunpack.c.h.b16 %v213
  %v309 = vunpack.c.l.b16 %v214
  %v310 = vunpack.c.h.b16 %v214
  %v311 = vunpack.c.l.b16 %v215
  %v312 = vunpack.c.h.b16 %v215
  %v313 = vunpack.c.l.b16 %v216
  %v314 = vunpack.c.h.b16 %v216
  %v315 = vunpack.c.l.b16 %v217
  %v316 = vunpack.c.h.b16 %v217
  %v317 = vunpack.c.l.b16 %v218
  %v318 = vunpack.c.h.b16 %v218
  %v319 = vunpack.c.l.b16 %v219
  %v320 = vunpack.c.h.b16 %v219
  %v321 = vunpack.c.l.b16 %v220
  %v322 = vunpack.c.h.b16 %v220
  %v323 = vunpack.c.l.b16 %v221
  %v324 = vunpack.c.h.b16 %v221
  %v325 = vunpack.c.l.b16 %v222
  %v326 = vunpack.c.h.b16 %v222
  %v327 = vunpack.c.l.b16 %v223
  %v328 = vunpack.c.h.b16 %v223
  %v329 = vunpack.c.l.b16 %v224
  %v330 = vunpack.c.h.b16 %v224
  %v331 = vunpack.c.l.b16 %v225
  %v332 = vunpack.c.h.b16 %v225
  %v333 = vunpack.c.l.b16 %v226
  %v334 = vunpack.c.h.b16 %v226
  %v335 = vunpack.c.l.b16 %v227
  %v336 = vunpack.c.h.b16 %v227
  %v337 = vunpack.c.l.b16 %v228
  %v338 = vunpack.c.h.b16 %v228
  %v339 = vpack.c.b16 %v277, %v275
  %v340 = vpack.c.b16 %v278, %v276
  %v341 = vpack.c.b16 %v281, %v279
  %v342 = vpack.c.b16 %v282, %v280
  %v343 = vpack.c.b16 %v285, %v283
  %v344 = vpack.c.b16 %v286, %v284
  %v345 = vpack.c.b16 %v289, %v287
  %v346 = vpack.c.b16 %v290, %v288
  %v347 = vpack.c.b16 %v293, %v291
  %v348 = vpack.c.b16 %v294, %v292
  %v349 = vpack.c.b16 %v297, %v295
  %v350 = vpack.c.b16 %v298, %v296
  %v351 = vpack.c.b16 %v301, %v299
  %v352 = vpack.c.b16 %v302, %v300
  %v353 = vpack.c.b16 %v305, %v303
  %v354 = vpack.c.b16 %v306, %v304
  %v355 = vpack.c.b16 %v309, %v307
  %v356 = vpack.c.b16 %v310, %v308
  %v357 = vpack.c.b16 %v313, %v311
  %v358 = vpack.c.b16 %v314, %v312
  %v359 = vpack.c.b16 %v317, %v315
  %v360 = vpack.c.b16 %v318, %v316
  %v361 = vpack.c.b16 %v321, %v319
  %v362 = vpack.c.b16 %v322, %v320
  %v363 = vpack.c.b16 %v325, %v323
  %v364 = vpack.c.b16 %v326, %v324
  %v365 = vpack.c.b16 %v329, %v327
  %v366 = vpack.c.b16 %v330, %v328
  %v367 = vpack.c.b16 %v333, %v331
  %v368 = vpack.c.b16 %v334, %v332
  %v369 = vpack.c.b16 %v337, %v335
  %v370 = vpack.c.b16 %v338, %v336
  %403 = vmatprep.subr.bf16.mxu0 %v340
  %404 = vmatpush1.bf16.msra.mxu0 %v339
  %405 = vmatprep.subr.bf16.mxu0 %v342
  %406 = vmatpush1.bf16.msra.mxu0 %v341
  %407 = vmatprep.subr.bf16.mxu0 %v344
  %408 = vmatpush1.bf16.msra.mxu0 %v343
  %409 = vmatprep.subr.bf16.mxu0 %v346
  %410 = vmatpush1.bf16.msra.mxu0 %v345
  %411 = vmatprep.subr.bf16.mxu0 %v348
  %412 = vmatpush1.bf16.msra.mxu0 %v347
  %413 = vmatprep.subr.bf16.mxu0 %v350
  %414 = vmatpush1.bf16.msra.mxu0 %v349
  %415 = vmatprep.subr.bf16.mxu0 %v352
  %416 = vmatpush1.bf16.msra.mxu0 %v351
  %417 = vmatprep.subr.bf16.mxu0 %v354
  %418 = vmatpush1.bf16.msra.mxu0 %v353
  %419 = vmatprep.subr.bf16.mxu0 %v356
  %420 = vmatpush1.bf16.msra.mxu0 %v355
  %421 = vmatprep.subr.bf16.mxu0 %v358
  %422 = vmatpush1.bf16.msra.mxu0 %v357
  %423 = vmatprep.subr.bf16.mxu0 %v360
  %424 = vmatpush1.bf16.msra.mxu0 %v359
  %425 = vmatprep.subr.bf16.mxu0 %v362
  %426 = vmatpush1.bf16.msra.mxu0 %v361
  %427 = vmatprep.subr.bf16.mxu0 %v364
  %428 = vmatpush1.bf16.msra.mxu0 %v363
  %429 = vmatprep.subr.bf16.mxu0 %v366
  %430 = vmatpush1.bf16.msra.mxu0 %v365
  %431 = vmatprep.subr.bf16.mxu0 %v368
  %432 = vmatpush1.bf16.msra.mxu0 %v367
  %433 = vmatprep.subr.bf16.mxu0 %v370
  %434 = vmatpush1.bf16.msra.mxu0 %v369
  %435 = vmatprep.mubr.bf16.mxu0 %v231
  %436 = vmatmul.mubr.bf16.gmra.mrb[0].mxu0 %v230
  %v437 = vpop.f32.mrb[0].mxu0
  %v438 = vadd.f32 %v236, %v437
  %v439 = vpop.f32.mrb[0].mxu0
  %v440 = vadd.f32 %v240, %v439
  %v441 = vpop.f32.mrb[0].mxu0
  %v442 = vadd.f32 %v236, %v441
  %v443 = vpop.f32.mrb[0].mxu0
  %v444 = vadd.f32 %v240, %v443
  %445 = vdwg.mxu0
  %v446 = vmax.f32 %v438, 0.0
  %v447 = vmax.f32 %v440, 0.0
  %v448 = vmax.f32 %v442, 0.0
  %v449 = vmax.f32 %v444, 0.0
  %v450 = vld [vmem:[%s5] sm:$0xff]
  %v451 = vld [vmem:[%s5 + $0x8] sm:$0xff]
  %v452 = vld [vmem:[%s5 + $0x10] sm:$0xff]
  %v453 = vld [vmem:[%s5 + $0x18] sm:$0xff]
  %v454 = vld [vmem:[%s5 + $0x20] sm:$0xff]
  %v455 = vld [vmem:[%s5 + $0x28] sm:$0xff]
  %v456 = vld [vmem:[%s5 + $0x30] sm:$0xff]
  %v457 = vld [vmem:[%s5 + $0x38] sm:$0xff]
  %v458 = vld [vmem:[%s5 + $0x40] sm:$0xff]
  %v459 = vld [vmem:[%s5 + $0x48] sm:$0xff]
  %v460 = vld [vmem:[%s5 + $0x50] sm:$0xff]
  %v461 = vld [vmem:[%s5 + $0x58] sm:$0xff]
  %v462 = vld [vmem:[%s5 + $0x60] sm:$0xff]
  %v463 = vld [vmem:[%s5 + $0x68] sm:$0xff]
  %v464 = vld [vmem:[%s5 + $0x70] sm:$0xff]
  %v465 = vld [vmem:[%s5 + $0x78] sm:$0xff]
  %v466 = vld [vmem:[%s5 + $0x80] sm:$0xff]
  %v467 = vld [vmem:[%s5 + $0x88] sm:$0xff]
  %v468 = vld [vmem:[%s5 + $0x90] sm:$0xff]
  %v469 = vld [vmem:[%s5 + $0x98] sm:$0xff]
  %v470 = vld [vmem:[%s5 + $0xa0] sm:$0xff]
  %v471 = vld [vmem:[%s5 + $0xa8] sm:$0xff]
  %v472 = vld [vmem:[%s5 + $0xb0] sm:$0xff]
  %v473 = vld [vmem:[%s5 + $0xb8] sm:$0xff]
  %v474 = vld [vmem:[%s5 + $0xc0] sm:$0xff]
  %v475 = vld [vmem:[%s5 + $0xc8] sm:$0xff]
  %v476 = vld [vmem:[%s5 + $0xd0] sm:$0xff]
  %v477 = vld [vmem:[%s5 + $0xd8] sm:$0xff]
  %v478 = vld [vmem:[%s5 + $0xe0] sm:$0xff]
  %v479 = vld [vmem:[%s5 + $0xe8] sm:$0xff]
  %v480 = vld [vmem:[%s5 + $0xf0] sm:$0xff]
  %v481 = vld [vmem:[%s5 + $0xf8] sm:$0xff]
  %v482 = vld [vmem:[%s6] sm:$0x3]
  %v483 = vpack.c.bf16 %v448, %v446
  %v484 = vpack.c.bf16 %v449, %v447
  %v486 = vlaneseq
  %v487 = vshrl.u32 %v486, 7
  %v488 = vsub.s32 0, %v487
  %v489 = vrot.slane %v482, %v488
  %v490 = vlaneseq
  %v491 = vshrl.u32 %v490, 7
  %v492 = vsub.s32 1, %v491
  %v493 = vrot.slane %v482, %v492
  %v528 = vunpack.c.l.b16 %v450
  %v529 = vunpack.c.h.b16 %v450
  %v530 = vunpack.c.l.b16 %v451
  %v531 = vunpack.c.h.b16 %v451
  %v532 = vunpack.c.l.b16 %v452
  %v533 = vunpack.c.h.b16 %v452
  %v534 = vunpack.c.l.b16 %v453
  %v535 = vunpack.c.h.b16 %v453
  %v536 = vunpack.c.l.b16 %v454
  %v537 = vunpack.c.h.b16 %v454
  %v538 = vunpack.c.l.b16 %v455
  %v539 = vunpack.c.h.b16 %v455
  %v540 = vunpack.c.l.b16 %v456
  %v541 = vunpack.c.h.b16 %v456
  %v542 = vunpack.c.l.b16 %v457
  %v543 = vunpack.c.h.b16 %v457
  %v544 = vunpack.c.l.b16 %v458
  %v545 = vunpack.c.h.b16 %v458
  %v546 = vunpack.c.l.b16 %v459
  %v547 = vunpack.c.h.b16 %v459
  %v548 = vunpack.c.l.b16 %v460
  %v549 = vunpack.c.h.b16 %v460
  %v550 = vunpack.c.l.b16 %v461
  %v551 = vunpack.c.h.b16 %v461
  %v552 = vunpack.c.l.b16 %v462
  %v553 = vunpack.c.h.b16 %v462
  %v554 = vunpack.c.l.b16 %v463
  %v555 = vunpack.c.h.b16 %v463
  %v556 = vunpack.c.l.b16 %v464
  %v557 = vunpack.c.h.b16 %v464
  %v558 = vunpack.c.l.b16 %v465
  %v559 = vunpack.c.h.b16 %v465
  %v560 = vunpack.c.l.b16 %v466
  %v561 = vunpack.c.h.b16 %v466
  %v562 = vunpack.c.l.b16 %v467
  %v563 = vunpack.c.h.b16 %v467
  %v564 = vunpack.c.l.b16 %v468
  %v565 = vunpack.c.h.b16 %v468
  %v566 = vunpack.c.l.b16 %v469
  %v567 = vunpack.c.h.b16 %v469
  %v568 = vunpack.c.l.b16 %v470
  %v569 = vunpack.c.h.b16 %v470
  %v570 = vunpack.c.l.b16 %v471
  %v571 = vunpack.c.h.b16 %v471
  %v572 = vunpack.c.l.b16 %v472
  %v573 = vunpack.c.h.b16 %v472
  %v574 = vunpack.c.l.b16 %v473
  %v575 = vunpack.c.h.b16 %v473
  %v576 = vunpack.c.l.b16 %v474
  %v577 = vunpack.c.h.b16 %v474
  %v578 = vunpack.c.l.b16 %v475
  %v579 = vunpack.c.h.b16 %v475
  %v580 = vunpack.c.l.b16 %v476
  %v581 = vunpack.c.h.b16 %v476
  %v582 = vunpack.c.l.b16 %v477
  %v583 = vunpack.c.h.b16 %v477
  %v584 = vunpack.c.l.b16 %v478
  %v585 = vunpack.c.h.b16 %v478
  %v586 = vunpack.c.l.b16 %v479
  %v587 = vunpack.c.h.b16 %v479
  %v588 = vunpack.c.l.b16 %v480
  %v589 = vunpack.c.h.b16 %v480
  %v590 = vunpack.c.l.b16 %v481
  %v591 = vunpack.c.h.b16 %v481
  %v592 = vpack.c.b16 %v530, %v528
  %v593 = vpack.c.b16 %v531, %v529
  %v594 = vpack.c.b16 %v534, %v532
  %v595 = vpack.c.b16 %v535, %v533
  %v596 = vpack.c.b16 %v538, %v536
  %v597 = vpack.c.b16 %v539, %v537
  %v598 = vpack.c.b16 %v542, %v540
  %v599 = vpack.c.b16 %v543, %v541
  %v600 = vpack.c.b16 %v546, %v544
  %v601 = vpack.c.b16 %v547, %v545
  %v602 = vpack.c.b16 %v550, %v548
  %v603 = vpack.c.b16 %v551, %v549
  %v604 = vpack.c.b16 %v554, %v552
  %v605 = vpack.c.b16 %v555, %v553
  %v606 = vpack.c.b16 %v558, %v556
  %v607 = vpack.c.b16 %v559, %v557
  %v608 = vpack.c.b16 %v562, %v560
  %v609 = vpack.c.b16 %v563, %v561
  %v610 = vpack.c.b16 %v566, %v564
  %v611 = vpack.c.b16 %v567, %v565
  %v612 = vpack.c.b16 %v570, %v568
  %v613 = vpack.c.b16 %v571, %v569
  %v614 = vpack.c.b16 %v574, %v572
  %v615 = vpack.c.b16 %v575, %v573
  %v616 = vpack.c.b16 %v578, %v576
  %v617 = vpack.c.b16 %v579, %v577
  %v618 = vpack.c.b16 %v582, %v580
  %v619 = vpack.c.b16 %v583, %v581
  %v620 = vpack.c.b16 %v586, %v584
  %v621 = vpack.c.b16 %v587, %v585
  %v622 = vpack.c.b16 %v590, %v588
  %v623 = vpack.c.b16 %v591, %v589
  %656 = vmatprep.subr.bf16.mxu0 %v593
  %657 = vmatpush1.bf16.msra.mxu0 %v592
  %658 = vmatprep.subr.bf16.mxu0 %v595
  %659 = vmatpush1.bf16.msra.mxu0 %v594
  %660 = vmatprep.subr.bf16.mxu0 %v597
  %661 = vmatpush1.bf16.msra.mxu0 %v596
  %662 = vmatprep.subr.bf16.mxu0 %v599
  %663 = vmatpush1.bf16.msra.mxu0 %v598
  %664 = vmatprep.subr.bf16.mxu0 %v601
  %665 = vmatpush1.bf16.msra.mxu0 %v600
  %666 = vmatprep.subr.bf16.mxu0 %v603
  %667 = vmatpush1.bf16.msra.mxu0 %v602
  %668 = vmatprep.subr.bf16.mxu0 %v605
  %669 = vmatpush1.bf16.msra.mxu0 %v604
  %670 = vmatprep.subr.bf16.mxu0 %v607
  %671 = vmatpush1.bf16.msra.mxu0 %v606
  %672 = vmatprep.subr.bf16.mxu0 %v609
  %673 = vmatpush1.bf16.msra.mxu0 %v608
  %674 = vmatprep.subr.bf16.mxu0 %v611
  %675 = vmatpush1.bf16.msra.mxu0 %v610
  %676 = vmatprep.subr.bf16.mxu0 %v613
  %677 = vmatpush1.bf16.msra.mxu0 %v612
  %678 = vmatprep.subr.bf16.mxu0 %v615
  %679 = vmatpush1.bf16.msra.mxu0 %v614
  %680 = vmatprep.subr.bf16.mxu0 %v617
  %681 = vmatpush1.bf16.msra.mxu0 %v616
  %682 = vmatprep.subr.bf16.mxu0 %v619
  %683 = vmatpush1.bf16.msra.mxu0 %v618
  %684 = vmatprep.subr.bf16.mxu0 %v621
  %685 = vmatpush1.bf16.msra.mxu0 %v620
  %686 = vmatprep.subr.bf16.mxu0 %v623
  %687 = vmatpush1.bf16.msra.mxu0 %v622
  %688 = vmatprep.mubr.bf16.mxu0 %v484
  %689 = vmatmul.mubr.bf16.gmra.mrb[0].mxu0 %v483
  %v690 = vpop.f32.mrb[0].mxu0
  %v691 = vadd.f32 %v489, %v690
  %v692 = vpop.f32.mrb[0].mxu0
  %v693 = vadd.f32 %v493, %v692
  %v694 = vpop.f32.mrb[0].mxu0
  %v695 = vadd.f32 %v489, %v694
  %v696 = vpop.f32.mrb[0].mxu0
  %v697 = vadd.f32 %v493, %v696
  %698 = vdwg.mxu0
  %v699 = vmax.f32 %v691, 0.0
  %v700 = vmax.f32 %v693, 0.0
  %v701 = vmax.f32 %v695, 0.0
  %v702 = vmax.f32 %v697, 0.0
  %v703 = vld [vmem:[%s7] sm:$0xff]
  %v704 = vld [vmem:[%s7 + $0x8] sm:$0xff]
  %v705 = vld [vmem:[%s7 + $0x10] sm:$0xff]
  %v706 = vld [vmem:[%s7 + $0x18] sm:$0xff]
  %v707 = vld [vmem:[%s7 + $0x20] sm:$0xff]
  %v708 = vld [vmem:[%s7 + $0x28] sm:$0xff]
  %v709 = vld [vmem:[%s7 + $0x30] sm:$0xff]
  %v710 = vld [vmem:[%s7 + $0x38] sm:$0xff]
  %v711 = vld [vmem:[%s7 + $0x40] sm:$0xff]
  %v712 = vld [vmem:[%s7 + $0x48] sm:$0xff]
  %v713 = vld [vmem:[%s7 + $0x50] sm:$0xff]
  %v714 = vld [vmem:[%s7 + $0x58] sm:$0xff]
  %v715 = vld [vmem:[%s7 + $0x60] sm:$0xff]
  %v716 = vld [vmem:[%s7 + $0x68] sm:$0xff]
  %v717 = vld [vmem:[%s7 + $0x70] sm:$0xff]
  %v718 = vld [vmem:[%s7 + $0x78] sm:$0xff]
  %v719 = vld [vmem:[%s7 + $0x80] sm:$0xff]
  %v720 = vld [vmem:[%s7 + $0x88] sm:$0xff]
  %v721 = vld [vmem:[%s7 + $0x90] sm:$0xff]
  %v722 = vld [vmem:[%s7 + $0x98] sm:$0xff]
  %v723 = vld [vmem:[%s7 + $0xa0] sm:$0xff]
  %v724 = vld [vmem:[%s7 + $0xa8] sm:$0xff]
  %v725 = vld [vmem:[%s7 + $0xb0] sm:$0xff]
  %v726 = vld [vmem:[%s7 + $0xb8] sm:$0xff]
  %v727 = vld [vmem:[%s7 + $0xc0] sm:$0xff]
  %v728 = vld [vmem:[%s7 + $0xc8] sm:$0xff]
  %v729 = vld [vmem:[%s7 + $0xd0] sm:$0xff]
  %v730 = vld [vmem:[%s7 + $0xd8] sm:$0xff]
  %v731 = vld [vmem:[%s7 + $0xe0] sm:$0xff]
  %v732 = vld [vmem:[%s7 + $0xe8] sm:$0xff]
  %v733 = vld [vmem:[%s7 + $0xf0] sm:$0xff]
  %v734 = vld [vmem:[%s7 + $0xf8] sm:$0xff]
  %v735 = vld [vmem:[%s8] sm:$0x3]
  %v736 = vpack.c.bf16 %v701, %v699
  %v737 = vpack.c.bf16 %v702, %v700
  %v739 = vlaneseq
  %v740 = vshrl.u32 %v739, 7
  %v741 = vsub.s32 0, %v740
  %v742 = vrot.slane %v735, %v741
  %v743 = vlaneseq
  %v744 = vshrl.u32 %v743, 7
  %v745 = vsub.s32 1, %v744
  %v746 = vrot.slane %v735, %v745
  %v781 = vunpack.c.l.b16 %v703
  %v782 = vunpack.c.h.b16 %v703
  %v783 = vunpack.c.l.b16 %v704
  %v784 = vunpack.c.h.b16 %v704
  %v785 = vunpack.c.l.b16 %v705
  %v786 = vunpack.c.h.b16 %v705
  %v787 = vunpack.c.l.b16 %v706
  %v788 = vunpack.c.h.b16 %v706
  %v789 = vunpack.c.l.b16 %v707
  %v790 = vunpack.c.h.b16 %v707
  %v791 = vunpack.c.l.b16 %v708
  %v792 = vunpack.c.h.b16 %v708
  %v793 = vunpack.c.l.b16 %v709
  %v794 = vunpack.c.h.b16 %v709
  %v795 = vunpack.c.l.b16 %v710
  %v796 = vunpack.c.h.b16 %v710
  %v797 = vunpack.c.l.b16 %v711
  %v798 = vunpack.c.h.b16 %v711
  %v799 = vunpack.c.l.b16 %v712
  %v800 = vunpack.c.h.b16 %v712
  %v801 = vunpack.c.l.b16 %v713
  %v802 = vunpack.c.h.b16 %v713
  %v803 = vunpack.c.l.b16 %v714
  %v804 = vunpack.c.h.b16 %v714
  %v805 = vunpack.c.l.b16 %v715
  %v806 = vunpack.c.h.b16 %v715
  %v807 = vunpack.c.l.b16 %v716
  %v808 = vunpack.c.h.b16 %v716
  %v809 = vunpack.c.l.b16 %v717
  %v810 = vunpack.c.h.b16 %v717
  %v811 = vunpack.c.l.b16 %v718
  %v812 = vunpack.c.h.b16 %v718
  %v813 = vunpack.c.l.b16 %v719
  %v814 = vunpack.c.h.b16 %v719
  %v815 = vunpack.c.l.b16 %v720
  %v816 = vunpack.c.h.b16 %v720
  %v817 = vunpack.c.l.b16 %v721
  %v818 = vunpack.c.h.b16 %v721
  %v819 = vunpack.c.l.b16 %v722
  %v820 = vunpack.c.h.b16 %v722
  %v821 = vunpack.c.l.b16 %v723
  %v822 = vunpack.c.h.b16 %v723
  %v823 = vunpack.c.l.b16 %v724
  %v824 = vunpack.c.h.b16 %v724
  %v825 = vunpack.c.l.b16 %v725
  %v826 = vunpack.c.h.b16 %v725
  %v827 = vunpack.c.l.b16 %v726
  %v828 = vunpack.c.h.b16 %v726
  %v829 = vunpack.c.l.b16 %v727
  %v830 = vunpack.c.h.b16 %v727
  %v831 = vunpack.c.l.b16 %v728
  %v832 = vunpack.c.h.b16 %v728
  %v833 = vunpack.c.l.b16 %v729
  %v834 = vunpack.c.h.b16 %v729
  %v835 = vunpack.c.l.b16 %v730
  %v836 = vunpack.c.h.b16 %v730
  %v837 = vunpack.c.l.b16 %v731
  %v838 = vunpack.c.h.b16 %v731
  %v839 = vunpack.c.l.b16 %v732
  %v840 = vunpack.c.h.b16 %v732
  %v841 = vunpack.c.l.b16 %v733
  %v842 = vunpack.c.h.b16 %v733
  %v843 = vunpack.c.l.b16 %v734
  %v844 = vunpack.c.h.b16 %v734
  %v845 = vpack.c.b16 %v783, %v781
  %v846 = vpack.c.b16 %v784, %v782
  %v847 = vpack.c.b16 %v787, %v785
  %v848 = vpack.c.b16 %v788, %v786
  %v849 = vpack.c.b16 %v791, %v789
  %v850 = vpack.c.b16 %v792, %v790
  %v851 = vpack.c.b16 %v795, %v793
  %v852 = vpack.c.b16 %v796, %v794
  %v853 = vpack.c.b16 %v799, %v797
  %v854 = vpack.c.b16 %v800, %v798
  %v855 = vpack.c.b16 %v803, %v801
  %v856 = vpack.c.b16 %v804, %v802
  %v857 = vpack.c.b16 %v807, %v805
  %v858 = vpack.c.b16 %v808, %v806
  %v859 = vpack.c.b16 %v811, %v809
  %v860 = vpack.c.b16 %v812, %v810
  %v861 = vpack.c.b16 %v815, %v813
  %v862 = vpack.c.b16 %v816, %v814
  %v863 = vpack.c.b16 %v819, %v817
  %v864 = vpack.c.b16 %v820, %v818
  %v865 = vpack.c.b16 %v823, %v821
  %v866 = vpack.c.b16 %v824, %v822
  %v867 = vpack.c.b16 %v827, %v825
  %v868 = vpack.c.b16 %v828, %v826
  %v869 = vpack.c.b16 %v831, %v829
  %v870 = vpack.c.b16 %v832, %v830
  %v871 = vpack.c.b16 %v835, %v833
  %v872 = vpack.c.b16 %v836, %v834
  %v873 = vpack.c.b16 %v839, %v837
  %v874 = vpack.c.b16 %v840, %v838
  %v875 = vpack.c.b16 %v843, %v841
  %v876 = vpack.c.b16 %v844, %v842
  %909 = vmatprep.subr.bf16.mxu0 %v846
  %910 = vmatpush1.bf16.msra.mxu0 %v845
  %911 = vmatprep.subr.bf16.mxu0 %v848
  %912 = vmatpush1.bf16.msra.mxu0 %v847
  %913 = vmatprep.subr.bf16.mxu0 %v850
  %914 = vmatpush1.bf16.msra.mxu0 %v849
  %915 = vmatprep.subr.bf16.mxu0 %v852
  %916 = vmatpush1.bf16.msra.mxu0 %v851
  %917 = vmatprep.subr.bf16.mxu0 %v854
  %918 = vmatpush1.bf16.msra.mxu0 %v853
  %919 = vmatprep.subr.bf16.mxu0 %v856
  %920 = vmatpush1.bf16.msra.mxu0 %v855
  %921 = vmatprep.subr.bf16.mxu0 %v858
  %922 = vmatpush1.bf16.msra.mxu0 %v857
  %923 = vmatprep.subr.bf16.mxu0 %v860
  %924 = vmatpush1.bf16.msra.mxu0 %v859
  %925 = vmatprep.subr.bf16.mxu0 %v862
  %926 = vmatpush1.bf16.msra.mxu0 %v861
  %927 = vmatprep.subr.bf16.mxu0 %v864
  %928 = vmatpush1.bf16.msra.mxu0 %v863
  %929 = vmatprep.subr.bf16.mxu0 %v866
  %930 = vmatpush1.bf16.msra.mxu0 %v865
  %931 = vmatprep.subr.bf16.mxu0 %v868
  %932 = vmatpush1.bf16.msra.mxu0 %v867
  %933 = vmatprep.subr.bf16.mxu0 %v870
  %934 = vmatpush1.bf16.msra.mxu0 %v869
  %935 = vmatprep.subr.bf16.mxu0 %v872
  %936 = vmatpush1.bf16.msra.mxu0 %v871
  %937 = vmatprep.subr.bf16.mxu0 %v874
  %938 = vmatpush1.bf16.msra.mxu0 %v873
  %939 = vmatprep.subr.bf16.mxu0 %v876
  %940 = vmatpush1.bf16.msra.mxu0 %v875
  %941 = vmatprep.mubr.bf16.mxu0 %v737
  %942 = vmatmul.mubr.bf16.gmra.mrb[0].mxu0 %v736
  %v943 = vpop.f32.mrb[0].mxu0
  %v944 = vadd.f32 %v742, %v943
  %v945 = vpop.f32.mrb[0].mxu0
  %v946 = vadd.f32 %v746, %v945
  %v947 = vpop.f32.mrb[0].mxu0
  %v948 = vadd.f32 %v742, %v947
  %v949 = vpop.f32.mrb[0].mxu0
  %v950 = vadd.f32 %v746, %v949
  %951 = vdwg.mxu0
  %v952 = vmax.f32 %v944, 0.0
  %v953 = vmax.f32 %v946, 0.0
  %v954 = vmax.f32 %v948, 0.0
  %v955 = vmax.f32 %v950, 0.0
  %v956 = vld [vmem:[%s9] sm:$0xf]
  %v957 = vld [vmem:[%s9 + $0x4] sm:$0xf]
  %v958 = vld [vmem:[%s9 + $0x8] sm:$0xf]
  %v959 = vld [vmem:[%s9 + $0xc] sm:$0xf]
  %v960 = vld [vmem:[%s9 + $0x10] sm:$0xf]
  %v961 = vld [vmem:[%s9 + $0x14] sm:$0xf]
  %v962 = vld [vmem:[%s9 + $0x18] sm:$0xf]
  %v963 = vld [vmem:[%s9 + $0x1c] sm:$0xf]
  %v964 = vld [vmem:[%s9 + $0x20] sm:$0xf]
  %v965 = vld [vmem:[%s9 + $0x24] sm:$0xf]
  %v966 = vld [vmem:[%s9 + $0x28] sm:$0xf]
  %v967 = vld [vmem:[%s9 + $0x2c] sm:$0xf]
  %v968 = vld [vmem:[%s9 + $0x30] sm:$0xf]
  %v969 = vld [vmem:[%s9 + $0x34] sm:$0xf]
  %v970 = vld [vmem:[%s9 + $0x38] sm:$0xf]
  %v971 = vld [vmem:[%s9 + $0x3c] sm:$0xf]
  %v972 = vld [vmem:[%s9 + $0x40] sm:$0xf]
  %v973 = vld [vmem:[%s9 + $0x44] sm:$0xf]
  %v974 = vld [vmem:[%s9 + $0x48] sm:$0xf]
  %v975 = vld [vmem:[%s9 + $0x4c] sm:$0xf]
  %v976 = vld [vmem:[%s9 + $0x50] sm:$0xf]
  %v977 = vld [vmem:[%s9 + $0x54] sm:$0xf]
  %v978 = vld [vmem:[%s9 + $0x58] sm:$0xf]
  %v979 = vld [vmem:[%s9 + $0x5c] sm:$0xf]
  %v980 = vld [vmem:[%s9 + $0x60] sm:$0xf]
  %v981 = vld [vmem:[%s9 + $0x64] sm:$0xf]
  %v982 = vld [vmem:[%s9 + $0x68] sm:$0xf]
  %v983 = vld [vmem:[%s9 + $0x6c] sm:$0xf]
  %v984 = vld [vmem:[%s9 + $0x70] sm:$0xf]
  %v985 = vld [vmem:[%s9 + $0x74] sm:$0xf]
  %v986 = vld [vmem:[%s9 + $0x78] sm:$0xf]
  %v987 = vld [vmem:[%s9 + $0x7c] sm:$0xf]
  %v988 = vld [vmem:[%s10] sm:$0x1]
  %v989 = vpack.c.bf16 %v954, %v952
  %v990 = vpack.c.bf16 %v955, %v953
  %v992 = vlaneseq
  %v993 = vshrl.u32 %v992, 7
  %v994 = vsub.s32 0, %v993
  %v995 = vrot.slane %v988, %v994
  %v1029 = vunpack.c.l.b16 %v956
  %v1030 = vunpack.c.l.b16 %v957
  %v1031 = vunpack.c.l.b16 %v958
  %v1032 = vunpack.c.l.b16 %v959
  %v1033 = vunpack.c.l.b16 %v960
  %v1034 = vunpack.c.l.b16 %v961
  %v1035 = vunpack.c.l.b16 %v962
  %v1036 = vunpack.c.l.b16 %v963
  %v1037 = vunpack.c.l.b16 %v964
  %v1038 = vunpack.c.l.b16 %v965
  %v1039 = vunpack.c.l.b16 %v966
  %v1040 = vunpack.c.l.b16 %v967
  %v1041 = vunpack.c.l.b16 %v968
  %v1042 = vunpack.c.l.b16 %v969
  %v1043 = vunpack.c.l.b16 %v970
  %v1044 = vunpack.c.l.b16 %v971
  %v1045 = vunpack.c.l.b16 %v972
  %v1046 = vunpack.c.l.b16 %v973
  %v1047 = vunpack.c.l.b16 %v974
  %v1048 = vunpack.c.l.b16 %v975
  %v1049 = vunpack.c.l.b16 %v976
  %v1050 = vunpack.c.l.b16 %v977
  %v1051 = vunpack.c.l.b16 %v978
  %v1052 = vunpack.c.l.b16 %v979
  %v1053 = vunpack.c.l.b16 %v980
  %v1054 = vunpack.c.l.b16 %v981
  %v1055 = vunpack.c.l.b16 %v982
  %v1056 = vunpack.c.l.b16 %v983
  %v1057 = vunpack.c.l.b16 %v984
  %v1058 = vunpack.c.l.b16 %v985
  %v1059 = vunpack.c.l.b16 %v986
  %v1060 = vunpack.c.l.b16 %v987
  %v1061 = vpack.c.b16 %v1030, %v1029
  %v1062 = vpack.c.b16 %v1032, %v1031
  %v1063 = vpack.c.b16 %v1034, %v1033
  %v1064 = vpack.c.b16 %v1036, %v1035
  %v1065 = vpack.c.b16 %v1038, %v1037
  %v1066 = vpack.c.b16 %v1040, %v1039
  %v1067 = vpack.c.b16 %v1042, %v1041
  %v1068 = vpack.c.b16 %v1044, %v1043
  %v1069 = vpack.c.b16 %v1046, %v1045
  %v1070 = vpack.c.b16 %v1048, %v1047
  %v1071 = vpack.c.b16 %v1050, %v1049
  %v1072 = vpack.c.b16 %v1052, %v1051
  %v1073 = vpack.c.b16 %v1054, %v1053
  %v1074 = vpack.c.b16 %v1056, %v1055
  %v1075 = vpack.c.b16 %v1058, %v1057
  %v1076 = vpack.c.b16 %v1060, %v1059
  %1093 = vmatprep.subr.bf16.mxu0 0
  %1094 = vmatpush1.bf16.msra.mxu0 %v1061
  %1095 = vmatprep.subr.bf16.mxu0 0
  %1096 = vmatpush1.bf16.msra.mxu0 %v1062
  %1097 = vmatprep.subr.bf16.mxu0 0
  %1098 = vmatpush1.bf16.msra.mxu0 %v1063
  %1099 = vmatprep.subr.bf16.mxu0 0
  %1100 = vmatpush1.bf16.msra.mxu0 %v1064
  %1101 = vmatprep.subr.bf16.mxu0 0
  %1102 = vmatpush1.bf16.msra.mxu0 %v1065
  %1103 = vmatprep.subr.bf16.mxu0 0
  %1104 = vmatpush1.bf16.msra.mxu0 %v1066
  %1105 = vmatprep.subr.bf16.mxu0 0
  %1106 = vmatpush1.bf16.msra.mxu0 %v1067
  %1107 = vmatprep.subr.bf16.mxu0 0
  %1108 = vmatpush1.bf16.msra.mxu0 %v1068
  %1109 = vmatprep.subr.bf16.mxu0 0
  %1110 = vmatpush1.bf16.msra.mxu0 %v1069
  %1111 = vmatprep.subr.bf16.mxu0 0
  %1112 = vmatpush1.bf16.msra.mxu0 %v1070
  %1113 = vmatprep.subr.bf16.mxu0 0
  %1114 = vmatpush1.bf16.msra.mxu0 %v1071
  %1115 = vmatprep.subr.bf16.mxu0 0
  %1116 = vmatpush1.bf16.msra.mxu0 %v1072
  %1117 = vmatprep.subr.bf16.mxu0 0
  %1118 = vmatpush1.bf16.msra.mxu0 %v1073
  %1119 = vmatprep.subr.bf16.mxu0 0
  %1120 = vmatpush1.bf16.msra.mxu0 %v1074
  %1121 = vmatprep.subr.bf16.mxu0 0
  %1122 = vmatpush1.bf16.msra.mxu0 %v1075
  %1123 = vmatprep.subr.bf16.mxu0 0
  %1124 = vmatpush1.bf16.msra.mxu0 %v1076
  %1125 = vmatprep.mubr.bf16.mxu0 %v990
  %1126 = vmatmul.mubr.bf16.gmra.mrb[0].mxu0 %v989
  %v1127 = vpop.f32.mrb[0].mxu0
  %v1128 = vadd.f32 %v995, %v1127
  %v1129 = vpop.f32.mrb[0].mxu0
  %v1130 = vpop.f32.mrb[0].mxu0
  %v1131 = vadd.f32 %v995, %v1130
  %v1132 = vpop.f32.mrb[0].mxu0
  %1133 = vdwg.mxu0
  %1134 = vst [vmem:[%s11] sm:$0xff] %v1128
  %1135 = vst [vmem:[%s11 + $0x8] sm:$0xff] %v1131
  // Predicated region
  $region46: #{transformer2d_forward.41} parent=0 // pred_check
    _
  $region47: #{transformer2d_forward.41} parent=0 // pred_check_branch
    %1137 = sbr.rel (0) target = $region49
  $region48: #{transformer2d_forward.41} parent=0 // pred_region
    _
  $region49: #{transformer2d_forward.41} parent=0 // pred_fallthru
    _
  // Predicated region
  $region50: #{transformer2d_forward.41} parent=0 // pred_check
    _
  $region51: #{transformer2d_forward.41} parent=0 // pred_check_branch
    %1139 = sbr.rel (0) target = $region53
  $region52: #{transformer2d_forward.41} parent=0 // pred_region
    _
  $region53: #{transformer2d_forward.41} parent=0 // pred_fallthru
    _

// kernel: transformer2d_forward.52
$region0: #{transformer2d_forward.52}
  #allocation0 [shape = 'u32[]', space=smem, size = 0x4, offset = 0x4, fixed_abs, tag = 'smem constant byte address 0x4 - core index']
  #allocation1 [shape = 'u32[144,128]{1,0:T(1,128)}', space=vmem, size = 0x12000, scoped, tag = 'internal scratch']
  %s0 = inlined_call_operand.vmem [shape: f32[16,128], index: 0, kind: input, shape index: {}]
  %s1 = inlined_call_operand.vmem [shape: bf16[128,128], index: 1, kind: input, shape index: {}]
  %s2 = inlined_call_operand.vmem [shape: f32[1,128], index: 2, kind: input, shape index: {}]
  %s3 = inlined_call_operand.vmem [shape: f32[16,128], index: 3, kind: input, shape index: {}]
  %s4 = inlined_call_operand.vmem [shape: f32[1,128], index: 4, kind: input, shape index: {}]
  %s5 = inlined_call_operand.vmem [shape: f32[1,128], index: 5, kind: input, shape index: {}]
  %s6 = inlined_call_operand.vmem [shape: f32[16,128], index: 6, kind: output, shape index: {}]
  %s7 = sld [smem:[#allocation0]]
  $region34: #{transformer2d_forward.52} parent=0
    _
  %s9 = ssub.s32 1, %s7
  %s10 = scalar_select 0, %s9, %s7
  // Predicated region
  $region2: #{transformer2d_forward.52} parent=0 // pred_check
    _
  $region3: #{transformer2d_forward.52} parent=0 // pred_check_branch
    %12 = sbr.rel (0) target = $region5
  $region4: #{transformer2d_forward.52} parent=0 // pred_region
    _
  $region5: #{transformer2d_forward.52} parent=0 // pred_fallthru
    _
  // Predicated region
  $region6: #{transformer2d_forward.52} parent=0 // pred_check
    _
  $region7: #{transformer2d_forward.52} parent=0 // pred_check_branch
    %14 = sbr.rel (0) target = $region9
  $region8: #{transformer2d_forward.52} parent=0 // pred_region
    _
  $region9: #{transformer2d_forward.52} parent=0 // pred_fallthru
    _
  // Predicated region
  $region10: #{transformer2d_forward.52} parent=0 // pred_check
    _
  $region11: #{transformer2d_forward.52} parent=0 // pred_check_branch
    %16 = sbr.rel (0) target = $region13
  $region12: #{transformer2d_forward.52} parent=0 // pred_region
    _
  $region13: #{transformer2d_forward.52} parent=0 // pred_fallthru
    _
  // Predicated region
  $region14: #{transformer2d_forward.52} parent=0 // pred_check
    _
  $region15: #{transformer2d_forward.52} parent=0 // pred_check_branch
    %18 = sbr.rel (0) target = $region17
  $region16: #{transformer2d_forward.52} parent=0 // pred_region
    _
  $region17: #{transformer2d_forward.52} parent=0 // pred_fallthru
    _
  // Predicated region
  $region18: #{transformer2d_forward.52} parent=0 // pred_check
    _
  $region19: #{transformer2d_forward.52} parent=0 // pred_check_branch
    %20 = sbr.rel (0) target = $region21
  $region20: #{transformer2d_forward.52} parent=0 // pred_region
    _
  $region21: #{transformer2d_forward.52} parent=0 // pred_fallthru
    _
  // Predicated region
  $region22: #{transformer2d_forward.52} parent=0 // pred_check
    _
  $region23: #{transformer2d_forward.52} parent=0 // pred_check_branch
    %22 = sbr.rel (0) target = $region25
  $region24: #{transformer2d_forward.52} parent=0 // pred_region
    _
  $region25: #{transformer2d_forward.52} parent=0 // pred_fallthru
    _
  %v24 = vld [vmem:[%s0] sm:$0xff]
  %v25 = vld [vmem:[%s0 + $0x8] sm:$0xff]
  %v26 = vld [vmem:[%s1] sm:$0xf]
  %v27 = vld [vmem:[%s1 + $0x4] sm:$0xf]
  %v28 = vld [vmem:[%s1 + $0x8] sm:$0xf]
  %v29 = vld [vmem:[%s1 + $0xc] sm:$0xf]
  %v30 = vld [vmem:[%s1 + $0x10] sm:$0xf]
  %v31 = vld [vmem:[%s1 + $0x14] sm:$0xf]
  %v32 = vld [vmem:[%s1 + $0x18] sm:$0xf]
  %v33 = vld [vmem:[%s1 + $0x1c] sm:$0xf]
  %v34 = vld [vmem:[%s1 + $0x20] sm:$0xf]
  %v35 = vld [vmem:[%s1 + $0x24] sm:$0xf]
  %v36 = vld [vmem:[%s1 + $0x28] sm:$0xf]
  %v37 = vld [vmem:[%s1 + $0x2c] sm:$0xf]
  %v38 = vld [vmem:[%s1 + $0x30] sm:$0xf]
  %v39 = vld [vmem:[%s1 + $0x34] sm:$0xf]
  %v40 = vld [vmem:[%s1 + $0x38] sm:$0xf]
  %v41 = vld [vmem:[%s1 + $0x3c] sm:$0xf]
  %v42 = vld [vmem:[%s2] sm:$0x1]
  %v43 = vpack.c.bf16 %v25, %v24
  %v45 = vlaneseq
  %v46 = vshrl.u32 %v45, 7
  %v47 = vsub.s32 0, %v46
  %v48 = vrot.slane %v42, %v47
  %v66 = vunpack.c.l.b16 %v26
  %v67 = vunpack.c.l.b16 %v27
  %v68 = vunpack.c.l.b16 %v28
  %v69 = vunpack.c.l.b16 %v29
  %v70 = vunpack.c.l.b16 %v30
  %v71 = vunpack.c.l.b16 %v31
  %v72 = vunpack.c.l.b16 %v32
  %v73 = vunpack.c.l.b16 %v33
  %v74 = vunpack.c.l.b16 %v34
  %v75 = vunpack.c.l.b16 %v35
  %v76 = vunpack.c.l.b16 %v36
  %v77 = vunpack.c.l.b16 %v37
  %v78 = vunpack.c.l.b16 %v38
  %v79 = vunpack.c.l.b16 %v39
  %v80 = vunpack.c.l.b16 %v40
  %v81 = vunpack.c.l.b16 %v41
  %v82 = vpack.c.b16 %v67, %v66
  %v83 = vpack.c.b16 %v69, %v68
  %v84 = vpack.c.b16 %v71, %v70
  %v85 = vpack.c.b16 %v73, %v72
  %v86 = vpack.c.b16 %v75, %v74
  %v87 = vpack.c.b16 %v77, %v76
  %v88 = vpack.c.b16 %v79, %v78
  %v89 = vpack.c.b16 %v81, %v80
  %98 = vmatprep.subr.bf16.mxu0 0
  %99 = vmatpush1.bf16.msra.mxu0 %v82
  %100 = vmatprep.subr.bf16.mxu0 0
  %101 = vmatpush1.bf16.msra.mxu0 %v83
  %102 = vmatprep.subr.bf16.mxu0 0
  %103 = vmatpush1.bf16.msra.mxu0 %v84
  %104 = vmatprep.subr.bf16.mxu0 0
  %105 = vmatpush1.bf16.msra.mxu0 %v85
  %106 = vmatprep.subr.bf16.mxu0 0
  %107 = vmatpush1.bf16.msra.mxu0 %v86
  %108 = vmatprep.subr.bf16.mxu0 0
  %109 = vmatpush1.bf16.msra.mxu0 %v87
  %110 = vmatprep.subr.bf16.mxu0 0
  %111 = vmatpush1.bf16.msra.mxu0 %v88
  %112 = vmatprep.subr.bf16.mxu0 0
  %113 = vmatpush1.bf16.msra.mxu0 %v89
  %114 = vmatprep.subr.bf16.mxu0 0
  %115 = vmatpush1.bf16.msra.mxu0 0
  %116 = vmatprep.subr.bf16.mxu0 0
  %117 = vmatpush1.bf16.msra.mxu0 0
  %118 = vmatprep.subr.bf16.mxu0 0
  %119 = vmatpush1.bf16.msra.mxu0 0
  %120 = vmatprep.subr.bf16.mxu0 0
  %121 = vmatpush1.bf16.msra.mxu0 0
  %122 = vmatprep.subr.bf16.mxu0 0
  %123 = vmatpush1.bf16.msra.mxu0 0
  %124 = vmatprep.subr.bf16.mxu0 0
  %125 = vmatpush1.bf16.msra.mxu0 0
  %126 = vmatprep.subr.bf16.mxu0 0
  %127 = vmatpush1.bf16.msra.mxu0 0
  %128 = vmatprep.subr.bf16.mxu0 0
  %129 = vmatpush1.bf16.msra.mxu0 0
  %130 = vmatprep.mubr.bf16.mxu0 0
  %131 = vmatmul.mubr.bf16.gmra.mrb[0].mxu0 %v43
  %v132 = vpop.f32.mrb[0].mxu0
  %v133 = vadd.f32 %v48, %v132
  %v134 = vpop.f32.mrb[0].mxu0
  %v135 = vpop.f32.mrb[0].mxu0
  %v136 = vadd.f32 %v48, %v135
  %v137 = vpop.f32.mrb[0].mxu0
  %138 = vdwg.mxu0
  %v139 = vld [vmem:[%s3] sm:$0xff]
  %v140 = vld [vmem:[%s3 + $0x8] sm:$0xff]
  %v141 = vadd.f32 %v133, %v139
  %v142 = vadd.f32 %v136, %v140
  %143 = vadd.xlane.f32.xlu0 %v141
  %v144 = vpop.xlane.xlu0 %143
  %145 = vadd.xlane.f32.xlu0 %v142
  %v146 = vpop.xlane.xlu0 %145
  %v147 = vrcp.pop 128.0
  %v148 = vmul.f32 %v144, %v147
  %v149 = vmul.f32 %v146, %v147
  %v150 = vsub.f32 %v141, %v148
  %v151 = vsub.f32 %v142, %v149
  %v152 = vmul.f32 %v150, %v150
  %v153 = vmul.f32 %v151, %v151
  %154 = vadd.xlane.f32.xlu0 %v152
  %v155 = vpop.xlane.xlu0 %154
  %156 = vadd.xlane.f32.xlu0 %v153
  %v157 = vpop.xlane.xlu0 %156
  %v158 = vmul.f32 %v155, %v147
  %v159 = vmul.f32 %v157, %v147
  %v160 = vadd.f32 %v158, 1e-05
  %v161 = vadd.f32 %v159, 1e-05
  %v162 = vrsqrt.pop %v160
  %v163 = vrsqrt.pop %v161
  %v164 = vmul.f32 %v150, %v162
  %v165 = vmul.f32 %v151, %v163
  %v166 = vld [vmem:[%s4] sm:$0x1]
  %v168 = vlaneseq
  %v169 = vshrl.u32 %v168, 7
  %v170 = vsub.s32 0, %v169
  %v171 = vrot.slane %v166, %v170
  %v173 = vmul.f32 %v164, %v171
  %v174 = vmul.f32 %v165, %v171
  %v175 = vld [vmem:[%s5] sm:$0x1]
  %v177 = vlaneseq
  %v178 = vshrl.u32 %v177, 7
  %v179 = vsub.s32 0, %v178
  %v180 = vrot.slane %v175, %v179
  %v182 = vadd.f32 %v173, %v180
  %v183 = vadd.f32 %v174, %v180
  %184 = vst [vmem:[%s6] sm:$0xff] %v182
  %185 = vst [vmem:[%s6 + $0x8] sm:$0xff] %v183
  // Predicated region
  $region26: #{transformer2d_forward.52} parent=0 // pred_check
    _
  $region27: #{transformer2d_forward.52} parent=0 // pred_check_branch
    %187 = sbr.rel (0) target = $region29
  $region28: #{transformer2d_forward.52} parent=0 // pred_region
    _
  $region29: #{transformer2d_forward.52} parent=0 // pred_fallthru
    _
  // Predicated region
  $region30: #{transformer2d_forward.52} parent=0 // pred_check
    _
  $region31: #{transformer2d_forward.52} parent=0 // pred_check_branch
    %189 = sbr.rel (0) target = $region33
  $region32: #{transformer2d_forward.52} parent=0 // pred_region
    _
  $region33: #{transformer2d_forward.52} parent=0 // pred_fallthru
    _

// kernel: transformer2d_forward.53
$region0: #{transformer2d_forward.53}
  #allocation0 [shape = 'u32[]', space=smem, size = 0x4, offset = 0x4, fixed_abs, tag = 'smem constant byte address 0x4 - core index']
  #allocation1 [shape = 'u32[144,128]{1,0:T(1,128)}', space=vmem, size = 0x12000, scoped, tag = 'internal scratch']
  %s0 = inlined_call_operand.vmem [shape: f32[16,128], index: 0, kind: input, shape index: {}]
  %s1 = inlined_call_operand.vmem [shape: bf16[128,256], index: 1, kind: input, shape index: {}]
  %s2 = inlined_call_operand.vmem [shape: f32[1,256], index: 2, kind: input, shape index: {}]
  %s3 = inlined_call_operand.vmem [shape: bf16[256,128], index: 3, kind: input, shape index: {}]
  %s4 = inlined_call_operand.vmem [shape: f32[1,128], index: 4, kind: input, shape index: {}]
  %s5 = inlined_call_operand.vmem [shape: f32[1,128], index: 5, kind: input, shape index: {}]
  %s6 = inlined_call_operand.vmem [shape: f32[1,128], index: 6, kind: input, shape index: {}]
  %s7 = inlined_call_operand.vmem [shape: f32[16,128], index: 7, kind: output, shape index: {}]
  %s8 = sld [smem:[#allocation0]]
  $region38: #{transformer2d_forward.53} parent=0
    _
  %s10 = ssub.s32 1, %s8
  %s11 = scalar_select 0, %s10, %s8
  // Predicated region
  $region2: #{transformer2d_forward.53} parent=0 // pred_check
    _
  $region3: #{transformer2d_forward.53} parent=0 // pred_check_branch
    %13 = sbr.rel (0) target = $region5
  $region4: #{transformer2d_forward.53} parent=0 // pred_region
    _
  $region5: #{transformer2d_forward.53} parent=0 // pred_fallthru
    _
  // Predicated region
  $region6: #{transformer2d_forward.53} parent=0 // pred_check
    _
  $region7: #{transformer2d_forward.53} parent=0 // pred_check_branch
    %15 = sbr.rel (0) target = $region9
  $region8: #{transformer2d_forward.53} parent=0 // pred_region
    _
  $region9: #{transformer2d_forward.53} parent=0 // pred_fallthru
    _
  // Predicated region
  $region10: #{transformer2d_forward.53} parent=0 // pred_check
    _
  $region11: #{transformer2d_forward.53} parent=0 // pred_check_branch
    %17 = sbr.rel (0) target = $region13
  $region12: #{transformer2d_forward.53} parent=0 // pred_region
    _
  $region13: #{transformer2d_forward.53} parent=0 // pred_fallthru
    _
  // Predicated region
  $region14: #{transformer2d_forward.53} parent=0 // pred_check
    _
  $region15: #{transformer2d_forward.53} parent=0 // pred_check_branch
    %19 = sbr.rel (0) target = $region17
  $region16: #{transformer2d_forward.53} parent=0 // pred_region
    _
  $region17: #{transformer2d_forward.53} parent=0 // pred_fallthru
    _
  // Predicated region
  $region18: #{transformer2d_forward.53} parent=0 // pred_check
    _
  $region19: #{transformer2d_forward.53} parent=0 // pred_check_branch
    %21 = sbr.rel (0) target = $region21
  $region20: #{transformer2d_forward.53} parent=0 // pred_region
    _
  $region21: #{transformer2d_forward.53} parent=0 // pred_fallthru
    _
  // Predicated region
  $region22: #{transformer2d_forward.53} parent=0 // pred_check
    _
  $region23: #{transformer2d_forward.53} parent=0 // pred_check_branch
    %23 = sbr.rel (0) target = $region25
  $region24: #{transformer2d_forward.53} parent=0 // pred_region
    _
  $region25: #{transformer2d_forward.53} parent=0 // pred_fallthru
    _
  // Predicated region
  $region26: #{transformer2d_forward.53} parent=0 // pred_check
    _
  $region27: #{transformer2d_forward.53} parent=0 // pred_check_branch
    %25 = sbr.rel (0) target = $region29
  $region28: #{transformer2d_forward.53} parent=0 // pred_region
    _
  $region29: #{transformer2d_forward.53} parent=0 // pred_fallthru
    _
  %v27 = vld [vmem:[%s0] sm:$0xff]
  %v28 = vld [vmem:[%s0 + $0x8] sm:$0xff]
  %v29 = vld [vmem:[%s1] sm:$0xff]
  %v30 = vld [vmem:[%s1 + $0x8] sm:$0xff]
  %v31 = vld [vmem:[%s1 + $0x10] sm:$0xff]
  %v32 = vld [vmem:[%s1 + $0x18] sm:$0xff]
  %v33 = vld [vmem:[%s1 + $0x20] sm:$0xff]
  %v34 = vld [vmem:[%s1 + $0x28] sm:$0xff]
  %v35 = vld [vmem:[%s1 + $0x30] sm:$0xff]
  %v36 = vld [vmem:[%s1 + $0x38] sm:$0xff]
  %v37 = vld [vmem:[%s1 + $0x40] sm:$0xff]
  %v38 = vld [vmem:[%s1 + $0x48] sm:$0xff]
  %v39 = vld [vmem:[%s1 + $0x50] sm:$0xff]
  %v40 = vld [vmem:[%s1 + $0x58] sm:$0xff]
  %v41 = vld [vmem:[%s1 + $0x60] sm:$0xff]
  %v42 = vld [vmem:[%s1 + $0x68] sm:$0xff]
  %v43 = vld [vmem:[%s1 + $0x70] sm:$0xff]
  %v44 = vld [vmem:[%s1 + $0x78] sm:$0xff]
  %v45 = vld [vmem:[%s2] sm:$0x3]
  %v46 = vpack.c.bf16 %v28, %v27
  %v48 = vlaneseq
  %v49 = vshrl.u32 %v48, 7
  %v50 = vsub.s32 0, %v49
  %v51 = vrot.slane %v45, %v50
  %v52 = vlaneseq
  %v53 = vshrl.u32 %v52, 7
  %v54 = vsub.s32 1, %v53
  %v55 = vrot.slane %v45, %v54
  %v74 = vunpack.c.l.b16 %v29
  %v75 = vunpack.c.h.b16 %v29
  %v76 = vunpack.c.l.b16 %v30
  %v77 = vunpack.c.h.b16 %v30
  %v78 = vunpack.c.l.b16 %v31
  %v79 = vunpack.c.h.b16 %v31
  %v80 = vunpack.c.l.b16 %v32
  %v81 = vunpack.c.h.b16 %v32
  %v82 = vunpack.c.l.b16 %v33
  %v83 = vunpack.c.h.b16 %v33
  %v84 = vunpack.c.l.b16 %v34
  %v85 = vunpack.c.h.b16 %v34
  %v86 = vunpack.c.l.b16 %v35
  %v87 = vunpack.c.h.b16 %v35
  %v88 = vunpack.c.l.b16 %v36
  %v89 = vunpack.c.h.b16 %v36
  %v90 = vunpack.c.l.b16 %v37
  %v91 = vunpack.c.h.b16 %v37
  %v92 = vunpack.c.l.b16 %v38
  %v93 = vunpack.c.h.b16 %v38
  %v94 = vunpack.c.l.b16 %v39
  %v95 = vunpack.c.h.b16 %v39
  %v96 = vunpack.c.l.b16 %v40
  %v97 = vunpack.c.h.b16 %v40
  %v98 = vunpack.c.l.b16 %v41
  %v99 = vunpack.c.h.b16 %v41
  %v100 = vunpack.c.l.b16 %v42
  %v101 = vunpack.c.h.b16 %v42
  %v102 = vunpack.c.l.b16 %v43
  %v103 = vunpack.c.h.b16 %v43
  %v104 = vunpack.c.l.b16 %v44
  %v105 = vunpack.c.h.b16 %v44
  %v106 = vpack.c.b16 %v76, %v74
  %v107 = vpack.c.b16 %v77, %v75
  %v108 = vpack.c.b16 %v80, %v78
  %v109 = vpack.c.b16 %v81, %v79
  %v110 = vpack.c.b16 %v84, %v82
  %v111 = vpack.c.b16 %v85, %v83
  %v112 = vpack.c.b16 %v88, %v86
  %v113 = vpack.c.b16 %v89, %v87
  %v114 = vpack.c.b16 %v92, %v90
  %v115 = vpack.c.b16 %v93, %v91
  %v116 = vpack.c.b16 %v96, %v94
  %v117 = vpack.c.b16 %v97, %v95
  %v118 = vpack.c.b16 %v100, %v98
  %v119 = vpack.c.b16 %v101, %v99
  %v120 = vpack.c.b16 %v104, %v102
  %v121 = vpack.c.b16 %v105, %v103
  %138 = vmatprep.subr.bf16.mxu0 %v107
  %139 = vmatpush1.bf16.msra.mxu0 %v106
  %140 = vmatprep.subr.bf16.mxu0 %v109
  %141 = vmatpush1.bf16.msra.mxu0 %v108
  %142 = vmatprep.subr.bf16.mxu0 %v111
  %143 = vmatpush1.bf16.msra.mxu0 %v110
  %144 = vmatprep.subr.bf16.mxu0 %v113
  %145 = vmatpush1.bf16.msra.mxu0 %v112
  %146 = vmatprep.subr.bf16.mxu0 %v115
  %147 = vmatpush1.bf16.msra.mxu0 %v114
  %148 = vmatprep.subr.bf16.mxu0 %v117
  %149 = vmatpush1.bf16.msra.mxu0 %v116
  %150 = vmatprep.subr.bf16.mxu0 %v119
  %151 = vmatpush1.bf16.msra.mxu0 %v118
  %152 = vmatprep.subr.bf16.mxu0 %v121
  %153 = vmatpush1.bf16.msra.mxu0 %v120
  %154 = vmatprep.subr.bf16.mxu0 0
  %155 = vmatpush1.bf16.msra.mxu0 0
  %156 = vmatprep.subr.bf16.mxu0 0
  %157 = vmatpush1.bf16.msra.mxu0 0
  %158 = vmatprep.subr.bf16.mxu0 0
  %159 = vmatpush1.bf16.msra.mxu0 0
  %160 = vmatprep.subr.bf16.mxu0 0
  %161 = vmatpush1.bf16.msra.mxu0 0
  %162 = vmatprep.subr.bf16.mxu0 0
  %163 = vmatpush1.bf16.msra.mxu0 0
  %164 = vmatprep.subr.bf16.mxu0 0
  %165 = vmatpush1.bf16.msra.mxu0 0
  %166 = vmatprep.subr.bf16.mxu0 0
  %167 = vmatpush1.bf16.msra.mxu0 0
  %168 = vmatprep.subr.bf16.mxu0 0
  %169 = vmatpush1.bf16.msra.mxu0 0
  %170 = vmatprep.mubr.bf16.mxu0 0
  %171 = vmatmul.mubr.bf16.gmra.mrb[0].mxu0 %v46
  %v172 = vpop.f32.mrb[0].mxu0
  %v173 = vadd.f32 %v51, %v172
  %v174 = vpop.f32.mrb[0].mxu0
  %v175 = vadd.f32 %v55, %v174
  %v176 = vpop.f32.mrb[0].mxu0
  %v177 = vadd.f32 %v51, %v176
  %v178 = vpop.f32.mrb[0].mxu0
  %v179 = vadd.f32 %v55, %v178
  %180 = vdwg.mxu0
  %v181 = vmax.f32 %v173, 0.0
  %v182 = vmax.f32 %v175, 0.0
  %v183 = vmax.f32 %v177, 0.0
  %v184 = vmax.f32 %v179, 0.0
  %v185 = vld [vmem:[%s3] sm:$0xf]
  %v186 = vld [vmem:[%s3 + $0x4] sm:$0xf]
  %v187 = vld [vmem:[%s3 + $0x8] sm:$0xf]
  %v188 = vld [vmem:[%s3 + $0xc] sm:$0xf]
  %v189 = vld [vmem:[%s3 + $0x10] sm:$0xf]
  %v190 = vld [vmem:[%s3 + $0x14] sm:$0xf]
  %v191 = vld [vmem:[%s3 + $0x18] sm:$0xf]
  %v192 = vld [vmem:[%s3 + $0x1c] sm:$0xf]
  %v193 = vld [vmem:[%s3 + $0x20] sm:$0xf]
  %v194 = vld [vmem:[%s3 + $0x24] sm:$0xf]
  %v195 = vld [vmem:[%s3 + $0x28] sm:$0xf]
  %v196 = vld [vmem:[%s3 + $0x2c] sm:$0xf]
  %v197 = vld [vmem:[%s3 + $0x30] sm:$0xf]
  %v198 = vld [vmem:[%s3 + $0x34] sm:$0xf]
  %v199 = vld [vmem:[%s3 + $0x38] sm:$0xf]
  %v200 = vld [vmem:[%s3 + $0x3c] sm:$0xf]
  %v201 = vld [vmem:[%s3 + $0x40] sm:$0xf]
  %v202 = vld [vmem:[%s3 + $0x44] sm:$0xf]
  %v203 = vld [vmem:[%s3 + $0x48] sm:$0xf]
  %v204 = vld [vmem:[%s3 + $0x4c] sm:$0xf]
  %v205 = vld [vmem:[%s3 + $0x50] sm:$0xf]
  %v206 = vld [vmem:[%s3 + $0x54] sm:$0xf]
  %v207 = vld [vmem:[%s3 + $0x58] sm:$0xf]
  %v208 = vld [vmem:[%s3 + $0x5c] sm:$0xf]
  %v209 = vld [vmem:[%s3 + $0x60] sm:$0xf]
  %v210 = vld [vmem:[%s3 + $0x64] sm:$0xf]
  %v211 = vld [vmem:[%s3 + $0x68] sm:$0xf]
  %v212 = vld [vmem:[%s3 + $0x6c] sm:$0xf]
  %v213 = vld [vmem:[%s3 + $0x70] sm:$0xf]
  %v214 = vld [vmem:[%s3 + $0x74] sm:$0xf]
  %v215 = vld [vmem:[%s3 + $0x78] sm:$0xf]
  %v216 = vld [vmem:[%s3 + $0x7c] sm:$0xf]
  %v217 = vld [vmem:[%s4] sm:$0x1]
  %v218 = vpack.c.bf16 %v183, %v181
  %v219 = vpack.c.bf16 %v184, %v182
  %v221 = vlaneseq
  %v222 = vshrl.u32 %v221, 7
  %v223 = vsub.s32 0, %v222
  %v224 = vrot.slane %v217, %v223
  %v258 = vunpack.c.l.b16 %v185
  %v259 = vunpack.c.l.b16 %v186
  %v260 = vunpack.c.l.b16 %v187
  %v261 = vunpack.c.l.b16 %v188
  %v262 = vunpack.c.l.b16 %v189
  %v263 = vunpack.c.l.b16 %v190
  %v264 = vunpack.c.l.b16 %v191
  %v265 = vunpack.c.l.b16 %v192
  %v266 = vunpack.c.l.b16 %v193
  %v267 = vunpack.c.l.b16 %v194
  %v268 = vunpack.c.l.b16 %v195
  %v269 = vunpack.c.l.b16 %v196
  %v270 = vunpack.c.l.b16 %v197
  %v271 = vunpack.c.l.b16 %v198
  %v272 = vunpack.c.l.b16 %v199
  %v273 = vunpack.c.l.b16 %v200
  %v274 = vunpack.c.l.b16 %v201
  %v275 = vunpack.c.l.b16 %v202
  %v276 = vunpack.c.l.b16 %v203
  %v277 = vunpack.c.l.b16 %v204
  %v278 = vunpack.c.l.b16 %v205
  %v279 = vunpack.c.l.b16 %v206
  %v280 = vunpack.c.l.b16 %v207
  %v281 = vunpack.c.l.b16 %v208
  %v282 = vunpack.c.l.b16 %v209
  %v283 = vunpack.c.l.b16 %v210
  %v284 = vunpack.c.l.b16 %v211
  %v285 = vunpack.c.l.b16 %v212
  %v286 = vunpack.c.l.b16 %v213
  %v287 = vunpack.c.l.b16 %v214
  %v288 = vunpack.c.l.b16 %v215
  %v289 = vunpack.c.l.b16 %v216
  %v290 = vpack.c.b16 %v259, %v258
  %v291 = vpack.c.b16 %v261, %v260
  %v292 = vpack.c.b16 %v263, %v262
  %v293 = vpack.c.b16 %v265, %v264
  %v294 = vpack.c.b16 %v267, %v266
  %v295 = vpack.c.b16 %v269, %v268
  %v296 = vpack.c.b16 %v271, %v270
  %v297 = vpack.c.b16 %v273, %v272
  %v298 = vpack.c.b16 %v275, %v274
  %v299 = vpack.c.b16 %v277, %v276
  %v300 = vpack.c.b16 %v279, %v278
  %v301 = vpack.c.b16 %v281, %v280
  %v302 = vpack.c.b16 %v283, %v282
  %v303 = vpack.c.b16 %v285, %v284
  %v304 = vpack.c.b16 %v287, %v286
  %v305 = vpack.c.b16 %v289, %v288
  %322 = vmatprep.subr.bf16.mxu0 0
  %323 = vmatpush1.bf16.msra.mxu0 %v290
  %324 = vmatprep.subr.bf16.mxu0 0
  %325 = vmatpush1.bf16.msra.mxu0 %v291
  %326 = vmatprep.subr.bf16.mxu0 0
  %327 = vmatpush1.bf16.msra.mxu0 %v292
  %328 = vmatprep.subr.bf16.mxu0 0
  %329 = vmatpush1.bf16.msra.mxu0 %v293
  %330 = vmatprep.subr.bf16.mxu0 0
  %331 = vmatpush1.bf16.msra.mxu0 %v294
  %332 = vmatprep.subr.bf16.mxu0 0
  %333 = vmatpush1.bf16.msra.mxu0 %v295
  %334 = vmatprep.subr.bf16.mxu0 0
  %335 = vmatpush1.bf16.msra.mxu0 %v296
  %336 = vmatprep.subr.bf16.mxu0 0
  %337 = vmatpush1.bf16.msra.mxu0 %v297
  %338 = vmatprep.subr.bf16.mxu0 0
  %339 = vmatpush1.bf16.msra.mxu0 %v298
  %340 = vmatprep.subr.bf16.mxu0 0
  %341 = vmatpush1.bf16.msra.mxu0 %v299
  %342 = vmatprep.subr.bf16.mxu0 0
  %343 = vmatpush1.bf16.msra.mxu0 %v300
  %344 = vmatprep.subr.bf16.mxu0 0
  %345 = vmatpush1.bf16.msra.mxu0 %v301
  %346 = vmatprep.subr.bf16.mxu0 0
  %347 = vmatpush1.bf16.msra.mxu0 %v302
  %348 = vmatprep.subr.bf16.mxu0 0
  %349 = vmatpush1.bf16.msra.mxu0 %v303
  %350 = vmatprep.subr.bf16.mxu0 0
  %351 = vmatpush1.bf16.msra.mxu0 %v304
  %352 = vmatprep.subr.bf16.mxu0 0
  %353 = vmatpush1.bf16.msra.mxu0 %v305
  %354 = vmatprep.mubr.bf16.mxu0 %v219
  %355 = vmatmul.mubr.bf16.gmra.mrb[0].mxu0 %v218
  %v356 = vpop.f32.mrb[0].mxu0
  %v357 = vadd.f32 %v224, %v356
  %v358 = vpop.f32.mrb[0].mxu0
  %v359 = vpop.f32.mrb[0].mxu0
  %v360 = vadd.f32 %v224, %v359
  %v361 = vpop.f32.mrb[0].mxu0
  %362 = vdwg.mxu0
  %v363 = vadd.f32 %v357, %v27
  %v364 = vadd.f32 %v360, %v28
  %365 = vadd.xlane.f32.xlu0 %v363
  %v366 = vpop.xlane.xlu0 %365
  %367 = vadd.xlane.f32.xlu0 %v364
  %v368 = vpop.xlane.xlu0 %367
  %v369 = vrcp.pop 128.0
  %v370 = vmul.f32 %v366, %v369
  %v371 = vmul.f32 %v368, %v369
  %v372 = vsub.f32 %v363, %v370
  %v373 = vsub.f32 %v364, %v371
  %v374 = vmul.f32 %v372, %v372
  %v375 = vmul.f32 %v373, %v373
  %376 = vadd.xlane.f32.xlu0 %v374
  %v377 = vpop.xlane.xlu0 %376
  %378 = vadd.xlane.f32.xlu0 %v375
  %v379 = vpop.xlane.xlu0 %378
  %v380 = vmul.f32 %v377, %v369
  %v381 = vmul.f32 %v379, %v369
  %v382 = vadd.f32 %v380, 1e-05
  %v383 = vadd.f32 %v381, 1e-05
  %v384 = vrsqrt.pop %v382
  %v385 = vrsqrt.pop %v383
  %v386 = vmul.f32 %v372, %v384
  %v387 = vmul.f32 %v373, %v385
  %v388 = vld [vmem:[%s5] sm:$0x1]
  %v390 = vlaneseq
  %v391 = vshrl.u32 %v390, 7
  %v392 = vsub.s32 0, %v391
  %v393 = vrot.slane %v388, %v392
  %v395 = vmul.f32 %v386, %v393
  %v396 = vmul.f32 %v387, %v393
  %v397 = vld [vmem:[%s6] sm:$0x1]
  %v399 = vlaneseq
  %v400 = vshrl.u32 %v399, 7
  %v401 = vsub.s32 0, %v400
  %v402 = vrot.slane %v397, %v401
  %v404 = vadd.f32 %v395, %v402
  %v405 = vadd.f32 %v396, %v402
  %406 = vst [vmem:[%s7] sm:$0xff] %v404
  %407 = vst [vmem:[%s7 + $0x8] sm:$0xff] %v405
  // Predicated region
  $region30: #{transformer2d_forward.53} parent=0 // pred_check
    _
  $region31: #{transformer2d_forward.53} parent=0 // pred_check_branch
    %409 = sbr.rel (0) target = $region33
  $region32: #{transformer2d_forward.53} parent=0 // pred_region
    _
  $region33: #{transformer2d_forward.53} parent=0 // pred_fallthru
    _
  // Predicated region
  $region34: #{transformer2d_forward.53} parent=0 // pred_check
    _
  $region35: #{transformer2d_forward.53} parent=0 // pred_check_branch
    %411 = sbr.rel (0) target = $region37
  $region36: #{transformer2d_forward.53} parent=0 // pred_region
    _
  $region37: #{transformer2d_forward.53} parent=0 // pred_fallthru
    _

// kernel: transformer2d_forward.71
$region0: #{transformer2d_forward.71}
  #allocation0 [shape = 'u32[]', space=smem, size = 0x4, offset = 0x4, fixed_abs, tag = 'smem constant byte address 0x4 - core index']
  #allocation1 [shape = 'u32[144,128]{1,0:T(1,128)}', space=vmem, size = 0x12000, scoped, tag = 'internal scratch']
  %s0 = inlined_call_operand.vmem [shape: f32[16,128], index: 0, kind: input, shape index: {}]
  %s1 = inlined_call_operand.vmem [shape: bf16[128,256], index: 1, kind: input, shape index: {}]
  %s2 = inlined_call_operand.vmem [shape: f32[1,256], index: 2, kind: input, shape index: {}]
  %s3 = inlined_call_operand.vmem [shape: bf16[256,256], index: 3, kind: input, shape index: {}]
  %s4 = inlined_call_operand.vmem [shape: f32[1,256], index: 4, kind: input, shape index: {}]
  %s5 = inlined_call_operand.vmem [shape: bf16[256,128], index: 5, kind: input, shape index: {}]
  %s6 = inlined_call_operand.vmem [shape: f32[1,128], index: 6, kind: input, shape index: {}]
  %s7 = inlined_call_operand.vmem [shape: f32[16,128], index: 7, kind: output, shape index: {}]
  %s8 = sld [smem:[#allocation0]]
  $region38: #{transformer2d_forward.71} parent=0
    _
  %s10 = ssub.s32 1, %s8
  %s11 = scalar_select 0, %s10, %s8
  // Predicated region
  $region2: #{transformer2d_forward.71} parent=0 // pred_check
    _
  $region3: #{transformer2d_forward.71} parent=0 // pred_check_branch
    %13 = sbr.rel (0) target = $region5
  $region4: #{transformer2d_forward.71} parent=0 // pred_region
    _
  $region5: #{transformer2d_forward.71} parent=0 // pred_fallthru
    _
  // Predicated region
  $region6: #{transformer2d_forward.71} parent=0 // pred_check
    _
  $region7: #{transformer2d_forward.71} parent=0 // pred_check_branch
    %15 = sbr.rel (0) target = $region9
  $region8: #{transformer2d_forward.71} parent=0 // pred_region
    _
  $region9: #{transformer2d_forward.71} parent=0 // pred_fallthru
    _
  // Predicated region
  $region10: #{transformer2d_forward.71} parent=0 // pred_check
    _
  $region11: #{transformer2d_forward.71} parent=0 // pred_check_branch
    %17 = sbr.rel (0) target = $region13
  $region12: #{transformer2d_forward.71} parent=0 // pred_region
    _
  $region13: #{transformer2d_forward.71} parent=0 // pred_fallthru
    _
  // Predicated region
  $region14: #{transformer2d_forward.71} parent=0 // pred_check
    _
  $region15: #{transformer2d_forward.71} parent=0 // pred_check_branch
    %19 = sbr.rel (0) target = $region17
  $region16: #{transformer2d_forward.71} parent=0 // pred_region
    _
  $region17: #{transformer2d_forward.71} parent=0 // pred_fallthru
    _
  // Predicated region
  $region18: #{transformer2d_forward.71} parent=0 // pred_check
    _
  $region19: #{transformer2d_forward.71} parent=0 // pred_check_branch
    %21 = sbr.rel (0) target = $region21
  $region20: #{transformer2d_forward.71} parent=0 // pred_region
    _
  $region21: #{transformer2d_forward.71} parent=0 // pred_fallthru
    _
  // Predicated region
  $region22: #{transformer2d_forward.71} parent=0 // pred_check
    _
  $region23: #{transformer2d_forward.71} parent=0 // pred_check_branch
    %23 = sbr.rel (0) target = $region25
  $region24: #{transformer2d_forward.71} parent=0 // pred_region
    _
  $region25: #{transformer2d_forward.71} parent=0 // pred_fallthru
    _
  // Predicated region
  $region26: #{transformer2d_forward.71} parent=0 // pred_check
    _
  $region27: #{transformer2d_forward.71} parent=0 // pred_check_branch
    %25 = sbr.rel (0) target = $region29
  $region28: #{transformer2d_forward.71} parent=0 // pred_region
    _
  $region29: #{transformer2d_forward.71} parent=0 // pred_fallthru
    _
  %v27 = vld [vmem:[%s0] sm:$0xff]
  %v28 = vld [vmem:[%s0 + $0x8] sm:$0xff]
  %v29 = vld [vmem:[%s1] sm:$0xff]
  %v30 = vld [vmem:[%s1 + $0x8] sm:$0xff]
  %v31 = vld [vmem:[%s1 + $0x10] sm:$0xff]
  %v32 = vld [vmem:[%s1 + $0x18] sm:$0xff]
  %v33 = vld [vmem:[%s1 + $0x20] sm:$0xff]
  %v34 = vld [vmem:[%s1 + $0x28] sm:$0xff]
  %v35 = vld [vmem:[%s1 + $0x30] sm:$0xff]
  %v36 = vld [vmem:[%s1 + $0x38] sm:$0xff]
  %v37 = vld [vmem:[%s1 + $0x40] sm:$0xff]
  %v38 = vld [vmem:[%s1 + $0x48] sm:$0xff]
  %v39 = vld [vmem:[%s1 + $0x50] sm:$0xff]
  %v40 = vld [vmem:[%s1 + $0x58] sm:$0xff]
  %v41 = vld [vmem:[%s1 + $0x60] sm:$0xff]
  %v42 = vld [vmem:[%s1 + $0x68] sm:$0xff]
  %v43 = vld [vmem:[%s1 + $0x70] sm:$0xff]
  %v44 = vld [vmem:[%s1 + $0x78] sm:$0xff]
  %v45 = vld [vmem:[%s2] sm:$0x3]
  %v46 = vpack.c.bf16 %v28, %v27
  %v48 = vlaneseq
  %v49 = vshrl.u32 %v48, 7
  %v50 = vsub.s32 0, %v49
  %v51 = vrot.slane %v45, %v50
  %v52 = vlaneseq
  %v53 = vshrl.u32 %v52, 7
  %v54 = vsub.s32 1, %v53
  %v55 = vrot.slane %v45, %v54
  %v74 = vunpack.c.l.b16 %v29
  %v75 = vunpack.c.h.b16 %v29
  %v76 = vunpack.c.l.b16 %v30
  %v77 = vunpack.c.h.b16 %v30
  %v78 = vunpack.c.l.b16 %v31
  %v79 = vunpack.c.h.b16 %v31
  %v80 = vunpack.c.l.b16 %v32
  %v81 = vunpack.c.h.b16 %v32
  %v82 = vunpack.c.l.b16 %v33
  %v83 = vunpack.c.h.b16 %v33
  %v84 = vunpack.c.l.b16 %v34
  %v85 = vunpack.c.h.b16 %v34
  %v86 = vunpack.c.l.b16 %v35
  %v87 = vunpack.c.h.b16 %v35
  %v88 = vunpack.c.l.b16 %v36
  %v89 = vunpack.c.h.b16 %v36
  %v90 = vunpack.c.l.b16 %v37
  %v91 = vunpack.c.h.b16 %v37
  %v92 = vunpack.c.l.b16 %v38
  %v93 = vunpack.c.h.b16 %v38
  %v94 = vunpack.c.l.b16 %v39
  %v95 = vunpack.c.h.b16 %v39
  %v96 = vunpack.c.l.b16 %v40
  %v97 = vunpack.c.h.b16 %v40
  %v98 = vunpack.c.l.b16 %v41
  %v99 = vunpack.c.h.b16 %v41
  %v100 = vunpack.c.l.b16 %v42
  %v101 = vunpack.c.h.b16 %v42
  %v102 = vunpack.c.l.b16 %v43
  %v103 = vunpack.c.h.b16 %v43
  %v104 = vunpack.c.l.b16 %v44
  %v105 = vunpack.c.h.b16 %v44
  %v106 = vpack.c.b16 %v76, %v74
  %v107 = vpack.c.b16 %v77, %v75
  %v108 = vpack.c.b16 %v80, %v78
  %v109 = vpack.c.b16 %v81, %v79
  %v110 = vpack.c.b16 %v84, %v82
  %v111 = vpack.c.b16 %v85, %v83
  %v112 = vpack.c.b16 %v88, %v86
  %v113 = vpack.c.b16 %v89, %v87
  %v114 = vpack.c.b16 %v92, %v90
  %v115 = vpack.c.b16 %v93, %v91
  %v116 = vpack.c.b16 %v96, %v94
  %v117 = vpack.c.b16 %v97, %v95
  %v118 = vpack.c.b16 %v100, %v98
  %v119 = vpack.c.b16 %v101, %v99
  %v120 = vpack.c.b16 %v104, %v102
  %v121 = vpack.c.b16 %v105, %v103
  %138 = vmatprep.subr.bf16.mxu0 %v107
  %139 = vmatpush1.bf16.msra.mxu0 %v106
  %140 = vmatprep.subr.bf16.mxu0 %v109
  %141 = vmatpush1.bf16.msra.mxu0 %v108
  %142 = vmatprep.subr.bf16.mxu0 %v111
  %143 = vmatpush1.bf16.msra.mxu0 %v110
  %144 = vmatprep.subr.bf16.mxu0 %v113
  %145 = vmatpush1.bf16.msra.mxu0 %v112
  %146 = vmatprep.subr.bf16.mxu0 %v115
  %147 = vmatpush1.bf16.msra.mxu0 %v114
  %148 = vmatprep.subr.bf16.mxu0 %v117
  %149 = vmatpush1.bf16.msra.mxu0 %v116
  %150 = vmatprep.subr.bf16.mxu0 %v119
  %151 = vmatpush1.bf16.msra.mxu0 %v118
  %152 = vmatprep.subr.bf16.mxu0 %v121
  %153 = vmatpush1.bf16.msra.mxu0 %v120
  %154 = vmatprep.subr.bf16.mxu0 0
  %155 = vmatpush1.bf16.msra.mxu0 0
  %156 = vmatprep.subr.bf16.mxu0 0
  %157 = vmatpush1.bf16.msra.mxu0 0
  %158 = vmatprep.subr.bf16.mxu0 0
  %159 = vmatpush1.bf16.msra.mxu0 0
  %160 = vmatprep.subr.bf16.mxu0 0
  %161 = vmatpush1.bf16.msra.mxu0 0
  %162 = vmatprep.subr.bf16.mxu0 0
  %163 = vmatpush1.bf16.msra.mxu0 0
  %164 = vmatprep.subr.bf16.mxu0 0
  %165 = vmatpush1.bf16.msra.mxu0 0
  %166 = vmatprep.subr.bf16.mxu0 0
  %167 = vmatpush1.bf16.msra.mxu0 0
  %168 = vmatprep.subr.bf16.mxu0 0
  %169 = vmatpush1.bf16.msra.mxu0 0
  %170 = vmatprep.mubr.bf16.mxu0 0
  %171 = vmatmul.mubr.bf16.gmra.mrb[0].mxu0 %v46
  %v172 = vpop.f32.mrb[0].mxu0
  %v173 = vadd.f32 %v51, %v172
  %v174 = vpop.f32.mrb[0].mxu0
  %v175 = vadd.f32 %v55, %v174
  %v176 = vpop.f32.mrb[0].mxu0
  %v177 = vadd.f32 %v51, %v176
  %v178 = vpop.f32.mrb[0].mxu0
  %v179 = vadd.f32 %v55, %v178
  %180 = vdwg.mxu0
  %v181 = vmax.f32 %v173, 0.0
  %v182 = vmax.f32 %v175, 0.0
  %v183 = vmax.f32 %v177, 0.0
  %v184 = vmax.f32 %v179, 0.0
  %v185 = vld [vmem:[%s3] sm:$0xff]
  %v186 = vld [vmem:[%s3 + $0x8] sm:$0xff]
  %v187 = vld [vmem:[%s3 + $0x10] sm:$0xff]
  %v188 = vld [vmem:[%s3 + $0x18] sm:$0xff]
  %v189 = vld [vmem:[%s3 + $0x20] sm:$0xff]
  %v190 = vld [vmem:[%s3 + $0x28] sm:$0xff]
  %v191 = vld [vmem:[%s3 + $0x30] sm:$0xff]
  %v192 = vld [vmem:[%s3 + $0x38] sm:$0xff]
  %v193 = vld [vmem:[%s3 + $0x40] sm:$0xff]
  %v194 = vld [vmem:[%s3 + $0x48] sm:$0xff]
  %v195 = vld [vmem:[%s3 + $0x50] sm:$0xff]
  %v196 = vld [vmem:[%s3 + $0x58] sm:$0xff]
  %v197 = vld [vmem:[%s3 + $0x60] sm:$0xff]
  %v198 = vld [vmem:[%s3 + $0x68] sm:$0xff]
  %v199 = vld [vmem:[%s3 + $0x70] sm:$0xff]
  %v200 = vld [vmem:[%s3 + $0x78] sm:$0xff]
  %v201 = vld [vmem:[%s3 + $0x80] sm:$0xff]
  %v202 = vld [vmem:[%s3 + $0x88] sm:$0xff]
  %v203 = vld [vmem:[%s3 + $0x90] sm:$0xff]
  %v204 = vld [vmem:[%s3 + $0x98] sm:$0xff]
  %v205 = vld [vmem:[%s3 + $0xa0] sm:$0xff]
  %v206 = vld [vmem:[%s3 + $0xa8] sm:$0xff]
  %v207 = vld [vmem:[%s3 + $0xb0] sm:$0xff]
  %v208 = vld [vmem:[%s3 + $0xb8] sm:$0xff]
  %v209 = vld [vmem:[%s3 + $0xc0] sm:$0xff]
  %v210 = vld [vmem:[%s3 + $0xc8] sm:$0xff]
  %v211 = vld [vmem:[%s3 + $0xd0] sm:$0xff]
  %v212 = vld [vmem:[%s3 + $0xd8] sm:$0xff]
  %v213 = vld [vmem:[%s3 + $0xe0] sm:$0xff]
  %v214 = vld [vmem:[%s3 + $0xe8] sm:$0xff]
  %v215 = vld [vmem:[%s3 + $0xf0] sm:$0xff]
  %v216 = vld [vmem:[%s3 + $0xf8] sm:$0xff]
  %v217 = vld [vmem:[%s4] sm:$0x3]
  %v218 = vpack.c.bf16 %v183, %v181
  %v219 = vpack.c.bf16 %v184, %v182
  %v221 = vlaneseq
  %v222 = vshrl.u32 %v221, 7
  %v223 = vsub.s32 0, %v222
  %v224 = vrot.slane %v217, %v223
  %v225 = vlaneseq
  %v226 = vshrl.u32 %v225, 7
  %v227 = vsub.s32 1, %v226
  %v228 = vrot.slane %v217, %v227
  %v263 = vunpack.c.l.b16 %v185
  %v264 = vunpack.c.h.b16 %v185
  %v265 = vunpack.c.l.b16 %v186
  %v266 = vunpack.c.h.b16 %v186
  %v267 = vunpack.c.l.b16 %v187
  %v268 = vunpack.c.h.b16 %v187
  %v269 = vunpack.c.l.b16 %v188
  %v270 = vunpack.c.h.b16 %v188
  %v271 = vunpack.c.l.b16 %v189
  %v272 = vunpack.c.h.b16 %v189
  %v273 = vunpack.c.l.b16 %v190
  %v274 = vunpack.c.h.b16 %v190
  %v275 = vunpack.c.l.b16 %v191
  %v276 = vunpack.c.h.b16 %v191
  %v277 = vunpack.c.l.b16 %v192
  %v278 = vunpack.c.h.b16 %v192
  %v279 = vunpack.c.l.b16 %v193
  %v280 = vunpack.c.h.b16 %v193
  %v281 = vunpack.c.l.b16 %v194
  %v282 = vunpack.c.h.b16 %v194
  %v283 = vunpack.c.l.b16 %v195
  %v284 = vunpack.c.h.b16 %v195
  %v285 = vunpack.c.l.b16 %v196
  %v286 = vunpack.c.h.b16 %v196
  %v287 = vunpack.c.l.b16 %v197
  %v288 = vunpack.c.h.b16 %v197
  %v289 = vunpack.c.l.b16 %v198
  %v290 = vunpack.c.h.b16 %v198
  %v291 = vunpack.c.l.b16 %v199
  %v292 = vunpack.c.h.b16 %v199
  %v293 = vunpack.c.l.b16 %v200
  %v294 = vunpack.c.h.b16 %v200
  %v295 = vunpack.c.l.b16 %v201
  %v296 = vunpack.c.h.b16 %v201
  %v297 = vunpack.c.l.b16 %v202
  %v298 = vunpack.c.h.b16 %v202
  %v299 = vunpack.c.l.b16 %v203
  %v300 = vunpack.c.h.b16 %v203
  %v301 = vunpack.c.l.b16 %v204
  %v302 = vunpack.c.h.b16 %v204
  %v303 = vunpack.c.l.b16 %v205
  %v304 = vunpack.c.h.b16 %v205
  %v305 = vunpack.c.l.b16 %v206
  %v306 = vunpack.c.h.b16 %v206
  %v307 = vunpack.c.l.b16 %v207
  %v308 = vunpack.c.h.b16 %v207
  %v309 = vunpack.c.l.b16 %v208
  %v310 = vunpack.c.h.b16 %v208
  %v311 = vunpack.c.l.b16 %v209
  %v312 = vunpack.c.h.b16 %v209
  %v313 = vunpack.c.l.b16 %v210
  %v314 = vunpack.c.h.b16 %v210
  %v315 = vunpack.c.l.b16 %v211
  %v316 = vunpack.c.h.b16 %v211
  %v317 = vunpack.c.l.b16 %v212
  %v318 = vunpack.c.h.b16 %v212
  %v319 = vunpack.c.l.b16 %v213
  %v320 = vunpack.c.h.b16 %v213
  %v321 = vunpack.c.l.b16 %v214
  %v322 = vunpack.c.h.b16 %v214
  %v323 = vunpack.c.l.b16 %v215
  %v324 = vunpack.c.h.b16 %v215
  %v325 = vunpack.c.l.b16 %v216
  %v326 = vunpack.c.h.b16 %v216
  %v327 = vpack.c.b16 %v265, %v263
  %v328 = vpack.c.b16 %v266, %v264
  %v329 = vpack.c.b16 %v269, %v267
  %v330 = vpack.c.b16 %v270, %v268
  %v331 = vpack.c.b16 %v273, %v271
  %v332 = vpack.c.b16 %v274, %v272
  %v333 = vpack.c.b16 %v277, %v275
  %v334 = vpack.c.b16 %v278, %v276
  %v335 = vpack.c.b16 %v281, %v279
  %v336 = vpack.c.b16 %v282, %v280
  %v337 = vpack.c.b16 %v285, %v283
  %v338 = vpack.c.b16 %v286, %v284
  %v339 = vpack.c.b16 %v289, %v287
  %v340 = vpack.c.b16 %v290, %v288
  %v341 = vpack.c.b16 %v293, %v291
  %v342 = vpack.c.b16 %v294, %v292
  %v343 = vpack.c.b16 %v297, %v295
  %v344 = vpack.c.b16 %v298, %v296
  %v345 = vpack.c.b16 %v301, %v299
  %v346 = vpack.c.b16 %v302, %v300
  %v347 = vpack.c.b16 %v305, %v303
  %v348 = vpack.c.b16 %v306, %v304
  %v349 = vpack.c.b16 %v309, %v307
  %v350 = vpack.c.b16 %v310, %v308
  %v351 = vpack.c.b16 %v313, %v311
  %v352 = vpack.c.b16 %v314, %v312
  %v353 = vpack.c.b16 %v317, %v315
  %v354 = vpack.c.b16 %v318, %v316
  %v355 = vpack.c.b16 %v321, %v319
  %v356 = vpack.c.b16 %v322, %v320
  %v357 = vpack.c.b16 %v325, %v323
  %v358 = vpack.c.b16 %v326, %v324
  %391 = vmatprep.subr.bf16.mxu0 %v328
  %392 = vmatpush1.bf16.msra.mxu0 %v327
  %393 = vmatprep.subr.bf16.mxu0 %v330
  %394 = vmatpush1.bf16.msra.mxu0 %v329
  %395 = vmatprep.subr.bf16.mxu0 %v332
  %396 = vmatpush1.bf16.msra.mxu0 %v331
  %397 = vmatprep.subr.bf16.mxu0 %v334
  %398 = vmatpush1.bf16.msra.mxu0 %v333
  %399 = vmatprep.subr.bf16.mxu0 %v336
  %400 = vmatpush1.bf16.msra.mxu0 %v335
  %401 = vmatprep.subr.bf16.mxu0 %v338
  %402 = vmatpush1.bf16.msra.mxu0 %v337
  %403 = vmatprep.subr.bf16.mxu0 %v340
  %404 = vmatpush1.bf16.msra.mxu0 %v339
  %405 = vmatprep.subr.bf16.mxu0 %v342
  %406 = vmatpush1.bf16.msra.mxu0 %v341
  %407 = vmatprep.subr.bf16.mxu0 %v344
  %408 = vmatpush1.bf16.msra.mxu0 %v343
  %409 = vmatprep.subr.bf16.mxu0 %v346
  %410 = vmatpush1.bf16.msra.mxu0 %v345
  %411 = vmatprep.subr.bf16.mxu0 %v348
  %412 = vmatpush1.bf16.msra.mxu0 %v347
  %413 = vmatprep.subr.bf16.mxu0 %v350
  %414 = vmatpush1.bf16.msra.mxu0 %v349
  %415 = vmatprep.subr.bf16.mxu0 %v352
  %416 = vmatpush1.bf16.msra.mxu0 %v351
  %417 = vmatprep.subr.bf16.mxu0 %v354
  %418 = vmatpush1.bf16.msra.mxu0 %v353
  %419 = vmatprep.subr.bf16.mxu0 %v356
  %420 = vmatpush1.bf16.msra.mxu0 %v355
  %421 = vmatprep.subr.bf16.mxu0 %v358
  %422 = vmatpush1.bf16.msra.mxu0 %v357
  %423 = vmatprep.mubr.bf16.mxu0 %v219
  %424 = vmatmul.mubr.bf16.gmra.mrb[0].mxu0 %v218
  %v425 = vpop.f32.mrb[0].mxu0
  %v426 = vadd.f32 %v224, %v425
  %v427 = vpop.f32.mrb[0].mxu0
  %v428 = vadd.f32 %v228, %v427
  %v429 = vpop.f32.mrb[0].mxu0
  %v430 = vadd.f32 %v224, %v429
  %v431 = vpop.f32.mrb[0].mxu0
  %v432 = vadd.f32 %v228, %v431
  %433 = vdwg.mxu0
  %v434 = vmax.f32 %v426, 0.0
  %v435 = vmax.f32 %v428, 0.0
  %v436 = vmax.f32 %v430, 0.0
  %v437 = vmax.f32 %v432, 0.0
  %v438 = vld [vmem:[%s5] sm:$0xf]
  %v439 = vld [vmem:[%s5 + $0x4] sm:$0xf]
  %v440 = vld [vmem:[%s5 + $0x8] sm:$0xf]
  %v441 = vld [vmem:[%s5 + $0xc] sm:$0xf]
  %v442 = vld [vmem:[%s5 + $0x10] sm:$0xf]
  %v443 = vld [vmem:[%s5 + $0x14] sm:$0xf]
  %v444 = vld [vmem:[%s5 + $0x18] sm:$0xf]
  %v445 = vld [vmem:[%s5 + $0x1c] sm:$0xf]
  %v446 = vld [vmem:[%s5 + $0x20] sm:$0xf]
  %v447 = vld [vmem:[%s5 + $0x24] sm:$0xf]
  %v448 = vld [vmem:[%s5 + $0x28] sm:$0xf]
  %v449 = vld [vmem:[%s5 + $0x2c] sm:$0xf]
  %v450 = vld [vmem:[%s5 + $0x30] sm:$0xf]
  %v451 = vld [vmem:[%s5 + $0x34] sm:$0xf]
  %v452 = vld [vmem:[%s5 + $0x38] sm:$0xf]
  %v453 = vld [vmem:[%s5 + $0x3c] sm:$0xf]
  %v454 = vld [vmem:[%s5 + $0x40] sm:$0xf]
  %v455 = vld [vmem:[%s5 + $0x44] sm:$0xf]
  %v456 = vld [vmem:[%s5 + $0x48] sm:$0xf]
  %v457 = vld [vmem:[%s5 + $0x4c] sm:$0xf]
  %v458 = vld [vmem:[%s5 + $0x50] sm:$0xf]
  %v459 = vld [vmem:[%s5 + $0x54] sm:$0xf]
  %v460 = vld [vmem:[%s5 + $0x58] sm:$0xf]
  %v461 = vld [vmem:[%s5 + $0x5c] sm:$0xf]
  %v462 = vld [vmem:[%s5 + $0x60] sm:$0xf]
  %v463 = vld [vmem:[%s5 + $0x64] sm:$0xf]
  %v464 = vld [vmem:[%s5 + $0x68] sm:$0xf]
  %v465 = vld [vmem:[%s5 + $0x6c] sm:$0xf]
  %v466 = vld [vmem:[%s5 + $0x70] sm:$0xf]
  %v467 = vld [vmem:[%s5 + $0x74] sm:$0xf]
  %v468 = vld [vmem:[%s5 + $0x78] sm:$0xf]
  %v469 = vld [vmem:[%s5 + $0x7c] sm:$0xf]
  %v470 = vld [vmem:[%s6] sm:$0x1]
  %v471 = vpack.c.bf16 %v436, %v434
  %v472 = vpack.c.bf16 %v437, %v435
  %v474 = vlaneseq
  %v475 = vshrl.u32 %v474, 7
  %v476 = vsub.s32 0, %v475
  %v477 = vrot.slane %v470, %v476
  %v511 = vunpack.c.l.b16 %v438
  %v512 = vunpack.c.l.b16 %v439
  %v513 = vunpack.c.l.b16 %v440
  %v514 = vunpack.c.l.b16 %v441
  %v515 = vunpack.c.l.b16 %v442
  %v516 = vunpack.c.l.b16 %v443
  %v517 = vunpack.c.l.b16 %v444
  %v518 = vunpack.c.l.b16 %v445
  %v519 = vunpack.c.l.b16 %v446
  %v520 = vunpack.c.l.b16 %v447
  %v521 = vunpack.c.l.b16 %v448
  %v522 = vunpack.c.l.b16 %v449
  %v523 = vunpack.c.l.b16 %v450
  %v524 = vunpack.c.l.b16 %v451
  %v525 = vunpack.c.l.b16 %v452
  %v526 = vunpack.c.l.b16 %v453
  %v527 = vunpack.c.l.b16 %v454
  %v528 = vunpack.c.l.b16 %v455
  %v529 = vunpack.c.l.b16 %v456
  %v530 = vunpack.c.l.b16 %v457
  %v531 = vunpack.c.l.b16 %v458
  %v532 = vunpack.c.l.b16 %v459
  %v533 = vunpack.c.l.b16 %v460
  %v534 = vunpack.c.l.b16 %v461
  %v535 = vunpack.c.l.b16 %v462
  %v536 = vunpack.c.l.b16 %v463
  %v537 = vunpack.c.l.b16 %v464
  %v538 = vunpack.c.l.b16 %v465
  %v539 = vunpack.c.l.b16 %v466
  %v540 = vunpack.c.l.b16 %v467
  %v541 = vunpack.c.l.b16 %v468
  %v542 = vunpack.c.l.b16 %v469
  %v543 = vpack.c.b16 %v512, %v511
  %v544 = vpack.c.b16 %v514, %v513
  %v545 = vpack.c.b16 %v516, %v515
  %v546 = vpack.c.b16 %v518, %v517
  %v547 = vpack.c.b16 %v520, %v519
  %v548 = vpack.c.b16 %v522, %v521
  %v549 = vpack.c.b16 %v524, %v523
  %v550 = vpack.c.b16 %v526, %v525
  %v551 = vpack.c.b16 %v528, %v527
  %v552 = vpack.c.b16 %v530, %v529
  %v553 = vpack.c.b16 %v532, %v531
  %v554 = vpack.c.b16 %v534, %v533
  %v555 = vpack.c.b16 %v536, %v535
  %v556 = vpack.c.b16 %v538, %v537
  %v557 = vpack.c.b16 %v540, %v539
  %v558 = vpack.c.b16 %v542, %v541
  %575 = vmatprep.subr.bf16.mxu0 0
  %576 = vmatpush1.bf16.msra.mxu0 %v543
  %577 = vmatprep.subr.bf16.mxu0 0
  %578 = vmatpush1.bf16.msra.mxu0 %v544
  %579 = vmatprep.subr.bf16.mxu0 0
  %580 = vmatpush1.bf16.msra.mxu0 %v545
  %581 = vmatprep.subr.bf16.mxu0 0
  %582 = vmatpush1.bf16.msra.mxu0 %v546
  %583 = vmatprep.subr.bf16.mxu0 0
  %584 = vmatpush1.bf16.msra.mxu0 %v547
  %585 = vmatprep.subr.bf16.mxu0 0
  %586 = vmatpush1.bf16.msra.mxu0 %v548
  %587 = vmatprep.subr.bf16.mxu0 0
  %588 = vmatpush1.bf16.msra.mxu0 %v549
  %589 = vmatprep.subr.bf16.mxu0 0
  %590 = vmatpush1.bf16.msra.mxu0 %v550
  %591 = vmatprep.subr.bf16.mxu0 0
  %592 = vmatpush1.bf16.msra.mxu0 %v551
  %593 = vmatprep.subr.bf16.mxu0 0
  %594 = vmatpush1.bf16.msra.mxu0 %v552
  %595 = vmatprep.subr.bf16.mxu0 0
  %596 = vmatpush1.bf16.msra.mxu0 %v553
  %597 = vmatprep.subr.bf16.mxu0 0
  %598 = vmatpush1.bf16.msra.mxu0 %v554
  %599 = vmatprep.subr.bf16.mxu0 0
  %600 = vmatpush1.bf16.msra.mxu0 %v555
  %601 = vmatprep.subr.bf16.mxu0 0
  %602 = vmatpush1.bf16.msra.mxu0 %v556
  %603 = vmatprep.subr.bf16.mxu0 0
  %604 = vmatpush1.bf16.msra.mxu0 %v557
  %605 = vmatprep.subr.bf16.mxu0 0
  %606 = vmatpush1.bf16.msra.mxu0 %v558
  %607 = vmatprep.mubr.bf16.mxu0 %v472
  %608 = vmatmul.mubr.bf16.gmra.mrb[0].mxu0 %v471
  %v609 = vpop.f32.mrb[0].mxu0
  %v610 = vadd.f32 %v477, %v609
  %v611 = vpop.f32.mrb[0].mxu0
  %v612 = vpop.f32.mrb[0].mxu0
  %v613 = vadd.f32 %v477, %v612
  %v614 = vpop.f32.mrb[0].mxu0
  %615 = vdwg.mxu0
  %616 = vst [vmem:[%s7] sm:$0xff] %v610
  %617 = vst [vmem:[%s7 + $0x8] sm:$0xff] %v613
  // Predicated region
  $region30: #{transformer2d_forward.71} parent=0 // pred_check
    _
  $region31: #{transformer2d_forward.71} parent=0 // pred_check_branch
    %619 = sbr.rel (0) target = $region33
  $region32: #{transformer2d_forward.71} parent=0 // pred_region
    _
  $region33: #{transformer2d_forward.71} parent=0 // pred_fallthru
    _
  // Predicated region
  $region34: #{transformer2d_forward.71} parent=0 // pred_check
    _
  $region35: #{transformer2d_forward.71} parent=0 // pred_check_branch
    %621 = sbr.rel (0) target = $region37
  $region36: #{transformer2d_forward.71} parent=0 // pred_region
    _
  $region37: #{transformer2d_forward.71} parent=0 // pred_fallthru
    _

</llo_original>
